<compile_context>
chip_gen: v7x
topology: tpu7x:2x2x1
jax: 0.10.0
libtpu: 0.0.40
codegen_flags: <defaults>
</compile_context>

<pallas_src>
import functools
import math

import jax
import jax.numpy as jnp
from jax.experimental import pallas as pl
from jax.experimental.pallas import tpu as pltpu


# ----------------------------- Pallas kernel --------------------------------
def _afm_kernel(F, E, A,
                fv_ref,     # (F, TB)     feat_value^T            (VMEM)
                fow_ref,    # (F, TB)     first-order weights^T   (VMEM)
                emb_ref,    # (E, F, TB)  embeddings, e-major     (VMEM)
                wf_ref,     # (E, A+1)    [att_W | p]             (SMEM scalars)
                b_ref,      # (A,)        attention bias          (SMEM)
                h_ref,      # (A,)        attention projection    (SMEM)
                bias_ref,   # (1,)        global bias             (SMEM)
                out_ref):   # (1, TB)     sigmoid(y), batch on lanes
    fv = fv_ref[...]                                              # (F, TB)
    tb = fv.shape[-1]

    # ---- first order term: sum_f w_f * v_f  (batch stays on lanes) ----
    y_first = jnp.sum(fow_ref[...] * fv, axis=0, keepdims=True)   # (1, TB)

    # ---- value-scaled embeddings, kept as E slabs of (F, TB) ----
    fe = [emb_ref[e] * fv for e in range(E)]                      # E x (F, TB)

    # Hoist all small parameters out of the loops (scalar reads from SMEM).
    # TODO(synk): if the bundle dump shows a vbcast per scalar use, splat these
    # to vregs once here instead (JAX does not CSE broadcast_in_dim).
    w_s = [[wf_ref[e, c] for c in range(A + 1)] for e in range(E)]
    b_s = [b_ref[a] for a in range(A)]
    h_s = [h_ref[a] for a in range(A)]
    bias = bias_ref[0]

    # ---- pairwise interactions via cyclic shifts + online softmax ----
    # Shift s pairs field f with field (f - s) mod F; shifts 1..F//2 cover every
    # unordered pair exactly once, except that for even F the s == F//2 slab
    # contains each pair twice -> only rows < F//2 are kept there.
    n_shifts = F // 2
    mask_last = (F % 2 == 0)
    if mask_last:
        row_id = jax.lax.broadcasted_iota(jnp.int32, (F, tb), 0)
        last_valid = row_id < (F // 2)

    m_run = jnp.full((1, tb), -1e30, jnp.float32)   # running max
    l_run = jnp.zeros((1, tb), jnp.float32)         # running sum exp
    n_run = jnp.zeros((1, tb), jnp.float32)         # running sum exp * (pw . p)

    # Static Python loop (n_shifts == 4 for F == 8); the explicit (m, l, n)
    # carry keeps per-iteration temporaries dead across iterations.
    for s in range(1, n_shifts + 1):
        # E-contraction on the VPU with SMEM scalars (K = E = 8 -> MXU useless).
        cols = [None] * (A + 1)                     # A att columns + fused p col
        for e in range(E):
            pw_e = fe[e] * pltpu.roll(fe[e], s, axis=0)           # (F, TB)
            for c in range(A + 1):
                t = pw_e * w_s[e][c]
                cols[c] = t if cols[c] is None else cols[c] + t
        # LocationBasedAttention logit: relu(pw @ W + b) . h
        # TODO(synk): LocationBasedAttention source not provided; standard form assumed.
        z = None
        for a in range(A):
            t = jnp.maximum(cols[a] + b_s[a], 0.0) * h_s[a]
            z = t if z is None else z + t           # (F, TB)
        d = cols[A]                                 # (F, TB)  pw . p

        # Online-softmax update.  Masked duplicate rows contribute 0 to l and n;
        # they may enter the max, which is harmless because they duplicate the
        # kept rows' values exactly.
        m_new = jnp.maximum(m_run, jnp.max(z, axis=0, keepdims=True))
        alpha = jnp.exp(m_run - m_new)              # (1, TB)
        e_z = jnp.exp(z - m_new)                    # (F, TB)
        if mask_last and s == n_shifts:
            e_z = jnp.where(last_valid, e_z, 0.0)
        l_run = alpha * l_run + jnp.sum(e_z, axis=0, keepdims=True)
        n_run = alpha * n_run + jnp.sum(e_z * d, axis=0, keepdims=True)
        m_run = m_new

    att_pool = n_run * pl.reciprocal(l_run, approx=True)          # (1, TB)

    y = bias + y_first + att_pool                                 # (1, TB)
    # OutputLayer(1, 'binary'): in_dim == 1 -> sigmoid only.
    # TODO(synk): OutputLayer source not provided; 'binary' assumed to be sigmoid.
    # TODO(synk): on v6e/v7x the pw/cols math could run in bf16 (halves VALU ops
    # and vregs); kept f32 so the 5e-4 check holds on every TPU generation.
    out_ref[...] = jax.nn.sigmoid(y)


# ------------------------------ wrapper --------------------------------------
def afm_forward(feat_index, feat_value, params, *, num_fields, tb=512):
    """AFM forward; batch lives on the lane axis inside the kernel.

    tb: batch tile (multiple of 128).  Sizing guidance:
      * v7x (2 TCs): keep the grid even and >= 2 steps (tb ~ Bp // (2k)).
      * v5e/v6e (1 TC): raise tb to 1024-2048 for large B to amortize the
        ~0.35us per-grid-step overhead (footprint stays well under 2 MiB).
    """
    B, F = feat_value.shape
    E = params["emb_table"].shape[1]
    A = params["att_w"].shape[1]
    assert F == num_fields and F >= 2, "need at least 2 fields"
    assert tb % 128 == 0, "batch tile must be a multiple of 128 lanes"

    feat_value = feat_value.astype(jnp.float32)

    # Glue: embedding-table gathers + layout transposes in plain JAX.
    fow = params["first_order_table"][feat_index][..., 0]         # (B, F)
    emb = params["emb_table"][feat_index]                         # (B, F, E)

    fv_t = feat_value.T                                           # (F, B)
    fow_t = fow.T                                                 # (F, B)
    emb_t = emb.transpose(2, 1, 0)                                # (E, F, B)

    # Pad batch to a multiple of tb (padded lanes are all-zero -> harmless,
    # they are sliced off afterwards and nothing reduces over the lane axis).
    Bp = ((B + tb - 1) // tb) * tb
    if Bp != B:
        pad = Bp - B
        fv_t = jnp.pad(fv_t, ((0, 0), (0, pad)))
        fow_t = jnp.pad(fow_t, ((0, 0), (0, pad)))
        emb_t = jnp.pad(emb_t, ((0, 0), (0, 0), (0, pad)))

    # Fused weight [att_W | p]  (E, A+1), read as scalars from SMEM.
    wf = jnp.concatenate([params["att_w"], params["p"].reshape(E, 1)], axis=1)

    kernel = functools.partial(_afm_kernel, F, E, A)
    out = pl.pallas_call(
        kernel,
        out_shape=jax.ShapeDtypeStruct((1, Bp), jnp.float32),
        grid=(Bp // tb,),
        in_specs=[
            pl.BlockSpec((F, tb), lambda i: (0, i)),              # feat_value^T
            pl.BlockSpec((F, tb), lambda i: (0, i)),              # first-order w^T
            pl.BlockSpec((E, F, tb), lambda i: (0, 0, i)),        # embeddings (e-major)
            pl.BlockSpec(memory_space=pltpu.MemorySpace.SMEM),    # [W | p]
            pl.BlockSpec(memory_space=pltpu.MemorySpace.SMEM),    # att_b
            pl.BlockSpec(memory_space=pltpu.MemorySpace.SMEM),    # att_h
            pl.BlockSpec(memory_space=pltpu.MemorySpace.SMEM),    # bias
        ],
        out_specs=pl.BlockSpec((1, tb), lambda i: (0, i)),
        compiler_params=pltpu.CompilerParams(
            dimension_semantics=("parallel",)),
    )(fv_t, fow_t, emb_t, wf,
      params["att_b"], params["att_h"], params["bias"])
    return out[0, :B]                                             # (B,)


# --------------------------- pure-JAX reference -------------------------------
def afm_reference(feat_index, feat_value, params, *, num_fields):
    fv = feat_value[..., None]                                    # (B, F, 1)
    fow = params["first_order_table"][feat_index]                 # (B, F, 1)
    y_first = jnp.sum(fow * fv, axis=1)[:, 0]                     # (B,)
    emb = params["emb_table"][feat_index]                         # (B, F, E)
    fev = emb * fv                                                # (B, F, E)
    rows, cols = [], []
    for i in range(num_fields - 1):
        for j in range(i + 1, num_fields):
            rows.append(i)
            cols.append(j)
    p = fev[:, jnp.array(rows), :]
    q = fev[:, jnp.array(cols), :]
    pw = p * q                                                    # (B, P, E)
    s = jnp.maximum(jnp.einsum("bpe,ea->bpa", pw, params["att_w"])
                    + params["att_b"], 0.0)
    z = jnp.sum(s * params["att_h"], axis=2)                      # (B, P)
    att = jax.nn.softmax(z, axis=1)
    att_pool = jnp.sum(att[..., None] * pw, axis=1)               # (B, E)
    att_pool = jnp.sum(att_pool * params["p"], axis=1)            # (B,)
    y = params["bias"][0] + y_first + att_pool
    return jax.nn.sigmoid(y)


# ------------------------------ param init ------------------------------------
def init_params(key, num_feats, emb_dim, att_weight_dim):
    k1, k2, k3, k4, k5, k6, k7 = jax.random.split(key, 7)

    def xavier(k, shape):
        fan_in, fan_out = shape[1], shape[0]
        bound = math.sqrt(6.0 / (fan_in + fan_out))
        return jax.random.uniform(k, shape, jnp.float32, -bound, bound)

    return {
        "first_order_table": xavier(k1, (num_feats, 1)),
        "emb_table": xavier(k2, (num_feats, emb_dim)),
        "bias": jax.random.normal(k3, (1,), jnp.float32),
        "att_w": xavier(k4, (emb_dim, att_weight_dim)),
        # Nonzero bias so the relu(x @ W + b) path is actually exercised.
        "att_b": 0.1 * jax.random.normal(k7, (att_weight_dim,), jnp.float32),
        "att_h": jax.random.normal(k5, (att_weight_dim,), jnp.float32),
        "p": jax.random.normal(k6, (emb_dim,), jnp.float32),
    }


if __name__ == "__main__":
    # Module-consistent shapes; B chosen so the 512-wide batch tile gives an even
    # 2-step grid (both v7x TCs busy) and the padding path (1000 -> 1024) runs.
    B, num_fields, emb_dim, num_feats, att_weight_dim = 1000, 8, 8, 32, 4

    key = jax.random.PRNGKey(0)
    kp, ki, kv = jax.random.split(key, 3)
    params = init_params(kp, num_feats, emb_dim, att_weight_dim)

    feat_index = jax.random.randint(ki, (B, num_fields), 0, num_feats, jnp.int32)
    feat_value = jax.random.uniform(kv, (B, num_fields), jnp.float32)

    out = afm_forward(feat_index, feat_value, params, num_fields=num_fields, tb=512)
    out = jax.block_until_ready(out)

    ref = afm_reference(feat_index, feat_value, params, num_fields=num_fields)
    assert out.shape == (B,)
    # Tolerance accounts for the approximate (EUP) reciprocal in the softmax.
    max_err = float(jnp.max(jnp.abs(out - ref)))
    assert jnp.allclose(out, ref, atol=5e-4, rtol=5e-4), f"max abs err={max_err}"

    print("KERNEL_OK")
</pallas_src>

<mosaic_0001>
module attributes {stable_mosaic.version = 11 : i64} {
  func.func @_afm_kernel(%arg0: i32, %arg1: memref<8x512xf32, #tpu.memory_space<vmem>>, %arg2: memref<8x512xf32, #tpu.memory_space<vmem>>, %arg3: memref<8x8x512xf32, #tpu.memory_space<vmem>>, %arg4: memref<8x5xf32, #tpu.memory_space<smem>>, %arg5: memref<4xf32, #tpu.memory_space<smem>>, %arg6: memref<4xf32, #tpu.memory_space<smem>>, %arg7: memref<1xf32, #tpu.memory_space<smem>>, %arg8: memref<1x512xf32, #tpu.memory_space<vmem>>) attributes {dimension_semantics = [#tpu.dimension_semantics<parallel>], iteration_bounds = array<i64: 2>, scalar_prefetch = 0 : i64, scratch_operands = 0 : i64, tpu.core_type = #tpu.core_type<tc>, window_params = [{transform_indices = @transform_0, window_bounds = array<i64: 8, 512>}, {transform_indices = @transform_1, window_bounds = array<i64: 8, 512>}, {transform_indices = @transform_2, window_bounds = array<i64: 8, 8, 512>}, {transform_indices = @transform_3, window_bounds = array<i64: 8, 5>}, {transform_indices = @transform_4, window_bounds = array<i64: 4>}, {transform_indices = @transform_5, window_bounds = array<i64: 4>}, {transform_indices = @transform_6, window_bounds = array<i64: 1>}, {transform_indices = @transform_7, window_bounds = array<i64: 1, 512>}]} {
    %c0 = arith.constant 0 : index
    %c0_0 = arith.constant 0 : index
    %0 = vector.load %arg1[%c0, %c0_0] : memref<8x512xf32, #tpu.memory_space<vmem>>, vector<8x512xf32>
    %c0_1 = arith.constant 0 : index
    %c0_2 = arith.constant 0 : index
    %1 = vector.load %arg2[%c0_1, %c0_2] : memref<8x512xf32, #tpu.memory_space<vmem>>, vector<8x512xf32>
    %2 = arith.mulf %1, %0 : vector<8x512xf32>
    %cst = arith.constant dense<0.000000e+00> : vector<512xf32>
    %3 = vector.multi_reduction <add>, %2, %cst [0] : vector<8x512xf32> to vector<512xf32>
    %4 = vector.shape_cast %3 : vector<512xf32> to vector<1x512xf32>
    %c0_3 = arith.constant 0 : index
    %c0_4 = arith.constant 0 : index
    %c0_5 = arith.constant 0 : index
    %5 = vector.load %arg3[%c0_3, %c0_4, %c0_5] : memref<8x8x512xf32, #tpu.memory_space<vmem>>, vector<1x8x512xf32>
    %6 = vector.shape_cast %5 : vector<1x8x512xf32> to vector<8x512xf32>
    %7 = arith.mulf %6, %0 : vector<8x512xf32>
    %c1 = arith.constant 1 : index
    %c0_6 = arith.constant 0 : index
    %c0_7 = arith.constant 0 : index
    %8 = vector.load %arg3[%c1, %c0_6, %c0_7] : memref<8x8x512xf32, #tpu.memory_space<vmem>>, vector<1x8x512xf32>
    %9 = vector.shape_cast %8 : vector<1x8x512xf32> to vector<8x512xf32>
    %10 = arith.mulf %9, %0 : vector<8x512xf32>
    %c2 = arith.constant 2 : index
    %c0_8 = arith.constant 0 : index
    %c0_9 = arith.constant 0 : index
    %11 = vector.load %arg3[%c2, %c0_8, %c0_9] : memref<8x8x512xf32, #tpu.memory_space<vmem>>, vector<1x8x512xf32>
    %12 = vector.shape_cast %11 : vector<1x8x512xf32> to vector<8x512xf32>
    %13 = arith.mulf %12, %0 : vector<8x512xf32>
    %c3 = arith.constant 3 : index
    %c0_10 = arith.constant 0 : index
    %c0_11 = arith.constant 0 : index
    %14 = vector.load %arg3[%c3, %c0_10, %c0_11] : memref<8x8x512xf32, #tpu.memory_space<vmem>>, vector<1x8x512xf32>
    %15 = vector.shape_cast %14 : vector<1x8x512xf32> to vector<8x512xf32>
    %16 = arith.mulf %15, %0 : vector<8x512xf32>
    %c4 = arith.constant 4 : index
    %c0_12 = arith.constant 0 : index
    %c0_13 = arith.constant 0 : index
    %17 = vector.load %arg3[%c4, %c0_12, %c0_13] : memref<8x8x512xf32, #tpu.memory_space<vmem>>, vector<1x8x512xf32>
    %18 = vector.shape_cast %17 : vector<1x8x512xf32> to vector<8x512xf32>
    %19 = arith.mulf %18, %0 : vector<8x512xf32>
    %c5 = arith.constant 5 : index
    %c0_14 = arith.constant 0 : index
    %c0_15 = arith.constant 0 : index
    %20 = vector.load %arg3[%c5, %c0_14, %c0_15] : memref<8x8x512xf32, #tpu.memory_space<vmem>>, vector<1x8x512xf32>
    %21 = vector.shape_cast %20 : vector<1x8x512xf32> to vector<8x512xf32>
    %22 = arith.mulf %21, %0 : vector<8x512xf32>
    %c6 = arith.constant 6 : index
    %c0_16 = arith.constant 0 : index
    %c0_17 = arith.constant 0 : index
    %23 = vector.load %arg3[%c6, %c0_16, %c0_17] : memref<8x8x512xf32, #tpu.memory_space<vmem>>, vector<1x8x512xf32>
    %24 = vector.shape_cast %23 : vector<1x8x512xf32> to vector<8x512xf32>
    %25 = arith.mulf %24, %0 : vector<8x512xf32>
    %c7 = arith.constant 7 : index
    %c0_18 = arith.constant 0 : index
    %c0_19 = arith.constant 0 : index
    %26 = vector.load %arg3[%c7, %c0_18, %c0_19] : memref<8x8x512xf32, #tpu.memory_space<vmem>>, vector<1x8x512xf32>
    %27 = vector.shape_cast %26 : vector<1x8x512xf32> to vector<8x512xf32>
    %28 = arith.mulf %27, %0 : vector<8x512xf32>
    %c0_20 = arith.constant 0 : index
    %c0_21 = arith.constant 0 : index
    %29 = memref.load %arg4[%c0_20, %c0_21] : memref<8x5xf32, #tpu.memory_space<smem>>
    %c0_22 = arith.constant 0 : index
    %c1_23 = arith.constant 1 : index
    %30 = memref.load %arg4[%c0_22, %c1_23] : memref<8x5xf32, #tpu.memory_space<smem>>
    %c0_24 = arith.constant 0 : index
    %c2_25 = arith.constant 2 : index
    %31 = memref.load %arg4[%c0_24, %c2_25] : memref<8x5xf32, #tpu.memory_space<smem>>
    %c0_26 = arith.constant 0 : index
    %c3_27 = arith.constant 3 : index
    %32 = memref.load %arg4[%c0_26, %c3_27] : memref<8x5xf32, #tpu.memory_space<smem>>
    %c0_28 = arith.constant 0 : index
    %c4_29 = arith.constant 4 : index
    %33 = memref.load %arg4[%c0_28, %c4_29] : memref<8x5xf32, #tpu.memory_space<smem>>
    %c1_30 = arith.constant 1 : index
    %c0_31 = arith.constant 0 : index
    %34 = memref.load %arg4[%c1_30, %c0_31] : memref<8x5xf32, #tpu.memory_space<smem>>
    %c1_32 = arith.constant 1 : index
    %c1_33 = arith.constant 1 : index
    %35 = memref.load %arg4[%c1_32, %c1_33] : memref<8x5xf32, #tpu.memory_space<smem>>
    %c1_34 = arith.constant 1 : index
    %c2_35 = arith.constant 2 : index
    %36 = memref.load %arg4[%c1_34, %c2_35] : memref<8x5xf32, #tpu.memory_space<smem>>
    %c1_36 = arith.constant 1 : index
    %c3_37 = arith.constant 3 : index
    %37 = memref.load %arg4[%c1_36, %c3_37] : memref<8x5xf32, #tpu.memory_space<smem>>
    %c1_38 = arith.constant 1 : index
    %c4_39 = arith.constant 4 : index
    %38 = memref.load %arg4[%c1_38, %c4_39] : memref<8x5xf32, #tpu.memory_space<smem>>
    %c2_40 = arith.constant 2 : index
    %c0_41 = arith.constant 0 : index
    %39 = memref.load %arg4[%c2_40, %c0_41] : memref<8x5xf32, #tpu.memory_space<smem>>
    %c2_42 = arith.constant 2 : index
    %c1_43 = arith.constant 1 : index
    %40 = memref.load %arg4[%c2_42, %c1_43] : memref<8x5xf32, #tpu.memory_space<smem>>
    %c2_44 = arith.constant 2 : index
    %c2_45 = arith.constant 2 : index
    %41 = memref.load %arg4[%c2_44, %c2_45] : memref<8x5xf32, #tpu.memory_space<smem>>
    %c2_46 = arith.constant 2 : index
    %c3_47 = arith.constant 3 : index
    %42 = memref.load %arg4[%c2_46, %c3_47] : memref<8x5xf32, #tpu.memory_space<smem>>
    %c2_48 = arith.constant 2 : index
    %c4_49 = arith.constant 4 : index
    %43 = memref.load %arg4[%c2_48, %c4_49] : memref<8x5xf32, #tpu.memory_space<smem>>
    %c3_50 = arith.constant 3 : index
    %c0_51 = arith.constant 0 : index
    %44 = memref.load %arg4[%c3_50, %c0_51] : memref<8x5xf32, #tpu.memory_space<smem>>
    %c3_52 = arith.constant 3 : index
    %c1_53 = arith.constant 1 : index
    %45 = memref.load %arg4[%c3_52, %c1_53] : memref<8x5xf32, #tpu.memory_space<smem>>
    %c3_54 = arith.constant 3 : index
    %c2_55 = arith.constant 2 : index
    %46 = memref.load %arg4[%c3_54, %c2_55] : memref<8x5xf32, #tpu.memory_space<smem>>
    %c3_56 = arith.constant 3 : index
    %c3_57 = arith.constant 3 : index
    %47 = memref.load %arg4[%c3_56, %c3_57] : memref<8x5xf32, #tpu.memory_space<smem>>
    %c3_58 = arith.constant 3 : index
    %c4_59 = arith.constant 4 : index
    %48 = memref.load %arg4[%c3_58, %c4_59] : memref<8x5xf32, #tpu.memory_space<smem>>
    %c4_60 = arith.constant 4 : index
    %c0_61 = arith.constant 0 : index
    %49 = memref.load %arg4[%c4_60, %c0_61] : memref<8x5xf32, #tpu.memory_space<smem>>
    %c4_62 = arith.constant 4 : index
    %c1_63 = arith.constant 1 : index
    %50 = memref.load %arg4[%c4_62, %c1_63] : memref<8x5xf32, #tpu.memory_space<smem>>
    %c4_64 = arith.constant 4 : index
    %c2_65 = arith.constant 2 : index
    %51 = memref.load %arg4[%c4_64, %c2_65] : memref<8x5xf32, #tpu.memory_space<smem>>
    %c4_66 = arith.constant 4 : index
    %c3_67 = arith.constant 3 : index
    %52 = memref.load %arg4[%c4_66, %c3_67] : memref<8x5xf32, #tpu.memory_space<smem>>
    %c4_68 = arith.constant 4 : index
    %c4_69 = arith.constant 4 : index
    %53 = memref.load %arg4[%c4_68, %c4_69] : memref<8x5xf32, #tpu.memory_space<smem>>
    %c5_70 = arith.constant 5 : index
    %c0_71 = arith.constant 0 : index
    %54 = memref.load %arg4[%c5_70, %c0_71] : memref<8x5xf32, #tpu.memory_space<smem>>
    %c5_72 = arith.constant 5 : index
    %c1_73 = arith.constant 1 : index
    %55 = memref.load %arg4[%c5_72, %c1_73] : memref<8x5xf32, #tpu.memory_space<smem>>
    %c5_74 = arith.constant 5 : index
    %c2_75 = arith.constant 2 : index
    %56 = memref.load %arg4[%c5_74, %c2_75] : memref<8x5xf32, #tpu.memory_space<smem>>
    %c5_76 = arith.constant 5 : index
    %c3_77 = arith.constant 3 : index
    %57 = memref.load %arg4[%c5_76, %c3_77] : memref<8x5xf32, #tpu.memory_space<smem>>
    %c5_78 = arith.constant 5 : index
    %c4_79 = arith.constant 4 : index
    %58 = memref.load %arg4[%c5_78, %c4_79] : memref<8x5xf32, #tpu.memory_space<smem>>
    %c6_80 = arith.constant 6 : index
    %c0_81 = arith.constant 0 : index
    %59 = memref.load %arg4[%c6_80, %c0_81] : memref<8x5xf32, #tpu.memory_space<smem>>
    %c6_82 = arith.constant 6 : index
    %c1_83 = arith.constant 1 : index
    %60 = memref.load %arg4[%c6_82, %c1_83] : memref<8x5xf32, #tpu.memory_space<smem>>
    %c6_84 = arith.constant 6 : index
    %c2_85 = arith.constant 2 : index
    %61 = memref.load %arg4[%c6_84, %c2_85] : memref<8x5xf32, #tpu.memory_space<smem>>
    %c6_86 = arith.constant 6 : index
    %c3_87 = arith.constant 3 : index
    %62 = memref.load %arg4[%c6_86, %c3_87] : memref<8x5xf32, #tpu.memory_space<smem>>
    %c6_88 = arith.constant 6 : index
    %c4_89 = arith.constant 4 : index
    %63 = memref.load %arg4[%c6_88, %c4_89] : memref<8x5xf32, #tpu.memory_space<smem>>
    %c7_90 = arith.constant 7 : index
    %c0_91 = arith.constant 0 : index
    %64 = memref.load %arg4[%c7_90, %c0_91] : memref<8x5xf32, #tpu.memory_space<smem>>
    %c7_92 = arith.constant 7 : index
    %c1_93 = arith.constant 1 : index
    %65 = memref.load %arg4[%c7_92, %c1_93] : memref<8x5xf32, #tpu.memory_space<smem>>
    %c7_94 = arith.constant 7 : index
    %c2_95 = arith.constant 2 : index
    %66 = memref.load %arg4[%c7_94, %c2_95] : memref<8x5xf32, #tpu.memory_space<smem>>
    %c7_96 = arith.constant 7 : index
    %c3_97 = arith.constant 3 : index
    %67 = memref.load %arg4[%c7_96, %c3_97] : memref<8x5xf32, #tpu.memory_space<smem>>
    %c7_98 = arith.constant 7 : index
    %c4_99 = arith.constant 4 : index
    %68 = memref.load %arg4[%c7_98, %c4_99] : memref<8x5xf32, #tpu.memory_space<smem>>
    %c0_100 = arith.constant 0 : index
    %69 = memref.load %arg5[%c0_100] : memref<4xf32, #tpu.memory_space<smem>>
    %c1_101 = arith.constant 1 : index
    %70 = memref.load %arg5[%c1_101] : memref<4xf32, #tpu.memory_space<smem>>
    %c2_102 = arith.constant 2 : index
    %71 = memref.load %arg5[%c2_102] : memref<4xf32, #tpu.memory_space<smem>>
    %c3_103 = arith.constant 3 : index
    %72 = memref.load %arg5[%c3_103] : memref<4xf32, #tpu.memory_space<smem>>
    %c0_104 = arith.constant 0 : index
    %73 = memref.load %arg6[%c0_104] : memref<4xf32, #tpu.memory_space<smem>>
    %c1_105 = arith.constant 1 : index
    %74 = memref.load %arg6[%c1_105] : memref<4xf32, #tpu.memory_space<smem>>
    %c2_106 = arith.constant 2 : index
    %75 = memref.load %arg6[%c2_106] : memref<4xf32, #tpu.memory_space<smem>>
    %c3_107 = arith.constant 3 : index
    %76 = memref.load %arg6[%c3_107] : memref<4xf32, #tpu.memory_space<smem>>
    %c0_108 = arith.constant 0 : index
    %77 = memref.load %arg7[%c0_108] : memref<1xf32, #tpu.memory_space<smem>>
    %78 = tpu.iota {dimensions = array<i32: 0>} : vector<8x512xi32>
    %c4_i32 = arith.constant 4 : i32
    %79 = vector.broadcast %c4_i32 : i32 to vector<8x512xi32>
    %80 = arith.cmpi slt, %78, %79 : vector<8x512xi32>
    %cst_109 = arith.constant -1.000000e+30 : f32
    %81 = vector.broadcast %cst_109 : f32 to vector<1x512xf32>
    %cst_110 = arith.constant 0.000000e+00 : f32
    %82 = vector.broadcast %cst_110 : f32 to vector<1x512xf32>
    %cst_111 = arith.constant 0.000000e+00 : f32
    %83 = vector.broadcast %cst_111 : f32 to vector<1x512xf32>
    %c1_i32 = arith.constant 1 : i32
    %84 = tpu.dynamic_rotate %7 by %c1_i32 dim 0 : vector<8x512xf32>, i32 -> vector<8x512xf32>
    %85 = arith.mulf %7, %84 : vector<8x512xf32>
    %86 = vector.broadcast %29 : f32 to vector<8x512xf32>
    %87 = arith.mulf %85, %86 : vector<8x512xf32>
    %88 = vector.broadcast %30 : f32 to vector<8x512xf32>
    %89 = arith.mulf %85, %88 : vector<8x512xf32>
    %90 = vector.broadcast %31 : f32 to vector<8x512xf32>
    %91 = arith.mulf %85, %90 : vector<8x512xf32>
    %92 = vector.broadcast %32 : f32 to vector<8x512xf32>
    %93 = arith.mulf %85, %92 : vector<8x512xf32>
    %94 = vector.broadcast %33 : f32 to vector<8x512xf32>
    %95 = arith.mulf %85, %94 : vector<8x512xf32>
    %c1_i32_112 = arith.constant 1 : i32
    %96 = tpu.dynamic_rotate %10 by %c1_i32_112 dim 0 : vector<8x512xf32>, i32 -> vector<8x512xf32>
    %97 = arith.mulf %10, %96 : vector<8x512xf32>
    %98 = vector.broadcast %34 : f32 to vector<8x512xf32>
    %99 = arith.mulf %97, %98 : vector<8x512xf32>
    %100 = arith.addf %87, %99 : vector<8x512xf32>
    %101 = vector.broadcast %35 : f32 to vector<8x512xf32>
    %102 = arith.mulf %97, %101 : vector<8x512xf32>
    %103 = arith.addf %89, %102 : vector<8x512xf32>
    %104 = vector.broadcast %36 : f32 to vector<8x512xf32>
    %105 = arith.mulf %97, %104 : vector<8x512xf32>
    %106 = arith.addf %91, %105 : vector<8x512xf32>
    %107 = vector.broadcast %37 : f32 to vector<8x512xf32>
    %108 = arith.mulf %97, %107 : vector<8x512xf32>
    %109 = arith.addf %93, %108 : vector<8x512xf32>
    %110 = vector.broadcast %38 : f32 to vector<8x512xf32>
    %111 = arith.mulf %97, %110 : vector<8x512xf32>
    %112 = arith.addf %95, %111 : vector<8x512xf32>
    %c1_i32_113 = arith.constant 1 : i32
    %113 = tpu.dynamic_rotate %13 by %c1_i32_113 dim 0 : vector<8x512xf32>, i32 -> vector<8x512xf32>
    %114 = arith.mulf %13, %113 : vector<8x512xf32>
    %115 = vector.broadcast %39 : f32 to vector<8x512xf32>
    %116 = arith.mulf %114, %115 : vector<8x512xf32>
    %117 = arith.addf %100, %116 : vector<8x512xf32>
    %118 = vector.broadcast %40 : f32 to vector<8x512xf32>
    %119 = arith.mulf %114, %118 : vector<8x512xf32>
    %120 = arith.addf %103, %119 : vector<8x512xf32>
    %121 = vector.broadcast %41 : f32 to vector<8x512xf32>
    %122 = arith.mulf %114, %121 : vector<8x512xf32>
    %123 = arith.addf %106, %122 : vector<8x512xf32>
    %124 = vector.broadcast %42 : f32 to vector<8x512xf32>
    %125 = arith.mulf %114, %124 : vector<8x512xf32>
    %126 = arith.addf %109, %125 : vector<8x512xf32>
    %127 = vector.broadcast %43 : f32 to vector<8x512xf32>
    %128 = arith.mulf %114, %127 : vector<8x512xf32>
    %129 = arith.addf %112, %128 : vector<8x512xf32>
    %c1_i32_114 = arith.constant 1 : i32
    %130 = tpu.dynamic_rotate %16 by %c1_i32_114 dim 0 : vector<8x512xf32>, i32 -> vector<8x512xf32>
    %131 = arith.mulf %16, %130 : vector<8x512xf32>
    %132 = vector.broadcast %44 : f32 to vector<8x512xf32>
    %133 = arith.mulf %131, %132 : vector<8x512xf32>
    %134 = arith.addf %117, %133 : vector<8x512xf32>
    %135 = vector.broadcast %45 : f32 to vector<8x512xf32>
    %136 = arith.mulf %131, %135 : vector<8x512xf32>
    %137 = arith.addf %120, %136 : vector<8x512xf32>
    %138 = vector.broadcast %46 : f32 to vector<8x512xf32>
    %139 = arith.mulf %131, %138 : vector<8x512xf32>
    %140 = arith.addf %123, %139 : vector<8x512xf32>
    %141 = vector.broadcast %47 : f32 to vector<8x512xf32>
    %142 = arith.mulf %131, %141 : vector<8x512xf32>
    %143 = arith.addf %126, %142 : vector<8x512xf32>
    %144 = vector.broadcast %48 : f32 to vector<8x512xf32>
    %145 = arith.mulf %131, %144 : vector<8x512xf32>
    %146 = arith.addf %129, %145 : vector<8x512xf32>
    %c1_i32_115 = arith.constant 1 : i32
    %147 = tpu.dynamic_rotate %19 by %c1_i32_115 dim 0 : vector<8x512xf32>, i32 -> vector<8x512xf32>
    %148 = arith.mulf %19, %147 : vector<8x512xf32>
    %149 = vector.broadcast %49 : f32 to vector<8x512xf32>
    %150 = arith.mulf %148, %149 : vector<8x512xf32>
    %151 = arith.addf %134, %150 : vector<8x512xf32>
    %152 = vector.broadcast %50 : f32 to vector<8x512xf32>
    %153 = arith.mulf %148, %152 : vector<8x512xf32>
    %154 = arith.addf %137, %153 : vector<8x512xf32>
    %155 = vector.broadcast %51 : f32 to vector<8x512xf32>
    %156 = arith.mulf %148, %155 : vector<8x512xf32>
    %157 = arith.addf %140, %156 : vector<8x512xf32>
    %158 = vector.broadcast %52 : f32 to vector<8x512xf32>
    %159 = arith.mulf %148, %158 : vector<8x512xf32>
    %160 = arith.addf %143, %159 : vector<8x512xf32>
    %161 = vector.broadcast %53 : f32 to vector<8x512xf32>
    %162 = arith.mulf %148, %161 : vector<8x512xf32>
    %163 = arith.addf %146, %162 : vector<8x512xf32>
    %c1_i32_116 = arith.constant 1 : i32
    %164 = tpu.dynamic_rotate %22 by %c1_i32_116 dim 0 : vector<8x512xf32>, i32 -> vector<8x512xf32>
    %165 = arith.mulf %22, %164 : vector<8x512xf32>
    %166 = vector.broadcast %54 : f32 to vector<8x512xf32>
    %167 = arith.mulf %165, %166 : vector<8x512xf32>
    %168 = arith.addf %151, %167 : vector<8x512xf32>
    %169 = vector.broadcast %55 : f32 to vector<8x512xf32>
    %170 = arith.mulf %165, %169 : vector<8x512xf32>
    %171 = arith.addf %154, %170 : vector<8x512xf32>
    %172 = vector.broadcast %56 : f32 to vector<8x512xf32>
    %173 = arith.mulf %165, %172 : vector<8x512xf32>
    %174 = arith.addf %157, %173 : vector<8x512xf32>
    %175 = vector.broadcast %57 : f32 to vector<8x512xf32>
    %176 = arith.mulf %165, %175 : vector<8x512xf32>
    %177 = arith.addf %160, %176 : vector<8x512xf32>
    %178 = vector.broadcast %58 : f32 to vector<8x512xf32>
    %179 = arith.mulf %165, %178 : vector<8x512xf32>
    %180 = arith.addf %163, %179 : vector<8x512xf32>
    %c1_i32_117 = arith.constant 1 : i32
    %181 = tpu.dynamic_rotate %25 by %c1_i32_117 dim 0 : vector<8x512xf32>, i32 -> vector<8x512xf32>
    %182 = arith.mulf %25, %181 : vector<8x512xf32>
    %183 = vector.broadcast %59 : f32 to vector<8x512xf32>
    %184 = arith.mulf %182, %183 : vector<8x512xf32>
    %185 = arith.addf %168, %184 : vector<8x512xf32>
    %186 = vector.broadcast %60 : f32 to vector<8x512xf32>
    %187 = arith.mulf %182, %186 : vector<8x512xf32>
    %188 = arith.addf %171, %187 : vector<8x512xf32>
    %189 = vector.broadcast %61 : f32 to vector<8x512xf32>
    %190 = arith.mulf %182, %189 : vector<8x512xf32>
    %191 = arith.addf %174, %190 : vector<8x512xf32>
    %192 = vector.broadcast %62 : f32 to vector<8x512xf32>
    %193 = arith.mulf %182, %192 : vector<8x512xf32>
    %194 = arith.addf %177, %193 : vector<8x512xf32>
    %195 = vector.broadcast %63 : f32 to vector<8x512xf32>
    %196 = arith.mulf %182, %195 : vector<8x512xf32>
    %197 = arith.addf %180, %196 : vector<8x512xf32>
    %c1_i32_118 = arith.constant 1 : i32
    %198 = tpu.dynamic_rotate %28 by %c1_i32_118 dim 0 : vector<8x512xf32>, i32 -> vector<8x512xf32>
    %199 = arith.mulf %28, %198 : vector<8x512xf32>
    %200 = vector.broadcast %64 : f32 to vector<8x512xf32>
    %201 = arith.mulf %199, %200 : vector<8x512xf32>
    %202 = arith.addf %185, %201 : vector<8x512xf32>
    %203 = vector.broadcast %65 : f32 to vector<8x512xf32>
    %204 = arith.mulf %199, %203 : vector<8x512xf32>
    %205 = arith.addf %188, %204 : vector<8x512xf32>
    %206 = vector.broadcast %66 : f32 to vector<8x512xf32>
    %207 = arith.mulf %199, %206 : vector<8x512xf32>
    %208 = arith.addf %191, %207 : vector<8x512xf32>
    %209 = vector.broadcast %67 : f32 to vector<8x512xf32>
    %210 = arith.mulf %199, %209 : vector<8x512xf32>
    %211 = arith.addf %194, %210 : vector<8x512xf32>
    %212 = vector.broadcast %68 : f32 to vector<8x512xf32>
    %213 = arith.mulf %199, %212 : vector<8x512xf32>
    %214 = arith.addf %197, %213 : vector<8x512xf32>
    %215 = vector.broadcast %69 : f32 to vector<8x512xf32>
    %216 = arith.addf %202, %215 : vector<8x512xf32>
    %cst_119 = arith.constant 0.000000e+00 : f32
    %217 = vector.broadcast %cst_119 : f32 to vector<8x512xf32>
    %218 = arith.maximumf %216, %217 : vector<8x512xf32>
    %219 = vector.broadcast %73 : f32 to vector<8x512xf32>
    %220 = arith.mulf %218, %219 : vector<8x512xf32>
    %221 = vector.broadcast %70 : f32 to vector<8x512xf32>
    %222 = arith.addf %205, %221 : vector<8x512xf32>
    %cst_120 = arith.constant 0.000000e+00 : f32
    %223 = vector.broadcast %cst_120 : f32 to vector<8x512xf32>
    %224 = arith.maximumf %222, %223 : vector<8x512xf32>
    %225 = vector.broadcast %74 : f32 to vector<8x512xf32>
    %226 = arith.mulf %224, %225 : vector<8x512xf32>
    %227 = arith.addf %220, %226 : vector<8x512xf32>
    %228 = vector.broadcast %71 : f32 to vector<8x512xf32>
    %229 = arith.addf %208, %228 : vector<8x512xf32>
    %cst_121 = arith.constant 0.000000e+00 : f32
    %230 = vector.broadcast %cst_121 : f32 to vector<8x512xf32>
    %231 = arith.maximumf %229, %230 : vector<8x512xf32>
    %232 = vector.broadcast %75 : f32 to vector<8x512xf32>
    %233 = arith.mulf %231, %232 : vector<8x512xf32>
    %234 = arith.addf %227, %233 : vector<8x512xf32>
    %235 = vector.broadcast %72 : f32 to vector<8x512xf32>
    %236 = arith.addf %211, %235 : vector<8x512xf32>
    %cst_122 = arith.constant 0.000000e+00 : f32
    %237 = vector.broadcast %cst_122 : f32 to vector<8x512xf32>
    %238 = arith.maximumf %236, %237 : vector<8x512xf32>
    %239 = vector.broadcast %76 : f32 to vector<8x512xf32>
    %240 = arith.mulf %238, %239 : vector<8x512xf32>
    %241 = arith.addf %234, %240 : vector<8x512xf32>
    %cst_123 = arith.constant dense<0xFF800000> : vector<512xf32>
    %242 = vector.multi_reduction <maximumf>, %241, %cst_123 [0] : vector<8x512xf32> to vector<512xf32>
    %243 = vector.shape_cast %242 : vector<512xf32> to vector<1x512xf32>
    %244 = arith.maximumf %81, %243 : vector<1x512xf32>
    %245 = arith.subf %81, %244 : vector<1x512xf32>
    %246 = math.exp %245 : vector<1x512xf32>
    %247 = vector.broadcast %244 : vector<1x512xf32> to vector<8x512xf32>
    %248 = arith.subf %241, %247 : vector<8x512xf32>
    %249 = math.exp %248 : vector<8x512xf32>
    %250 = arith.mulf %246, %82 : vector<1x512xf32>
    %cst_124 = arith.constant dense<0.000000e+00> : vector<512xf32>
    %251 = vector.multi_reduction <add>, %249, %cst_124 [0] : vector<8x512xf32> to vector<512xf32>
    %252 = vector.shape_cast %251 : vector<512xf32> to vector<1x512xf32>
    %253 = arith.addf %250, %252 : vector<1x512xf32>
    %254 = arith.mulf %246, %83 : vector<1x512xf32>
    %255 = arith.mulf %249, %214 : vector<8x512xf32>
    %cst_125 = arith.constant dense<0.000000e+00> : vector<512xf32>
    %256 = vector.multi_reduction <add>, %255, %cst_125 [0] : vector<8x512xf32> to vector<512xf32>
    %257 = vector.shape_cast %256 : vector<512xf32> to vector<1x512xf32>
    %258 = arith.addf %254, %257 : vector<1x512xf32>
    %c2_i32 = arith.constant 2 : i32
    %259 = tpu.dynamic_rotate %7 by %c2_i32 dim 0 : vector<8x512xf32>, i32 -> vector<8x512xf32>
    %260 = arith.mulf %7, %259 : vector<8x512xf32>
    %261 = vector.broadcast %29 : f32 to vector<8x512xf32>
    %262 = arith.mulf %260, %261 : vector<8x512xf32>
    %263 = vector.broadcast %30 : f32 to vector<8x512xf32>
    %264 = arith.mulf %260, %263 : vector<8x512xf32>
    %265 = vector.broadcast %31 : f32 to vector<8x512xf32>
    %266 = arith.mulf %260, %265 : vector<8x512xf32>
    %267 = vector.broadcast %32 : f32 to vector<8x512xf32>
    %268 = arith.mulf %260, %267 : vector<8x512xf32>
    %269 = vector.broadcast %33 : f32 to vector<8x512xf32>
    %270 = arith.mulf %260, %269 : vector<8x512xf32>
    %c2_i32_126 = arith.constant 2 : i32
    %271 = tpu.dynamic_rotate %10 by %c2_i32_126 dim 0 : vector<8x512xf32>, i32 -> vector<8x512xf32>
    %272 = arith.mulf %10, %271 : vector<8x512xf32>
    %273 = vector.broadcast %34 : f32 to vector<8x512xf32>
    %274 = arith.mulf %272, %273 : vector<8x512xf32>
    %275 = arith.addf %262, %274 : vector<8x512xf32>
    %276 = vector.broadcast %35 : f32 to vector<8x512xf32>
    %277 = arith.mulf %272, %276 : vector<8x512xf32>
    %278 = arith.addf %264, %277 : vector<8x512xf32>
    %279 = vector.broadcast %36 : f32 to vector<8x512xf32>
    %280 = arith.mulf %272, %279 : vector<8x512xf32>
    %281 = arith.addf %266, %280 : vector<8x512xf32>
    %282 = vector.broadcast %37 : f32 to vector<8x512xf32>
    %283 = arith.mulf %272, %282 : vector<8x512xf32>
    %284 = arith.addf %268, %283 : vector<8x512xf32>
    %285 = vector.broadcast %38 : f32 to vector<8x512xf32>
    %286 = arith.mulf %272, %285 : vector<8x512xf32>
    %287 = arith.addf %270, %286 : vector<8x512xf32>
    %c2_i32_127 = arith.constant 2 : i32
    %288 = tpu.dynamic_rotate %13 by %c2_i32_127 dim 0 : vector<8x512xf32>, i32 -> vector<8x512xf32>
    %289 = arith.mulf %13, %288 : vector<8x512xf32>
    %290 = vector.broadcast %39 : f32 to vector<8x512xf32>
    %291 = arith.mulf %289, %290 : vector<8x512xf32>
    %292 = arith.addf %275, %291 : vector<8x512xf32>
    %293 = vector.broadcast %40 : f32 to vector<8x512xf32>
    %294 = arith.mulf %289, %293 : vector<8x512xf32>
    %295 = arith.addf %278, %294 : vector<8x512xf32>
    %296 = vector.broadcast %41 : f32 to vector<8x512xf32>
    %297 = arith.mulf %289, %296 : vector<8x512xf32>
    %298 = arith.addf %281, %297 : vector<8x512xf32>
    %299 = vector.broadcast %42 : f32 to vector<8x512xf32>
    %300 = arith.mulf %289, %299 : vector<8x512xf32>
    %301 = arith.addf %284, %300 : vector<8x512xf32>
    %302 = vector.broadcast %43 : f32 to vector<8x512xf32>
    %303 = arith.mulf %289, %302 : vector<8x512xf32>
    %304 = arith.addf %287, %303 : vector<8x512xf32>
    %c2_i32_128 = arith.constant 2 : i32
    %305 = tpu.dynamic_rotate %16 by %c2_i32_128 dim 0 : vector<8x512xf32>, i32 -> vector<8x512xf32>
    %306 = arith.mulf %16, %305 : vector<8x512xf32>
    %307 = vector.broadcast %44 : f32 to vector<8x512xf32>
    %308 = arith.mulf %306, %307 : vector<8x512xf32>
    %309 = arith.addf %292, %308 : vector<8x512xf32>
    %310 = vector.broadcast %45 : f32 to vector<8x512xf32>
    %311 = arith.mulf %306, %310 : vector<8x512xf32>
    %312 = arith.addf %295, %311 : vector<8x512xf32>
    %313 = vector.broadcast %46 : f32 to vector<8x512xf32>
    %314 = arith.mulf %306, %313 : vector<8x512xf32>
    %315 = arith.addf %298, %314 : vector<8x512xf32>
    %316 = vector.broadcast %47 : f32 to vector<8x512xf32>
    %317 = arith.mulf %306, %316 : vector<8x512xf32>
    %318 = arith.addf %301, %317 : vector<8x512xf32>
    %319 = vector.broadcast %48 : f32 to vector<8x512xf32>
    %320 = arith.mulf %306, %319 : vector<8x512xf32>
    %321 = arith.addf %304, %320 : vector<8x512xf32>
    %c2_i32_129 = arith.constant 2 : i32
    %322 = tpu.dynamic_rotate %19 by %c2_i32_129 dim 0 : vector<8x512xf32>, i32 -> vector<8x512xf32>
    %323 = arith.mulf %19, %322 : vector<8x512xf32>
    %324 = vector.broadcast %49 : f32 to vector<8x512xf32>
    %325 = arith.mulf %323, %324 : vector<8x512xf32>
    %326 = arith.addf %309, %325 : vector<8x512xf32>
    %327 = vector.broadcast %50 : f32 to vector<8x512xf32>
    %328 = arith.mulf %323, %327 : vector<8x512xf32>
    %329 = arith.addf %312, %328 : vector<8x512xf32>
    %330 = vector.broadcast %51 : f32 to vector<8x512xf32>
    %331 = arith.mulf %323, %330 : vector<8x512xf32>
    %332 = arith.addf %315, %331 : vector<8x512xf32>
    %333 = vector.broadcast %52 : f32 to vector<8x512xf32>
    %334 = arith.mulf %323, %333 : vector<8x512xf32>
    %335 = arith.addf %318, %334 : vector<8x512xf32>
    %336 = vector.broadcast %53 : f32 to vector<8x512xf32>
    %337 = arith.mulf %323, %336 : vector<8x512xf32>
    %338 = arith.addf %321, %337 : vector<8x512xf32>
    %c2_i32_130 = arith.constant 2 : i32
    %339 = tpu.dynamic_rotate %22 by %c2_i32_130 dim 0 : vector<8x512xf32>, i32 -> vector<8x512xf32>
    %340 = arith.mulf %22, %339 : vector<8x512xf32>
    %341 = vector.broadcast %54 : f32 to vector<8x512xf32>
    %342 = arith.mulf %340, %341 : vector<8x512xf32>
    %343 = arith.addf %326, %342 : vector<8x512xf32>
    %344 = vector.broadcast %55 : f32 to vector<8x512xf32>
    %345 = arith.mulf %340, %344 : vector<8x512xf32>
    %346 = arith.addf %329, %345 : vector<8x512xf32>
    %347 = vector.broadcast %56 : f32 to vector<8x512xf32>
    %348 = arith.mulf %340, %347 : vector<8x512xf32>
    %349 = arith.addf %332, %348 : vector<8x512xf32>
    %350 = vector.broadcast %57 : f32 to vector<8x512xf32>
    %351 = arith.mulf %340, %350 : vector<8x512xf32>
    %352 = arith.addf %335, %351 : vector<8x512xf32>
    %353 = vector.broadcast %58 : f32 to vector<8x512xf32>
    %354 = arith.mulf %340, %353 : vector<8x512xf32>
    %355 = arith.addf %338, %354 : vector<8x512xf32>
    %c2_i32_131 = arith.constant 2 : i32
    %356 = tpu.dynamic_rotate %25 by %c2_i32_131 dim 0 : vector<8x512xf32>, i32 -> vector<8x512xf32>
    %357 = arith.mulf %25, %356 : vector<8x512xf32>
    %358 = vector.broadcast %59 : f32 to vector<8x512xf32>
    %359 = arith.mulf %357, %358 : vector<8x512xf32>
    %360 = arith.addf %343, %359 : vector<8x512xf32>
    %361 = vector.broadcast %60 : f32 to vector<8x512xf32>
    %362 = arith.mulf %357, %361 : vector<8x512xf32>
    %363 = arith.addf %346, %362 : vector<8x512xf32>
    %364 = vector.broadcast %61 : f32 to vector<8x512xf32>
    %365 = arith.mulf %357, %364 : vector<8x512xf32>
    %366 = arith.addf %349, %365 : vector<8x512xf32>
    %367 = vector.broadcast %62 : f32 to vector<8x512xf32>
    %368 = arith.mulf %357, %367 : vector<8x512xf32>
    %369 = arith.addf %352, %368 : vector<8x512xf32>
    %370 = vector.broadcast %63 : f32 to vector<8x512xf32>
    %371 = arith.mulf %357, %370 : vector<8x512xf32>
    %372 = arith.addf %355, %371 : vector<8x512xf32>
    %c2_i32_132 = arith.constant 2 : i32
    %373 = tpu.dynamic_rotate %28 by %c2_i32_132 dim 0 : vector<8x512xf32>, i32 -> vector<8x512xf32>
    %374 = arith.mulf %28, %373 : vector<8x512xf32>
    %375 = vector.broadcast %64 : f32 to vector<8x512xf32>
    %376 = arith.mulf %374, %375 : vector<8x512xf32>
    %377 = arith.addf %360, %376 : vector<8x512xf32>
    %378 = vector.broadcast %65 : f32 to vector<8x512xf32>
    %379 = arith.mulf %374, %378 : vector<8x512xf32>
    %380 = arith.addf %363, %379 : vector<8x512xf32>
    %381 = vector.broadcast %66 : f32 to vector<8x512xf32>
    %382 = arith.mulf %374, %381 : vector<8x512xf32>
    %383 = arith.addf %366, %382 : vector<8x512xf32>
    %384 = vector.broadcast %67 : f32 to vector<8x512xf32>
    %385 = arith.mulf %374, %384 : vector<8x512xf32>
    %386 = arith.addf %369, %385 : vector<8x512xf32>
    %387 = vector.broadcast %68 : f32 to vector<8x512xf32>
    %388 = arith.mulf %374, %387 : vector<8x512xf32>
    %389 = arith.addf %372, %388 : vector<8x512xf32>
    %390 = vector.broadcast %69 : f32 to vector<8x512xf32>
    %391 = arith.addf %377, %390 : vector<8x512xf32>
    %cst_133 = arith.constant 0.000000e+00 : f32
    %392 = vector.broadcast %cst_133 : f32 to vector<8x512xf32>
    %393 = arith.maximumf %391, %392 : vector<8x512xf32>
    %394 = vector.broadcast %73 : f32 to vector<8x512xf32>
    %395 = arith.mulf %393, %394 : vector<8x512xf32>
    %396 = vector.broadcast %70 : f32 to vector<8x512xf32>
    %397 = arith.addf %380, %396 : vector<8x512xf32>
    %cst_134 = arith.constant 0.000000e+00 : f32
    %398 = vector.broadcast %cst_134 : f32 to vector<8x512xf32>
    %399 = arith.maximumf %397, %398 : vector<8x512xf32>
    %400 = vector.broadcast %74 : f32 to vector<8x512xf32>
    %401 = arith.mulf %399, %400 : vector<8x512xf32>
    %402 = arith.addf %395, %401 : vector<8x512xf32>
    %403 = vector.broadcast %71 : f32 to vector<8x512xf32>
    %404 = arith.addf %383, %403 : vector<8x512xf32>
    %cst_135 = arith.constant 0.000000e+00 : f32
    %405 = vector.broadcast %cst_135 : f32 to vector<8x512xf32>
    %406 = arith.maximumf %404, %405 : vector<8x512xf32>
    %407 = vector.broadcast %75 : f32 to vector<8x512xf32>
    %408 = arith.mulf %406, %407 : vector<8x512xf32>
    %409 = arith.addf %402, %408 : vector<8x512xf32>
    %410 = vector.broadcast %72 : f32 to vector<8x512xf32>
    %411 = arith.addf %386, %410 : vector<8x512xf32>
    %cst_136 = arith.constant 0.000000e+00 : f32
    %412 = vector.broadcast %cst_136 : f32 to vector<8x512xf32>
    %413 = arith.maximumf %411, %412 : vector<8x512xf32>
    %414 = vector.broadcast %76 : f32 to vector<8x512xf32>
    %415 = arith.mulf %413, %414 : vector<8x512xf32>
    %416 = arith.addf %409, %415 : vector<8x512xf32>
    %cst_137 = arith.constant dense<0xFF800000> : vector<512xf32>
    %417 = vector.multi_reduction <maximumf>, %416, %cst_137 [0] : vector<8x512xf32> to vector<512xf32>
    %418 = vector.shape_cast %417 : vector<512xf32> to vector<1x512xf32>
    %419 = arith.maximumf %244, %418 : vector<1x512xf32>
    %420 = arith.subf %244, %419 : vector<1x512xf32>
    %421 = math.exp %420 : vector<1x512xf32>
    %422 = vector.broadcast %419 : vector<1x512xf32> to vector<8x512xf32>
    %423 = arith.subf %416, %422 : vector<8x512xf32>
    %424 = math.exp %423 : vector<8x512xf32>
    %425 = arith.mulf %421, %253 : vector<1x512xf32>
    %cst_138 = arith.constant dense<0.000000e+00> : vector<512xf32>
    %426 = vector.multi_reduction <add>, %424, %cst_138 [0] : vector<8x512xf32> to vector<512xf32>
    %427 = vector.shape_cast %426 : vector<512xf32> to vector<1x512xf32>
    %428 = arith.addf %425, %427 : vector<1x512xf32>
    %429 = arith.mulf %421, %258 : vector<1x512xf32>
    %430 = arith.mulf %424, %389 : vector<8x512xf32>
    %cst_139 = arith.constant dense<0.000000e+00> : vector<512xf32>
    %431 = vector.multi_reduction <add>, %430, %cst_139 [0] : vector<8x512xf32> to vector<512xf32>
    %432 = vector.shape_cast %431 : vector<512xf32> to vector<1x512xf32>
    %433 = arith.addf %429, %432 : vector<1x512xf32>
    %c3_i32 = arith.constant 3 : i32
    %434 = tpu.dynamic_rotate %7 by %c3_i32 dim 0 : vector<8x512xf32>, i32 -> vector<8x512xf32>
    %435 = arith.mulf %7, %434 : vector<8x512xf32>
    %436 = vector.broadcast %29 : f32 to vector<8x512xf32>
    %437 = arith.mulf %435, %436 : vector<8x512xf32>
    %438 = vector.broadcast %30 : f32 to vector<8x512xf32>
    %439 = arith.mulf %435, %438 : vector<8x512xf32>
    %440 = vector.broadcast %31 : f32 to vector<8x512xf32>
    %441 = arith.mulf %435, %440 : vector<8x512xf32>
    %442 = vector.broadcast %32 : f32 to vector<8x512xf32>
    %443 = arith.mulf %435, %442 : vector<8x512xf32>
    %444 = vector.broadcast %33 : f32 to vector<8x512xf32>
    %445 = arith.mulf %435, %444 : vector<8x512xf32>
    %c3_i32_140 = arith.constant 3 : i32
    %446 = tpu.dynamic_rotate %10 by %c3_i32_140 dim 0 : vector<8x512xf32>, i32 -> vector<8x512xf32>
    %447 = arith.mulf %10, %446 : vector<8x512xf32>
    %448 = vector.broadcast %34 : f32 to vector<8x512xf32>
    %449 = arith.mulf %447, %448 : vector<8x512xf32>
    %450 = arith.addf %437, %449 : vector<8x512xf32>
    %451 = vector.broadcast %35 : f32 to vector<8x512xf32>
    %452 = arith.mulf %447, %451 : vector<8x512xf32>
    %453 = arith.addf %439, %452 : vector<8x512xf32>
    %454 = vector.broadcast %36 : f32 to vector<8x512xf32>
    %455 = arith.mulf %447, %454 : vector<8x512xf32>
    %456 = arith.addf %441, %455 : vector<8x512xf32>
    %457 = vector.broadcast %37 : f32 to vector<8x512xf32>
    %458 = arith.mulf %447, %457 : vector<8x512xf32>
    %459 = arith.addf %443, %458 : vector<8x512xf32>
    %460 = vector.broadcast %38 : f32 to vector<8x512xf32>
    %461 = arith.mulf %447, %460 : vector<8x512xf32>
    %462 = arith.addf %445, %461 : vector<8x512xf32>
    %c3_i32_141 = arith.constant 3 : i32
    %463 = tpu.dynamic_rotate %13 by %c3_i32_141 dim 0 : vector<8x512xf32>, i32 -> vector<8x512xf32>
    %464 = arith.mulf %13, %463 : vector<8x512xf32>
    %465 = vector.broadcast %39 : f32 to vector<8x512xf32>
    %466 = arith.mulf %464, %465 : vector<8x512xf32>
    %467 = arith.addf %450, %466 : vector<8x512xf32>
    %468 = vector.broadcast %40 : f32 to vector<8x512xf32>
    %469 = arith.mulf %464, %468 : vector<8x512xf32>
    %470 = arith.addf %453, %469 : vector<8x512xf32>
    %471 = vector.broadcast %41 : f32 to vector<8x512xf32>
    %472 = arith.mulf %464, %471 : vector<8x512xf32>
    %473 = arith.addf %456, %472 : vector<8x512xf32>
    %474 = vector.broadcast %42 : f32 to vector<8x512xf32>
    %475 = arith.mulf %464, %474 : vector<8x512xf32>
    %476 = arith.addf %459, %475 : vector<8x512xf32>
    %477 = vector.broadcast %43 : f32 to vector<8x512xf32>
    %478 = arith.mulf %464, %477 : vector<8x512xf32>
    %479 = arith.addf %462, %478 : vector<8x512xf32>
    %c3_i32_142 = arith.constant 3 : i32
    %480 = tpu.dynamic_rotate %16 by %c3_i32_142 dim 0 : vector<8x512xf32>, i32 -> vector<8x512xf32>
    %481 = arith.mulf %16, %480 : vector<8x512xf32>
    %482 = vector.broadcast %44 : f32 to vector<8x512xf32>
    %483 = arith.mulf %481, %482 : vector<8x512xf32>
    %484 = arith.addf %467, %483 : vector<8x512xf32>
    %485 = vector.broadcast %45 : f32 to vector<8x512xf32>
    %486 = arith.mulf %481, %485 : vector<8x512xf32>
    %487 = arith.addf %470, %486 : vector<8x512xf32>
    %488 = vector.broadcast %46 : f32 to vector<8x512xf32>
    %489 = arith.mulf %481, %488 : vector<8x512xf32>
    %490 = arith.addf %473, %489 : vector<8x512xf32>
    %491 = vector.broadcast %47 : f32 to vector<8x512xf32>
    %492 = arith.mulf %481, %491 : vector<8x512xf32>
    %493 = arith.addf %476, %492 : vector<8x512xf32>
    %494 = vector.broadcast %48 : f32 to vector<8x512xf32>
    %495 = arith.mulf %481, %494 : vector<8x512xf32>
    %496 = arith.addf %479, %495 : vector<8x512xf32>
    %c3_i32_143 = arith.constant 3 : i32
    %497 = tpu.dynamic_rotate %19 by %c3_i32_143 dim 0 : vector<8x512xf32>, i32 -> vector<8x512xf32>
    %498 = arith.mulf %19, %497 : vector<8x512xf32>
    %499 = vector.broadcast %49 : f32 to vector<8x512xf32>
    %500 = arith.mulf %498, %499 : vector<8x512xf32>
    %501 = arith.addf %484, %500 : vector<8x512xf32>
    %502 = vector.broadcast %50 : f32 to vector<8x512xf32>
    %503 = arith.mulf %498, %502 : vector<8x512xf32>
    %504 = arith.addf %487, %503 : vector<8x512xf32>
    %505 = vector.broadcast %51 : f32 to vector<8x512xf32>
    %506 = arith.mulf %498, %505 : vector<8x512xf32>
    %507 = arith.addf %490, %506 : vector<8x512xf32>
    %508 = vector.broadcast %52 : f32 to vector<8x512xf32>
    %509 = arith.mulf %498, %508 : vector<8x512xf32>
    %510 = arith.addf %493, %509 : vector<8x512xf32>
    %511 = vector.broadcast %53 : f32 to vector<8x512xf32>
    %512 = arith.mulf %498, %511 : vector<8x512xf32>
    %513 = arith.addf %496, %512 : vector<8x512xf32>
    %c3_i32_144 = arith.constant 3 : i32
    %514 = tpu.dynamic_rotate %22 by %c3_i32_144 dim 0 : vector<8x512xf32>, i32 -> vector<8x512xf32>
    %515 = arith.mulf %22, %514 : vector<8x512xf32>
    %516 = vector.broadcast %54 : f32 to vector<8x512xf32>
    %517 = arith.mulf %515, %516 : vector<8x512xf32>
    %518 = arith.addf %501, %517 : vector<8x512xf32>
    %519 = vector.broadcast %55 : f32 to vector<8x512xf32>
    %520 = arith.mulf %515, %519 : vector<8x512xf32>
    %521 = arith.addf %504, %520 : vector<8x512xf32>
    %522 = vector.broadcast %56 : f32 to vector<8x512xf32>
    %523 = arith.mulf %515, %522 : vector<8x512xf32>
    %524 = arith.addf %507, %523 : vector<8x512xf32>
    %525 = vector.broadcast %57 : f32 to vector<8x512xf32>
    %526 = arith.mulf %515, %525 : vector<8x512xf32>
    %527 = arith.addf %510, %526 : vector<8x512xf32>
    %528 = vector.broadcast %58 : f32 to vector<8x512xf32>
    %529 = arith.mulf %515, %528 : vector<8x512xf32>
    %530 = arith.addf %513, %529 : vector<8x512xf32>
    %c3_i32_145 = arith.constant 3 : i32
    %531 = tpu.dynamic_rotate %25 by %c3_i32_145 dim 0 : vector<8x512xf32>, i32 -> vector<8x512xf32>
    %532 = arith.mulf %25, %531 : vector<8x512xf32>
    %533 = vector.broadcast %59 : f32 to vector<8x512xf32>
    %534 = arith.mulf %532, %533 : vector<8x512xf32>
    %535 = arith.addf %518, %534 : vector<8x512xf32>
    %536 = vector.broadcast %60 : f32 to vector<8x512xf32>
    %537 = arith.mulf %532, %536 : vector<8x512xf32>
    %538 = arith.addf %521, %537 : vector<8x512xf32>
    %539 = vector.broadcast %61 : f32 to vector<8x512xf32>
    %540 = arith.mulf %532, %539 : vector<8x512xf32>
    %541 = arith.addf %524, %540 : vector<8x512xf32>
    %542 = vector.broadcast %62 : f32 to vector<8x512xf32>
    %543 = arith.mulf %532, %542 : vector<8x512xf32>
    %544 = arith.addf %527, %543 : vector<8x512xf32>
    %545 = vector.broadcast %63 : f32 to vector<8x512xf32>
    %546 = arith.mulf %532, %545 : vector<8x512xf32>
    %547 = arith.addf %530, %546 : vector<8x512xf32>
    %c3_i32_146 = arith.constant 3 : i32
    %548 = tpu.dynamic_rotate %28 by %c3_i32_146 dim 0 : vector<8x512xf32>, i32 -> vector<8x512xf32>
    %549 = arith.mulf %28, %548 : vector<8x512xf32>
    %550 = vector.broadcast %64 : f32 to vector<8x512xf32>
    %551 = arith.mulf %549, %550 : vector<8x512xf32>
    %552 = arith.addf %535, %551 : vector<8x512xf32>
    %553 = vector.broadcast %65 : f32 to vector<8x512xf32>
    %554 = arith.mulf %549, %553 : vector<8x512xf32>
    %555 = arith.addf %538, %554 : vector<8x512xf32>
    %556 = vector.broadcast %66 : f32 to vector<8x512xf32>
    %557 = arith.mulf %549, %556 : vector<8x512xf32>
    %558 = arith.addf %541, %557 : vector<8x512xf32>
    %559 = vector.broadcast %67 : f32 to vector<8x512xf32>
    %560 = arith.mulf %549, %559 : vector<8x512xf32>
    %561 = arith.addf %544, %560 : vector<8x512xf32>
    %562 = vector.broadcast %68 : f32 to vector<8x512xf32>
    %563 = arith.mulf %549, %562 : vector<8x512xf32>
    %564 = arith.addf %547, %563 : vector<8x512xf32>
    %565 = vector.broadcast %69 : f32 to vector<8x512xf32>
    %566 = arith.addf %552, %565 : vector<8x512xf32>
    %cst_147 = arith.constant 0.000000e+00 : f32
    %567 = vector.broadcast %cst_147 : f32 to vector<8x512xf32>
    %568 = arith.maximumf %566, %567 : vector<8x512xf32>
    %569 = vector.broadcast %73 : f32 to vector<8x512xf32>
    %570 = arith.mulf %568, %569 : vector<8x512xf32>
    %571 = vector.broadcast %70 : f32 to vector<8x512xf32>
    %572 = arith.addf %555, %571 : vector<8x512xf32>
    %cst_148 = arith.constant 0.000000e+00 : f32
    %573 = vector.broadcast %cst_148 : f32 to vector<8x512xf32>
    %574 = arith.maximumf %572, %573 : vector<8x512xf32>
    %575 = vector.broadcast %74 : f32 to vector<8x512xf32>
    %576 = arith.mulf %574, %575 : vector<8x512xf32>
    %577 = arith.addf %570, %576 : vector<8x512xf32>
    %578 = vector.broadcast %71 : f32 to vector<8x512xf32>
    %579 = arith.addf %558, %578 : vector<8x512xf32>
    %cst_149 = arith.constant 0.000000e+00 : f32
    %580 = vector.broadcast %cst_149 : f32 to vector<8x512xf32>
    %581 = arith.maximumf %579, %580 : vector<8x512xf32>
    %582 = vector.broadcast %75 : f32 to vector<8x512xf32>
    %583 = arith.mulf %581, %582 : vector<8x512xf32>
    %584 = arith.addf %577, %583 : vector<8x512xf32>
    %585 = vector.broadcast %72 : f32 to vector<8x512xf32>
    %586 = arith.addf %561, %585 : vector<8x512xf32>
    %cst_150 = arith.constant 0.000000e+00 : f32
    %587 = vector.broadcast %cst_150 : f32 to vector<8x512xf32>
    %588 = arith.maximumf %586, %587 : vector<8x512xf32>
    %589 = vector.broadcast %76 : f32 to vector<8x512xf32>
    %590 = arith.mulf %588, %589 : vector<8x512xf32>
    %591 = arith.addf %584, %590 : vector<8x512xf32>
    %cst_151 = arith.constant dense<0xFF800000> : vector<512xf32>
    %592 = vector.multi_reduction <maximumf>, %591, %cst_151 [0] : vector<8x512xf32> to vector<512xf32>
    %593 = vector.shape_cast %592 : vector<512xf32> to vector<1x512xf32>
    %594 = arith.maximumf %419, %593 : vector<1x512xf32>
    %595 = arith.subf %419, %594 : vector<1x512xf32>
    %596 = math.exp %595 : vector<1x512xf32>
    %597 = vector.broadcast %594 : vector<1x512xf32> to vector<8x512xf32>
    %598 = arith.subf %591, %597 : vector<8x512xf32>
    %599 = math.exp %598 : vector<8x512xf32>
    %600 = arith.mulf %596, %428 : vector<1x512xf32>
    %cst_152 = arith.constant dense<0.000000e+00> : vector<512xf32>
    %601 = vector.multi_reduction <add>, %599, %cst_152 [0] : vector<8x512xf32> to vector<512xf32>
    %602 = vector.shape_cast %601 : vector<512xf32> to vector<1x512xf32>
    %603 = arith.addf %600, %602 : vector<1x512xf32>
    %604 = arith.mulf %596, %433 : vector<1x512xf32>
    %605 = arith.mulf %599, %564 : vector<8x512xf32>
    %cst_153 = arith.constant dense<0.000000e+00> : vector<512xf32>
    %606 = vector.multi_reduction <add>, %605, %cst_153 [0] : vector<8x512xf32> to vector<512xf32>
    %607 = vector.shape_cast %606 : vector<512xf32> to vector<1x512xf32>
    %608 = arith.addf %604, %607 : vector<1x512xf32>
    %c4_i32_154 = arith.constant 4 : i32
    %609 = tpu.dynamic_rotate %7 by %c4_i32_154 dim 0 : vector<8x512xf32>, i32 -> vector<8x512xf32>
    %610 = arith.mulf %7, %609 : vector<8x512xf32>
    %611 = vector.broadcast %29 : f32 to vector<8x512xf32>
    %612 = arith.mulf %610, %611 : vector<8x512xf32>
    %613 = vector.broadcast %30 : f32 to vector<8x512xf32>
    %614 = arith.mulf %610, %613 : vector<8x512xf32>
    %615 = vector.broadcast %31 : f32 to vector<8x512xf32>
    %616 = arith.mulf %610, %615 : vector<8x512xf32>
    %617 = vector.broadcast %32 : f32 to vector<8x512xf32>
    %618 = arith.mulf %610, %617 : vector<8x512xf32>
    %619 = vector.broadcast %33 : f32 to vector<8x512xf32>
    %620 = arith.mulf %610, %619 : vector<8x512xf32>
    %c4_i32_155 = arith.constant 4 : i32
    %621 = tpu.dynamic_rotate %10 by %c4_i32_155 dim 0 : vector<8x512xf32>, i32 -> vector<8x512xf32>
    %622 = arith.mulf %10, %621 : vector<8x512xf32>
    %623 = vector.broadcast %34 : f32 to vector<8x512xf32>
    %624 = arith.mulf %622, %623 : vector<8x512xf32>
    %625 = arith.addf %612, %624 : vector<8x512xf32>
    %626 = vector.broadcast %35 : f32 to vector<8x512xf32>
    %627 = arith.mulf %622, %626 : vector<8x512xf32>
    %628 = arith.addf %614, %627 : vector<8x512xf32>
    %629 = vector.broadcast %36 : f32 to vector<8x512xf32>
    %630 = arith.mulf %622, %629 : vector<8x512xf32>
    %631 = arith.addf %616, %630 : vector<8x512xf32>
    %632 = vector.broadcast %37 : f32 to vector<8x512xf32>
    %633 = arith.mulf %622, %632 : vector<8x512xf32>
    %634 = arith.addf %618, %633 : vector<8x512xf32>
    %635 = vector.broadcast %38 : f32 to vector<8x512xf32>
    %636 = arith.mulf %622, %635 : vector<8x512xf32>
    %637 = arith.addf %620, %636 : vector<8x512xf32>
    %c4_i32_156 = arith.constant 4 : i32
    %638 = tpu.dynamic_rotate %13 by %c4_i32_156 dim 0 : vector<8x512xf32>, i32 -> vector<8x512xf32>
    %639 = arith.mulf %13, %638 : vector<8x512xf32>
    %640 = vector.broadcast %39 : f32 to vector<8x512xf32>
    %641 = arith.mulf %639, %640 : vector<8x512xf32>
    %642 = arith.addf %625, %641 : vector<8x512xf32>
    %643 = vector.broadcast %40 : f32 to vector<8x512xf32>
    %644 = arith.mulf %639, %643 : vector<8x512xf32>
    %645 = arith.addf %628, %644 : vector<8x512xf32>
    %646 = vector.broadcast %41 : f32 to vector<8x512xf32>
    %647 = arith.mulf %639, %646 : vector<8x512xf32>
    %648 = arith.addf %631, %647 : vector<8x512xf32>
    %649 = vector.broadcast %42 : f32 to vector<8x512xf32>
    %650 = arith.mulf %639, %649 : vector<8x512xf32>
    %651 = arith.addf %634, %650 : vector<8x512xf32>
    %652 = vector.broadcast %43 : f32 to vector<8x512xf32>
    %653 = arith.mulf %639, %652 : vector<8x512xf32>
    %654 = arith.addf %637, %653 : vector<8x512xf32>
    %c4_i32_157 = arith.constant 4 : i32
    %655 = tpu.dynamic_rotate %16 by %c4_i32_157 dim 0 : vector<8x512xf32>, i32 -> vector<8x512xf32>
    %656 = arith.mulf %16, %655 : vector<8x512xf32>
    %657 = vector.broadcast %44 : f32 to vector<8x512xf32>
    %658 = arith.mulf %656, %657 : vector<8x512xf32>
    %659 = arith.addf %642, %658 : vector<8x512xf32>
    %660 = vector.broadcast %45 : f32 to vector<8x512xf32>
    %661 = arith.mulf %656, %660 : vector<8x512xf32>
    %662 = arith.addf %645, %661 : vector<8x512xf32>
    %663 = vector.broadcast %46 : f32 to vector<8x512xf32>
    %664 = arith.mulf %656, %663 : vector<8x512xf32>
    %665 = arith.addf %648, %664 : vector<8x512xf32>
    %666 = vector.broadcast %47 : f32 to vector<8x512xf32>
    %667 = arith.mulf %656, %666 : vector<8x512xf32>
    %668 = arith.addf %651, %667 : vector<8x512xf32>
    %669 = vector.broadcast %48 : f32 to vector<8x512xf32>
    %670 = arith.mulf %656, %669 : vector<8x512xf32>
    %671 = arith.addf %654, %670 : vector<8x512xf32>
    %c4_i32_158 = arith.constant 4 : i32
    %672 = tpu.dynamic_rotate %19 by %c4_i32_158 dim 0 : vector<8x512xf32>, i32 -> vector<8x512xf32>
    %673 = arith.mulf %19, %672 : vector<8x512xf32>
    %674 = vector.broadcast %49 : f32 to vector<8x512xf32>
    %675 = arith.mulf %673, %674 : vector<8x512xf32>
    %676 = arith.addf %659, %675 : vector<8x512xf32>
    %677 = vector.broadcast %50 : f32 to vector<8x512xf32>
    %678 = arith.mulf %673, %677 : vector<8x512xf32>
    %679 = arith.addf %662, %678 : vector<8x512xf32>
    %680 = vector.broadcast %51 : f32 to vector<8x512xf32>
    %681 = arith.mulf %673, %680 : vector<8x512xf32>
    %682 = arith.addf %665, %681 : vector<8x512xf32>
    %683 = vector.broadcast %52 : f32 to vector<8x512xf32>
    %684 = arith.mulf %673, %683 : vector<8x512xf32>
    %685 = arith.addf %668, %684 : vector<8x512xf32>
    %686 = vector.broadcast %53 : f32 to vector<8x512xf32>
    %687 = arith.mulf %673, %686 : vector<8x512xf32>
    %688 = arith.addf %671, %687 : vector<8x512xf32>
    %c4_i32_159 = arith.constant 4 : i32
    %689 = tpu.dynamic_rotate %22 by %c4_i32_159 dim 0 : vector<8x512xf32>, i32 -> vector<8x512xf32>
    %690 = arith.mulf %22, %689 : vector<8x512xf32>
    %691 = vector.broadcast %54 : f32 to vector<8x512xf32>
    %692 = arith.mulf %690, %691 : vector<8x512xf32>
    %693 = arith.addf %676, %692 : vector<8x512xf32>
    %694 = vector.broadcast %55 : f32 to vector<8x512xf32>
    %695 = arith.mulf %690, %694 : vector<8x512xf32>
    %696 = arith.addf %679, %695 : vector<8x512xf32>
    %697 = vector.broadcast %56 : f32 to vector<8x512xf32>
    %698 = arith.mulf %690, %697 : vector<8x512xf32>
    %699 = arith.addf %682, %698 : vector<8x512xf32>
    %700 = vector.broadcast %57 : f32 to vector<8x512xf32>
    %701 = arith.mulf %690, %700 : vector<8x512xf32>
    %702 = arith.addf %685, %701 : vector<8x512xf32>
    %703 = vector.broadcast %58 : f32 to vector<8x512xf32>
    %704 = arith.mulf %690, %703 : vector<8x512xf32>
    %705 = arith.addf %688, %704 : vector<8x512xf32>
    %c4_i32_160 = arith.constant 4 : i32
    %706 = tpu.dynamic_rotate %25 by %c4_i32_160 dim 0 : vector<8x512xf32>, i32 -> vector<8x512xf32>
    %707 = arith.mulf %25, %706 : vector<8x512xf32>
    %708 = vector.broadcast %59 : f32 to vector<8x512xf32>
    %709 = arith.mulf %707, %708 : vector<8x512xf32>
    %710 = arith.addf %693, %709 : vector<8x512xf32>
    %711 = vector.broadcast %60 : f32 to vector<8x512xf32>
    %712 = arith.mulf %707, %711 : vector<8x512xf32>
    %713 = arith.addf %696, %712 : vector<8x512xf32>
    %714 = vector.broadcast %61 : f32 to vector<8x512xf32>
    %715 = arith.mulf %707, %714 : vector<8x512xf32>
    %716 = arith.addf %699, %715 : vector<8x512xf32>
    %717 = vector.broadcast %62 : f32 to vector<8x512xf32>
    %718 = arith.mulf %707, %717 : vector<8x512xf32>
    %719 = arith.addf %702, %718 : vector<8x512xf32>
    %720 = vector.broadcast %63 : f32 to vector<8x512xf32>
    %721 = arith.mulf %707, %720 : vector<8x512xf32>
    %722 = arith.addf %705, %721 : vector<8x512xf32>
    %c4_i32_161 = arith.constant 4 : i32
    %723 = tpu.dynamic_rotate %28 by %c4_i32_161 dim 0 : vector<8x512xf32>, i32 -> vector<8x512xf32>
    %724 = arith.mulf %28, %723 : vector<8x512xf32>
    %725 = vector.broadcast %64 : f32 to vector<8x512xf32>
    %726 = arith.mulf %724, %725 : vector<8x512xf32>
    %727 = arith.addf %710, %726 : vector<8x512xf32>
    %728 = vector.broadcast %65 : f32 to vector<8x512xf32>
    %729 = arith.mulf %724, %728 : vector<8x512xf32>
    %730 = arith.addf %713, %729 : vector<8x512xf32>
    %731 = vector.broadcast %66 : f32 to vector<8x512xf32>
    %732 = arith.mulf %724, %731 : vector<8x512xf32>
    %733 = arith.addf %716, %732 : vector<8x512xf32>
    %734 = vector.broadcast %67 : f32 to vector<8x512xf32>
    %735 = arith.mulf %724, %734 : vector<8x512xf32>
    %736 = arith.addf %719, %735 : vector<8x512xf32>
    %737 = vector.broadcast %68 : f32 to vector<8x512xf32>
    %738 = arith.mulf %724, %737 : vector<8x512xf32>
    %739 = arith.addf %722, %738 : vector<8x512xf32>
    %740 = vector.broadcast %69 : f32 to vector<8x512xf32>
    %741 = arith.addf %727, %740 : vector<8x512xf32>
    %cst_162 = arith.constant 0.000000e+00 : f32
    %742 = vector.broadcast %cst_162 : f32 to vector<8x512xf32>
    %743 = arith.maximumf %741, %742 : vector<8x512xf32>
    %744 = vector.broadcast %73 : f32 to vector<8x512xf32>
    %745 = arith.mulf %743, %744 : vector<8x512xf32>
    %746 = vector.broadcast %70 : f32 to vector<8x512xf32>
    %747 = arith.addf %730, %746 : vector<8x512xf32>
    %cst_163 = arith.constant 0.000000e+00 : f32
    %748 = vector.broadcast %cst_163 : f32 to vector<8x512xf32>
    %749 = arith.maximumf %747, %748 : vector<8x512xf32>
    %750 = vector.broadcast %74 : f32 to vector<8x512xf32>
    %751 = arith.mulf %749, %750 : vector<8x512xf32>
    %752 = arith.addf %745, %751 : vector<8x512xf32>
    %753 = vector.broadcast %71 : f32 to vector<8x512xf32>
    %754 = arith.addf %733, %753 : vector<8x512xf32>
    %cst_164 = arith.constant 0.000000e+00 : f32
    %755 = vector.broadcast %cst_164 : f32 to vector<8x512xf32>
    %756 = arith.maximumf %754, %755 : vector<8x512xf32>
    %757 = vector.broadcast %75 : f32 to vector<8x512xf32>
    %758 = arith.mulf %756, %757 : vector<8x512xf32>
    %759 = arith.addf %752, %758 : vector<8x512xf32>
    %760 = vector.broadcast %72 : f32 to vector<8x512xf32>
    %761 = arith.addf %736, %760 : vector<8x512xf32>
    %cst_165 = arith.constant 0.000000e+00 : f32
    %762 = vector.broadcast %cst_165 : f32 to vector<8x512xf32>
    %763 = arith.maximumf %761, %762 : vector<8x512xf32>
    %764 = vector.broadcast %76 : f32 to vector<8x512xf32>
    %765 = arith.mulf %763, %764 : vector<8x512xf32>
    %766 = arith.addf %759, %765 : vector<8x512xf32>
    %cst_166 = arith.constant dense<0xFF800000> : vector<512xf32>
    %767 = vector.multi_reduction <maximumf>, %766, %cst_166 [0] : vector<8x512xf32> to vector<512xf32>
    %768 = vector.shape_cast %767 : vector<512xf32> to vector<1x512xf32>
    %769 = arith.maximumf %594, %768 : vector<1x512xf32>
    %770 = arith.subf %594, %769 : vector<1x512xf32>
    %771 = math.exp %770 : vector<1x512xf32>
    %772 = vector.broadcast %769 : vector<1x512xf32> to vector<8x512xf32>
    %773 = arith.subf %766, %772 : vector<8x512xf32>
    %774 = math.exp %773 : vector<8x512xf32>
    %cst_167 = arith.constant 0.000000e+00 : f32
    %775 = vector.broadcast %cst_167 : f32 to vector<8x512xf32>
    %776 = arith.select %80, %774, %775 : vector<8x512xi1>, vector<8x512xf32>
    %777 = arith.mulf %771, %603 : vector<1x512xf32>
    %cst_168 = arith.constant dense<0.000000e+00> : vector<512xf32>
    %778 = vector.multi_reduction <add>, %776, %cst_168 [0] : vector<8x512xf32> to vector<512xf32>
    %779 = vector.shape_cast %778 : vector<512xf32> to vector<1x512xf32>
    %780 = arith.addf %777, %779 : vector<1x512xf32>
    %781 = arith.mulf %771, %608 : vector<1x512xf32>
    %782 = arith.mulf %776, %739 : vector<8x512xf32>
    %cst_169 = arith.constant dense<0.000000e+00> : vector<512xf32>
    %783 = vector.multi_reduction <add>, %782, %cst_169 [0] : vector<8x512xf32> to vector<512xf32>
    %784 = vector.shape_cast %783 : vector<512xf32> to vector<1x512xf32>
    %785 = arith.addf %781, %784 : vector<1x512xf32>
    %786 = tpu.reciprocal %780 {approx = true} : vector<1x512xf32> -> vector<1x512xf32>
    %787 = arith.mulf %785, %786 : vector<1x512xf32>
    %788 = vector.broadcast %77 : f32 to vector<1x512xf32>
    %789 = arith.addf %788, %4 : vector<1x512xf32>
    %790 = arith.addf %789, %787 : vector<1x512xf32>
    %791 = arith.negf %790 : vector<1x512xf32>
    %792 = math.exp %791 : vector<1x512xf32>
    %cst_170 = arith.constant 1.000000e+00 : f32
    %793 = vector.broadcast %cst_170 : f32 to vector<1x512xf32>
    %794 = arith.addf %793, %792 : vector<1x512xf32>
    %795 = arith.divf %793, %794 : vector<1x512xf32>
    %c0_171 = arith.constant 0 : index
    %c0_172 = arith.constant 0 : index
    %796 = vector.load %arg8[%c0_171, %c0_172] : memref<1x512xf32, #tpu.memory_space<vmem>>, vector<1x512xf32>
    tpu.vector_store %arg8[%c0_171, %c0_172], %795 {strides = array<i32>} : memref<1x512xf32, #tpu.memory_space<vmem>>, vector<1x512xf32>,
    return
  }
  func.func @transform_0(%arg0: i32) -> (i32, i32) {
    %c0_i32 = arith.constant 0 : i32
    %c0_i32_0 = arith.constant 0 : i32
    return %c0_i32, %arg0 : i32, i32
  }
  func.func @transform_1(%arg0: i32) -> (i32, i32) {
    %c0_i32 = arith.constant 0 : i32
    %c0_i32_0 = arith.constant 0 : i32
    return %c0_i32, %arg0 : i32, i32
  }
  func.func @transform_2(%arg0: i32) -> (i32, i32, i32) {
    %c0_i32 = arith.constant 0 : i32
    %c0_i32_0 = arith.constant 0 : i32
    %c0_i32_1 = arith.constant 0 : i32
    return %c0_i32, %c0_i32_0, %arg0 : i32, i32, i32
  }
  func.func @transform_3(%arg0: i32) -> (i32, i32) {
    %c0_i32 = arith.constant 0 : i32
    %c0_i32_0 = arith.constant 0 : i32
    %c0_i32_1 = arith.constant 0 : i32
    return %c0_i32, %c0_i32_0 : i32, i32
  }
  func.func @transform_4(%arg0: i32) -> i32 {
    %c0_i32 = arith.constant 0 : i32
    %c0_i32_0 = arith.constant 0 : i32
    return %c0_i32 : i32
  }
  func.func @transform_5(%arg0: i32) -> i32 {
    %c0_i32 = arith.constant 0 : i32
    %c0_i32_0 = arith.constant 0 : i32
    return %c0_i32 : i32
  }
  func.func @transform_6(%arg0: i32) -> i32 {
    %c0_i32 = arith.constant 0 : i32
    %c0_i32_0 = arith.constant 0 : i32
    return %c0_i32 : i32
  }
  func.func @transform_7(%arg0: i32) -> (i32, i32) {
    %c0_i32 = arith.constant 0 : i32
    %c0_i32_0 = arith.constant 0 : i32
    return %c0_i32, %arg0 : i32, i32
  }
}

</mosaic_0001>

<llo_original>
// kernel: tpu_custom_call.1
$region0: #{tpu_custom_call.1}
  #allocation0 [shape = 'u32[]', space=smem, size = 0x4, offset = 0x4, fixed_abs, tag = 'smem constant byte address 0x4 - core index']
  #allocation1 [shape = 'u32[144,128]{1,0:T(1,128)}', space=vmem, size = 0x12000, scoped, tag = 'internal scratch']
  #allocation2 [shape = 'f32[1]{0:T(128)S(6)}', space=smem, size = 0x200, scoped, tag = 'scoped memory for tpu_custom_call.1']
  %s0 = inlined_call_operand.hbm [shape: f32[8,1024], index: 0, kind: input, shape index: {}]
  %s1 = inlined_call_operand.hbm [shape: f32[8,1024], index: 1, kind: input, shape index: {}]
  %s2 = inlined_call_operand.hbm [shape: f32[8,8,1024], index: 2, kind: input, shape index: {}]
  %s3 = inlined_call_operand.vmem [shape: f32[8,5], index: 3, kind: input, shape index: {}]
  %s4 = inlined_call_operand.vmem [shape: f32[4], index: 4, kind: input, shape index: {}]
  %s5 = inlined_call_operand.vmem [shape: f32[4], index: 5, kind: input, shape index: {}]
  %s6 = inlined_call_operand.<no memory space> [shape: f32[1], index: 6, kind: input, shape index: {}]
  %s7 = inlined_call_operand.hbm [shape: f32[1,1024], index: 7, kind: output, shape index: {}]
  %s8 = sld [smem:[#allocation0]]
  $region85: #{tpu_custom_call.1} parent=0
    _
  %s10 = ssub.s32 1, %s8
  %s11 = scalar_select 0, %s10, %s8
  %12 = sst [smem:[#allocation2]] %s6
  $region1: #{tpu_custom_call.1} parent=0
    #allocation3 [shape = 'u8[32768]{0}', space=vmem, size = 0x8000, scoped, tag = 'input window, operand 0']
    #allocation4 [shape = 's32[2]{0}', space=sflag, size = 0x8, scoped, tag = 'scoped memory for tpu_custom_call.1']
    #allocation5 [shape = 's32[2]{0}', space=sflag, size = 0x8, scoped, tag = 'scoped memory for tpu_custom_call.1']
    #allocation6 [shape = 's32[2]{0}', space=sflag, size = 0x8, scoped, tag = 'scoped memory for tpu_custom_call.1']
    #allocation7 [shape = 'u8[32768]{0}', space=vmem, size = 0x8000, scoped, tag = 'input window, operand 1']
    #allocation8 [shape = 's32[2]{0}', space=sflag, size = 0x8, scoped, tag = 'scoped memory for tpu_custom_call.1']
    #allocation9 [shape = 'u8[262144]{0}', space=vmem, size = 0x40000, scoped, tag = 'input window, operand 2']
    #allocation10 [shape = 'u8[4096]{0}', space=smem, size = 0x1000, scoped, tag = 'input window, operand 3, single buffered']
    #allocation11 [shape = 'u8[512]{0}', space=smem, size = 0x200, scoped, tag = 'input window, operand 4, single buffered']
    #allocation12 [shape = 's32[1]{0}', space=sflag, size = 0x4, scoped, tag = 'scoped memory for tpu_custom_call.1']
    #allocation13 [shape = 'u8[512]{0}', space=smem, size = 0x200, scoped, tag = 'input window, operand 5, single buffered']
    #allocation14 [shape = 'u8[4096]{0}', space=vmem, size = 0x1000, scoped, tag = 'output window, operand 0']
    %13 = vsyncpa [#allocation4], 0
    %s14 = scalar_lea.sflag [#allocation4], 1
    %15 = vsyncpa %s14, 0
    %16 = vsyncpa [#allocation8], 0
    %s17 = scalar_lea.sflag [#allocation8], 1
    %18 = vsyncpa %s17, 0
    %19 = vsyncpa [#allocation6], 0
    %20 = vsyncpa [#allocation12], 0
    %21 = vsyncpa [#allocation5], 0
    %s22 = scalar_lea.sflag [#allocation5], 1
    %23 = vsyncpa %s22, 0
    loop: start=0, step=1, limit=4
    $region2: #{tpu_custom_call.1} parent=1 // loop_pre_header
      _
    $region3: #{tpu_custom_call.1} parent=1 // loop_header
      %s25 = sphi 0, %s29
      %p26 = scmp.ge.s32.totalorder %s25, 4
      %s35 = sphi 0, %s37
      %s38 = sphi 0, %s35
      %s39 = sphi 0, %s38
      %s55 = sphi 0, %s39
      %s61 = sphi 0, %s63
      %s64 = sphi 0, %s61
      %s65 = sphi 0, %s64
      %s81 = sphi 0, %s65
      %s87 = sphi 0, %s89
      %s90 = sphi 0, %s87
      %s91 = sphi 0, %s90
      %s107 = sphi 0, %s91
      %s111 = sphi 0, %s111
      %s113 = sphi 0, %s111
      %s114 = sphi 0, %s113
      %s128 = sphi 0, %s114
      %s132 = sphi 0, %s132
      %s134 = sphi 0, %s132
      %s135 = sphi 0, %s134
      %s149 = sphi 0, %s135
      %s153 = sphi 0, %s153
      %s155 = sphi 0, %s153
      %s156 = sphi 0, %s155
      %s170 = sphi 0, %s156
      %s174 = sphi 0, %s174
      %s176 = sphi 0, %s174
      %s177 = sphi 0, %s176
      %s191 = sphi 0, %s177
      %s197 = sphi 0, %s199
      %s200 = sphi 0, %s197
      %s201 = sphi 0, %s200
      %s217 = sphi 0, %s201
    $region4: #{tpu_custom_call.1} parent=1 // loop_header_branch
      %28 = sbr.rel (%p26) target = $region8
    $region5: #{tpu_custom_call.1} parent=1 // loop_body
      %s30 = ssub.s32 %s25, 1
      %s31 = ssub.s32 %s25, 2
      %s32 = sadd.s32 %s25, 1
      %s33 = ssub.s32 %s25, %s32
      %p34 = scmp.eq.s32.totalorder %s33, 0
      %s36 = sadd.s32 %s35, 1
      %s37 = scalar_select %p34, %s35, %s36
      %p40 = pneg %p34
      %p41 = scmp.eq.s32.totalorder %s25, 1
      %p42 = por %p40, %p41
      %p43 = scmp.ne.s32.totalorder %s35, %s38
      %p44 = scmp.eq.s32.totalorder %s25, 0
      %p45 = por %p43, %p44
      %p46 = scmp.ne.s32.totalorder %s35, %s38
      %p47 = scmp.eq.s32.totalorder %s30, 1
      %p48 = por %p46, %p47
      %p49 = scmp.ne.s32.totalorder %s38, %s39
      %p50 = scmp.eq.s32.totalorder %s30, 0
      %p51 = por %p49, %p50
      %p52 = scmp.ne.s32.totalorder %s38, %s39
      %p53 = scmp.eq.s32.totalorder %s31, 1
      %p54 = por %p52, %p53
      %p56 = scmp.ne.s32.totalorder %s39, %s55
      %p57 = scmp.eq.s32.totalorder %s31, 0
      %p58 = por %p56, %p57
      %s59 = ssub.s32 %s25, %s32
      %p60 = scmp.eq.s32.totalorder %s59, 0
      %s62 = sadd.s32 %s61, 1
      %s63 = scalar_select %p60, %s61, %s62
      %p66 = pneg %p60
      %p67 = scmp.eq.s32.totalorder %s25, 1
      %p68 = por %p66, %p67
      %p69 = scmp.ne.s32.totalorder %s61, %s64
      %p70 = scmp.eq.s32.totalorder %s25, 0
      %p71 = por %p69, %p70
      %p72 = scmp.ne.s32.totalorder %s61, %s64
      %p73 = scmp.eq.s32.totalorder %s30, 1
      %p74 = por %p72, %p73
      %p75 = scmp.ne.s32.totalorder %s64, %s65
      %p76 = scmp.eq.s32.totalorder %s30, 0
      %p77 = por %p75, %p76
      %p78 = scmp.ne.s32.totalorder %s64, %s65
      %p79 = scmp.eq.s32.totalorder %s31, 1
      %p80 = por %p78, %p79
      %p82 = scmp.ne.s32.totalorder %s65, %s81
      %p83 = scmp.eq.s32.totalorder %s31, 0
      %p84 = por %p82, %p83
      %s85 = ssub.s32 %s25, %s32
      %p86 = scmp.eq.s32.totalorder %s85, 0
      %s88 = sadd.s32 %s87, 1
      %s89 = scalar_select %p86, %s87, %s88
      %p92 = pneg %p86
      %p93 = scmp.eq.s32.totalorder %s25, 1
      %p94 = por %p92, %p93
      %p95 = scmp.ne.s32.totalorder %s87, %s90
      %p96 = scmp.eq.s32.totalorder %s25, 0
      %p97 = por %p95, %p96
      %p98 = scmp.ne.s32.totalorder %s87, %s90
      %p99 = scmp.eq.s32.totalorder %s30, 1
      %p100 = por %p98, %p99
      %p101 = scmp.ne.s32.totalorder %s90, %s91
      %p102 = scmp.eq.s32.totalorder %s30, 0
      %p103 = por %p101, %p102
      %p104 = scmp.ne.s32.totalorder %s90, %s91
      %p105 = scmp.eq.s32.totalorder %s31, 1
      %p106 = por %p104, %p105
      %p108 = scmp.ne.s32.totalorder %s91, %s107
      %p109 = scmp.eq.s32.totalorder %s31, 0
      %p110 = por %p108, %p109
      %s112 = sadd.s32 %s111, 1
      %p115 = scmp.eq.s32.totalorder %s25, 1
      %p116 = scmp.ne.s32.totalorder %s111, %s113
      %p117 = scmp.eq.s32.totalorder %s25, 0
      %p118 = por %p116, %p117
      %p119 = scmp.ne.s32.totalorder %s111, %s113
      %p120 = scmp.eq.s32.totalorder %s30, 1
      %p121 = por %p119, %p120
      %p122 = scmp.ne.s32.totalorder %s113, %s114
      %p123 = scmp.eq.s32.totalorder %s30, 0
      %p124 = por %p122, %p123
      %p125 = scmp.ne.s32.totalorder %s113, %s114
      %p126 = scmp.eq.s32.totalorder %s31, 1
      %p127 = por %p125, %p126
      %p129 = scmp.ne.s32.totalorder %s114, %s128
      %p130 = scmp.eq.s32.totalorder %s31, 0
      %p131 = por %p129, %p130
      %s133 = sadd.s32 %s132, 1
      %p136 = scmp.eq.s32.totalorder %s25, 1
      %p137 = scmp.ne.s32.totalorder %s132, %s134
      %p138 = scmp.eq.s32.totalorder %s25, 0
      %p139 = por %p137, %p138
      %p140 = scmp.ne.s32.totalorder %s132, %s134
      %p141 = scmp.eq.s32.totalorder %s30, 1
      %p142 = por %p140, %p141
      %p143 = scmp.ne.s32.totalorder %s134, %s135
      %p144 = scmp.eq.s32.totalorder %s30, 0
      %p145 = por %p143, %p144
      %p146 = scmp.ne.s32.totalorder %s134, %s135
      %p147 = scmp.eq.s32.totalorder %s31, 1
      %p148 = por %p146, %p147
      %p150 = scmp.ne.s32.totalorder %s135, %s149
      %p151 = scmp.eq.s32.totalorder %s31, 0
      %p152 = por %p150, %p151
      %s154 = sadd.s32 %s153, 1
      %p157 = scmp.eq.s32.totalorder %s25, 1
      %p158 = scmp.ne.s32.totalorder %s153, %s155
      %p159 = scmp.eq.s32.totalorder %s25, 0
      %p160 = por %p158, %p159
      %p161 = scmp.ne.s32.totalorder %s153, %s155
      %p162 = scmp.eq.s32.totalorder %s30, 1
      %p163 = por %p161, %p162
      %p164 = scmp.ne.s32.totalorder %s155, %s156
      %p165 = scmp.eq.s32.totalorder %s30, 0
      %p166 = por %p164, %p165
      %p167 = scmp.ne.s32.totalorder %s155, %s156
      %p168 = scmp.eq.s32.totalorder %s31, 1
      %p169 = por %p167, %p168
      %p171 = scmp.ne.s32.totalorder %s156, %s170
      %p172 = scmp.eq.s32.totalorder %s31, 0
      %p173 = por %p171, %p172
      %s175 = sadd.s32 %s174, 1
      %p178 = scmp.eq.s32.totalorder %s25, 1
      %p179 = scmp.ne.s32.totalorder %s174, %s176
      %p180 = scmp.eq.s32.totalorder %s25, 0
      %p181 = por %p179, %p180
      %p182 = scmp.ne.s32.totalorder %s174, %s176
      %p183 = scmp.eq.s32.totalorder %s30, 1
      %p184 = por %p182, %p183
      %p185 = scmp.ne.s32.totalorder %s176, %s177
      %p186 = scmp.eq.s32.totalorder %s30, 0
      %p187 = por %p185, %p186
      %p188 = scmp.ne.s32.totalorder %s176, %s177
      %p189 = scmp.eq.s32.totalorder %s31, 1
      %p190 = por %p188, %p189
      %p192 = scmp.ne.s32.totalorder %s177, %s191
      %p193 = scmp.eq.s32.totalorder %s31, 0
      %p194 = por %p192, %p193
      %s195 = ssub.s32 %s25, %s32
      %p196 = scmp.eq.s32.totalorder %s195, 0
      %s198 = sadd.s32 %s197, 1
      %s199 = scalar_select %p196, %s197, %s198
      %p202 = pneg %p196
      %p203 = scmp.eq.s32.totalorder %s25, 1
      %p204 = por %p202, %p203
      %p205 = scmp.ne.s32.totalorder %s197, %s200
      %p206 = scmp.eq.s32.totalorder %s25, 0
      %p207 = por %p205, %p206
      %p208 = scmp.ne.s32.totalorder %s197, %s200
      %p209 = scmp.eq.s32.totalorder %s30, 1
      %p210 = por %p208, %p209
      %p211 = scmp.ne.s32.totalorder %s200, %s201
      %p212 = scmp.eq.s32.totalorder %s30, 0
      %p213 = por %p211, %p212
      %p214 = scmp.ne.s32.totalorder %s200, %s201
      %p215 = scmp.eq.s32.totalorder %s31, 1
      %p216 = por %p214, %p215
      %p218 = scmp.ne.s32.totalorder %s201, %s217
      %p219 = scmp.eq.s32.totalorder %s31, 0
      %p220 = por %p218, %p219
      %p221 = scmp.le.s32.totalorder 1, %s25
      %p222 = scmp.lt.s32.totalorder %s25, 3
      %p223 = pnand %p221, %p222
      %p224 = pneg %p223
      // Predicated region
      $region9: #{tpu_custom_call.1} parent=5 // pred_check
        _
      $region10: #{tpu_custom_call.1} parent=5 // pred_check_branch
        %226 = sbr.rel (%p223) target = $region12
      $region11: #{tpu_custom_call.1} parent=5 // pred_region
        %s227 = ssub.s32 %s25, 1
        // Predicated region
        $region13: #{tpu_custom_call.1} parent=11 // pred_check
          %p228 = pneg %p124
        $region14: #{tpu_custom_call.1} parent=11 // pred_check_branch
          %230 = sbr.rel (%p228) target = $region16
        $region15: #{tpu_custom_call.1} parent=11 // pred_region
          %s232 = ssub.s32 128, 128
          %233 = vsyncadd [#allocation6], %s232
          %s235 = sshll.u32 %s3, 4
          %s236 = int_to_ptr.vmem [resolvable:$true] %s235
          %238 = dma.vmem_to_smem %s236, 128, [#allocation10], [#allocation6]
        $region16: #{tpu_custom_call.1} parent=11 // pred_fallthru
          _
        // Predicated region
        $region17: #{tpu_custom_call.1} parent=11 // pred_check
          %p239 = pneg %p145
        $region18: #{tpu_custom_call.1} parent=11 // pred_check_branch
          %241 = sbr.rel (%p239) target = $region20
        $region19: #{tpu_custom_call.1} parent=11 // pred_region
          %s243 = ssub.s32 16, 16
          %244 = vsyncadd [#allocation12], %s243
          %s246 = sshll.u32 %s4, 4
          %s247 = int_to_ptr.vmem [resolvable:$true] %s246
          %249 = dma.vmem_to_smem %s247, 16, [#allocation11], [#allocation12]
        $region20: #{tpu_custom_call.1} parent=11 // pred_fallthru
          _
        // Predicated region
        $region21: #{tpu_custom_call.1} parent=11 // pred_check
          %p250 = pneg %p166
        $region22: #{tpu_custom_call.1} parent=11 // pred_check_branch
          %252 = sbr.rel (%p250) target = $region24
        $region23: #{tpu_custom_call.1} parent=11 // pred_region
          %s254 = ssub.s32 16, 16
          %255 = vsyncadd [#allocation12], %s254
          %s257 = sshll.u32 %s5, 4
          %s258 = int_to_ptr.vmem [resolvable:$true] %s257
          %260 = dma.vmem_to_smem %s258, 16, [#allocation13], [#allocation12]
        $region24: #{tpu_custom_call.1} parent=11 // pred_fallthru
          _
        // Predicated region
        $region25: #{tpu_custom_call.1} parent=11 // pred_check
          %p261 = pneg %p187
        $region26: #{tpu_custom_call.1} parent=11 // pred_check_branch
          %263 = sbr.rel (%p261) target = $region28
        $region27: #{tpu_custom_call.1} parent=11 // pred_region
          _
        $region28: #{tpu_custom_call.1} parent=11 // pred_fallthru
          _
      $region12: #{tpu_custom_call.1} parent=5 // pred_fallthru
        _
      %p264 = scmp.lt.s32.totalorder %s25, 2
      // Predicated region
      $region29: #{tpu_custom_call.1} parent=5 // pred_check
        %p265 = pneg %p264
      $region30: #{tpu_custom_call.1} parent=5 // pred_check_branch
        %267 = sbr.rel (%p265) target = $region32
      $region31: #{tpu_custom_call.1} parent=5 // pred_region
        // Predicated region
        $region33: #{tpu_custom_call.1} parent=31 // pred_check
          %p268 = pneg %p45
        $region34: #{tpu_custom_call.1} parent=31 // pred_check_branch
          %270 = sbr.rel (%p268) target = $region36
        $region35: #{tpu_custom_call.1} parent=31 // pred_region
          %s271 = sand.u32 %s35, 1
          %s272 = scalar_lea.sflag [#allocation4], %s271
          %s273 = sand.u32 %s35, 1
          %s274 = smul.addr %s273, 32
          %s275 = scalar_lea.vmem [#allocation3], %s274
          %s276 = smul.u32 4, %s25
          %s278 = ssub.s32 512, 512
          %279 = vsyncadd %s272, %s278
          %s280 = smul.addr %s276, 128
          %s281 = scalar_lea.hbm %s0, %s280
          %s283 = sshll.u32 %s275, 4
          %s284 = int_to_ptr.vmem [resolvable:$true] %s283
          %286 = dma.hbm_to_vmem [thread:$0]  %s281, 512, %s284, %s272
        $region36: #{tpu_custom_call.1} parent=31 // pred_fallthru
          _
        // Predicated region
        $region37: #{tpu_custom_call.1} parent=31 // pred_check
          %p287 = pneg %p71
        $region38: #{tpu_custom_call.1} parent=31 // pred_check_branch
          %289 = sbr.rel (%p287) target = $region40
        $region39: #{tpu_custom_call.1} parent=31 // pred_region
          %s290 = sand.u32 %s25, 1
          %s291 = scalar_lea.sflag [#allocation8], %s290
          %s292 = sand.u32 %s61, 1
          %s293 = smul.addr %s292, 32
          %s294 = scalar_lea.vmem [#allocation7], %s293
          %s295 = smul.u32 4, %s25
          %s297 = ssub.s32 512, 512
          %298 = vsyncadd %s291, %s297
          %s299 = smul.addr %s295, 128
          %s300 = scalar_lea.hbm %s1, %s299
          %s302 = sshll.u32 %s294, 4
          %s303 = int_to_ptr.vmem [resolvable:$true] %s302
          %305 = dma.hbm_to_vmem [thread:$0]  %s300, 512, %s303, %s291
        $region40: #{tpu_custom_call.1} parent=31 // pred_fallthru
          _
        // Predicated region
        $region41: #{tpu_custom_call.1} parent=31 // pred_check
          %p306 = pneg %p97
        $region42: #{tpu_custom_call.1} parent=31 // pred_check_branch
          %308 = sbr.rel (%p306) target = $region44
        $region43: #{tpu_custom_call.1} parent=31 // pred_region
          %s309 = sand.u32 %s25, 1
          %s310 = scalar_lea.sflag [#allocation8], %s309
          %s311 = sand.u32 %s87, 1
          %s312 = smul.addr %s311, 256
          %s313 = scalar_lea.vmem [#allocation9], %s312
          %s314 = smul.u32 4, %s25
          %s316 = ssub.s32 4096, 4096
          %317 = vsyncadd %s310, %s316
          %s318 = smul.addr %s314, 128
          %s319 = scalar_lea.hbm %s2, %s318
          %s320 = sshll.u32 %s313, 4
          %s321 = int_to_ptr.vmem [resolvable:$true] %s320
          %326 = dma.hbm_to_vmem [thread:$0]  %s319, 4096, %s321, %s310, 1024, 512, 32
        $region44: #{tpu_custom_call.1} parent=31 // pred_fallthru
          _
      $region32: #{tpu_custom_call.1} parent=5 // pred_fallthru
        _
      %p327 = scmp.le.s32.totalorder 1, %s25
      %p328 = scmp.lt.s32.totalorder %s25, 3
      %p329 = pnand %p327, %p328
      %p330 = pneg %p329
      // Predicated region
      $region45: #{tpu_custom_call.1} parent=5 // pred_check
        _
      $region46: #{tpu_custom_call.1} parent=5 // pred_check_branch
        %332 = sbr.rel (%p329) target = $region48
      $region47: #{tpu_custom_call.1} parent=5 // pred_region
        %s333 = ssub.s32 %s25, 1
        %s334 = sand.u32 %s38, 1
        %s335 = scalar_lea.sflag [#allocation4], %s334
        %s336 = sand.u32 %s38, 1
        %s337 = smul.addr %s336, 32
        %s338 = scalar_lea.vmem [#allocation3], %s337
        // Predicated region
        $region49: #{tpu_custom_call.1} parent=47 // pred_check
          %p339 = pneg %p51
        $region50: #{tpu_custom_call.1} parent=47 // pred_check_branch
          %341 = sbr.rel (%p339) target = $region52
        $region51: #{tpu_custom_call.1} parent=47 // pred_region
          %342 = dma.done %s335, 512
        $region52: #{tpu_custom_call.1} parent=47 // pred_fallthru
          _
        %s343 = sand.u32 %s30, 1
        %s344 = scalar_lea.sflag [#allocation8], %s343
        %s345 = sand.u32 %s64, 1
        %s346 = smul.addr %s345, 32
        %s347 = scalar_lea.vmem [#allocation7], %s346
        // Predicated region
        $region53: #{tpu_custom_call.1} parent=47 // pred_check
          %p348 = pneg %p77
        $region54: #{tpu_custom_call.1} parent=47 // pred_check_branch
          %350 = sbr.rel (%p348) target = $region56
        $region55: #{tpu_custom_call.1} parent=47 // pred_region
          %351 = dma.done %s344, 512
        $region56: #{tpu_custom_call.1} parent=47 // pred_fallthru
          _
        %s352 = sand.u32 %s30, 1
        %s353 = scalar_lea.sflag [#allocation8], %s352
        %s354 = sand.u32 %s90, 1
        %s355 = smul.addr %s354, 256
        %s356 = scalar_lea.vmem [#allocation9], %s355
        // Predicated region
        $region57: #{tpu_custom_call.1} parent=47 // pred_check
          %p357 = pneg %p103
        $region58: #{tpu_custom_call.1} parent=47 // pred_check_branch
          %359 = sbr.rel (%p357) target = $region60
        $region59: #{tpu_custom_call.1} parent=47 // pred_region
          %360 = dma.done %s353, 4096
        $region60: #{tpu_custom_call.1} parent=47 // pred_fallthru
          _
        // Predicated region
        $region61: #{tpu_custom_call.1} parent=47 // pred_check
          %p361 = pneg %p124
        $region62: #{tpu_custom_call.1} parent=47 // pred_check_branch
          %363 = sbr.rel (%p361) target = $region64
        $region63: #{tpu_custom_call.1} parent=47 // pred_region
          %364 = dma.done [#allocation6], 128
        $region64: #{tpu_custom_call.1} parent=47 // pred_fallthru
          _
        // Predicated region
        $region65: #{tpu_custom_call.1} parent=47 // pred_check
          %p365 = pneg %p145
        $region66: #{tpu_custom_call.1} parent=47 // pred_check_branch
          %367 = sbr.rel (%p365) target = $region68
        $region67: #{tpu_custom_call.1} parent=47 // pred_region
          %368 = dma.done [#allocation12], 16
        $region68: #{tpu_custom_call.1} parent=47 // pred_fallthru
          _
        // Predicated region
        $region69: #{tpu_custom_call.1} parent=47 // pred_check
          %p369 = pneg %p166
        $region70: #{tpu_custom_call.1} parent=47 // pred_check_branch
          %371 = sbr.rel (%p369) target = $region72
        $region71: #{tpu_custom_call.1} parent=47 // pred_region
          %372 = dma.done [#allocation12], 16
        $region72: #{tpu_custom_call.1} parent=47 // pred_fallthru
          _
        %373 = sfence
        %s374 = sand.u32 %s38, 1
        %s375 = scalar_lea.sflag [#allocation4], %s374
        %s376 = sand.u32 %s38, 1
        %s377 = smul.addr %s376, 32
        %s378 = scalar_lea.vmem [#allocation3], %s377
        %p379 = pneg %p51
        %p380 = pneg %p48
        %s381 = sand.u32 %s30, 1
        %s382 = scalar_lea.sflag [#allocation8], %s381
        %s383 = sand.u32 %s64, 1
        %s384 = smul.addr %s383, 32
        %s385 = scalar_lea.vmem [#allocation7], %s384
        %p386 = pneg %p77
        %p387 = pneg %p74
        %s388 = sand.u32 %s30, 1
        %s389 = scalar_lea.sflag [#allocation8], %s388
        %s390 = sand.u32 %s90, 1
        %s391 = smul.addr %s390, 256
        %s392 = scalar_lea.vmem [#allocation9], %s391
        %p393 = pneg %p103
        %p394 = pneg %p100
        %p395 = pneg %p124
        %p396 = pneg %p121
        %p397 = pneg %p145
        %p398 = pneg %p142
        %p399 = pneg %p166
        %p400 = pneg %p163
        %p401 = pneg %p187
        %p402 = pneg %p184
        %p403 = pneg %p213
        %p404 = pneg %p210
        %s405 = sand.u32 %s200, 1
        %s406 = scalar_lea.sflag [#allocation5], %s405
        %s407 = sand.u32 %s200, 1
        %s408 = smul.addr %s407, 4
        %s409 = scalar_lea.vmem [#allocation14], %s408
        %s410 = smul.u32 4, %s30
        %s411 = smul.u32 4, %s30
        %s412 = smul.u32 4, %s30
        %s413 = smul.u32 4, %s30
        %v414 = vld [vmem:[%s338] sm:$0xff]
        %v415 = vld [vmem:[%s338 + $0x8] sm:$0xff]
        %v416 = vld [vmem:[%s338 + $0x10] sm:$0xff]
        %v417 = vld [vmem:[%s338 + $0x18] sm:$0xff]
        %v418 = vld [vmem:[%s347] sm:$0xff]
        %v419 = vld [vmem:[%s347 + $0x8] sm:$0xff]
        %v420 = vld [vmem:[%s347 + $0x10] sm:$0xff]
        %v421 = vld [vmem:[%s347 + $0x18] sm:$0xff]
        %v422 = vmul.f32 %v418, %v414
        %v423 = vmul.f32 %v419, %v415
        %v424 = vmul.f32 %v420, %v416
        %v425 = vmul.f32 %v421, %v417
        %v426 = vrot.slane %v422, 4
        %v427 = vadd.f32 %v422, %v426
        %v428 = vrot.slane %v427, 2
        %v429 = vadd.f32 %v427, %v428
        %v430 = vrot.slane %v429, 1
        %v431 = vadd.f32 %v429, %v430
        %v432 = vrot.slane %v423, 4
        %v433 = vadd.f32 %v423, %v432
        %v434 = vrot.slane %v433, 2
        %v435 = vadd.f32 %v433, %v434
        %v436 = vrot.slane %v435, 1
        %v437 = vadd.f32 %v435, %v436
        %v438 = vrot.slane %v424, 4
        %v439 = vadd.f32 %v424, %v438
        %v440 = vrot.slane %v439, 2
        %v441 = vadd.f32 %v439, %v440
        %v442 = vrot.slane %v441, 1
        %v443 = vadd.f32 %v441, %v442
        %v444 = vrot.slane %v425, 4
        %v445 = vadd.f32 %v425, %v444
        %v446 = vrot.slane %v445, 2
        %v447 = vadd.f32 %v445, %v446
        %v448 = vrot.slane %v447, 1
        %v449 = vadd.f32 %v447, %v448
        %v450 = vld [vmem:[%s356] sm:$0xff]
        %v451 = vld [vmem:[%s356 + $0x8] sm:$0xff]
        %v452 = vld [vmem:[%s356 + $0x10] sm:$0xff]
        %v453 = vld [vmem:[%s356 + $0x18] sm:$0xff]
        %v454 = vmul.f32 %v450, %v414
        %v455 = vmul.f32 %v451, %v415
        %v456 = vmul.f32 %v452, %v416
        %v457 = vmul.f32 %v453, %v417
        %s458 = scalar_lea.vmem %s356, 32 [#allocation9]
        %v459 = vld [vmem:[%s458] sm:$0xff]
        %v460 = vld [vmem:[%s458 + $0x8] sm:$0xff]
        %v461 = vld [vmem:[%s458 + $0x10] sm:$0xff]
        %v462 = vld [vmem:[%s458 + $0x18] sm:$0xff]
        %v463 = vmul.f32 %v459, %v414
        %v464 = vmul.f32 %v460, %v415
        %v465 = vmul.f32 %v461, %v416
        %v466 = vmul.f32 %v462, %v417
        %s467 = scalar_lea.vmem %s356, 64 [#allocation9]
        %v468 = vld [vmem:[%s467] sm:$0xff]
        %v469 = vld [vmem:[%s467 + $0x8] sm:$0xff]
        %v470 = vld [vmem:[%s467 + $0x10] sm:$0xff]
        %v471 = vld [vmem:[%s467 + $0x18] sm:$0xff]
        %v472 = vmul.f32 %v468, %v414
        %v473 = vmul.f32 %v469, %v415
        %v474 = vmul.f32 %v470, %v416
        %v475 = vmul.f32 %v471, %v417
        %s476 = scalar_lea.vmem %s356, 96 [#allocation9]
        %v477 = vld [vmem:[%s476] sm:$0xff]
        %v478 = vld [vmem:[%s476 + $0x8] sm:$0xff]
        %v479 = vld [vmem:[%s476 + $0x10] sm:$0xff]
        %v480 = vld [vmem:[%s476 + $0x18] sm:$0xff]
        %v481 = vmul.f32 %v477, %v414
        %v482 = vmul.f32 %v478, %v415
        %v483 = vmul.f32 %v479, %v416
        %v484 = vmul.f32 %v480, %v417
        %s485 = scalar_lea.vmem %s356, 128 [#allocation9]
        %v486 = vld [vmem:[%s485] sm:$0xff]
        %v487 = vld [vmem:[%s485 + $0x8] sm:$0xff]
        %v488 = vld [vmem:[%s485 + $0x10] sm:$0xff]
        %v489 = vld [vmem:[%s485 + $0x18] sm:$0xff]
        %v490 = vmul.f32 %v486, %v414
        %v491 = vmul.f32 %v487, %v415
        %v492 = vmul.f32 %v488, %v416
        %v493 = vmul.f32 %v489, %v417
        %s494 = scalar_lea.vmem %s356, 160 [#allocation9]
        %v495 = vld [vmem:[%s494] sm:$0xff]
        %v496 = vld [vmem:[%s494 + $0x8] sm:$0xff]
        %v497 = vld [vmem:[%s494 + $0x10] sm:$0xff]
        %v498 = vld [vmem:[%s494 + $0x18] sm:$0xff]
        %v499 = vmul.f32 %v495, %v414
        %v500 = vmul.f32 %v496, %v415
        %v501 = vmul.f32 %v497, %v416
        %v502 = vmul.f32 %v498, %v417
        %s503 = scalar_lea.vmem %s356, 192 [#allocation9]
        %v504 = vld [vmem:[%s503] sm:$0xff]
        %v505 = vld [vmem:[%s503 + $0x8] sm:$0xff]
        %v506 = vld [vmem:[%s503 + $0x10] sm:$0xff]
        %v507 = vld [vmem:[%s503 + $0x18] sm:$0xff]
        %v508 = vmul.f32 %v504, %v414
        %v509 = vmul.f32 %v505, %v415
        %v510 = vmul.f32 %v506, %v416
        %v511 = vmul.f32 %v507, %v417
        %s512 = scalar_lea.vmem %s356, 224 [#allocation9]
        %v513 = vld [vmem:[%s512] sm:$0xff]
        %v514 = vld [vmem:[%s512 + $0x8] sm:$0xff]
        %v515 = vld [vmem:[%s512 + $0x10] sm:$0xff]
        %v516 = vld [vmem:[%s512 + $0x18] sm:$0xff]
        %v517 = vmul.f32 %v513, %v414
        %v518 = vmul.f32 %v514, %v415
        %v519 = vmul.f32 %v515, %v416
        %v520 = vmul.f32 %v516, %v417
        %s521 = sld [smem:[#allocation10]]
        %s522 = sld [smem:[#allocation10 + $0x1]]
        %s523 = sld [smem:[#allocation10 + $0x2]]
        %s524 = sld [smem:[#allocation10 + $0x3]]
        %s525 = sld [smem:[#allocation10 + $0x4]]
        %s526 = sld [smem:[#allocation10 + $0x80]]
        %s527 = sld [smem:[#allocation10 + $0x81]]
        %s528 = sld [smem:[#allocation10 + $0x82]]
        %s529 = sld [smem:[#allocation10 + $0x83]]
        %s530 = sld [smem:[#allocation10 + $0x84]]
        %s531 = sld [smem:[#allocation10 + $0x100]]
        %s532 = sld [smem:[#allocation10 + $0x101]]
        %s533 = sld [smem:[#allocation10 + $0x102]]
        %s534 = sld [smem:[#allocation10 + $0x103]]
        %s535 = sld [smem:[#allocation10 + $0x104]]
        %s536 = sld [smem:[#allocation10 + $0x180]]
        %s537 = sld [smem:[#allocation10 + $0x181]]
        %s538 = sld [smem:[#allocation10 + $0x182]]
        %s539 = sld [smem:[#allocation10 + $0x183]]
        %s540 = sld [smem:[#allocation10 + $0x184]]
        %s541 = sld [smem:[#allocation10 + $0x200]]
        %s542 = sld [smem:[#allocation10 + $0x201]]
        %s543 = sld [smem:[#allocation10 + $0x202]]
        %s544 = sld [smem:[#allocation10 + $0x203]]
        %s545 = sld [smem:[#allocation10 + $0x204]]
        %s546 = sld [smem:[#allocation10 + $0x280]]
        %s547 = sld [smem:[#allocation10 + $0x281]]
        %s548 = sld [smem:[#allocation10 + $0x282]]
        %s549 = sld [smem:[#allocation10 + $0x283]]
        %s550 = sld [smem:[#allocation10 + $0x284]]
        %s551 = sld [smem:[#allocation10 + $0x300]]
        %s552 = sld [smem:[#allocation10 + $0x301]]
        %s553 = sld [smem:[#allocation10 + $0x302]]
        %s554 = sld [smem:[#allocation10 + $0x303]]
        %s555 = sld [smem:[#allocation10 + $0x304]]
        %s556 = sld [smem:[#allocation10 + $0x380]]
        %s557 = sld [smem:[#allocation10 + $0x381]]
        %s558 = sld [smem:[#allocation10 + $0x382]]
        %s559 = sld [smem:[#allocation10 + $0x383]]
        %s560 = sld [smem:[#allocation10 + $0x384]]
        %s561 = sld [smem:[#allocation11]]
        %s562 = sld [smem:[#allocation11 + $0x1]]
        %s563 = sld [smem:[#allocation11 + $0x2]]
        %s564 = sld [smem:[#allocation11 + $0x3]]
        %s565 = sld [smem:[#allocation13]]
        %s566 = sld [smem:[#allocation13 + $0x1]]
        %s567 = sld [smem:[#allocation13 + $0x2]]
        %s568 = sld [smem:[#allocation13 + $0x3]]
        %s569 = sld [smem:[#allocation2]]
        %v570 = vlaneseq
        %v571 = vshrl.u32 %v570, 7
        %vm572 = vcmp.lt.s32.totalorder %v571, 4
        %v573 = vrot.slane %v454, 7
        %v574 = vrot.slane %v455, 7
        %v575 = vrot.slane %v456, 7
        %v576 = vrot.slane %v457, 7
        %v577 = vmul.f32 %v454, %v573
        %v578 = vmul.f32 %v455, %v574
        %v579 = vmul.f32 %v456, %v575
        %v580 = vmul.f32 %v457, %v576
        %v581 = vstv %s521
        %v582 = vmul.f32 %v577, %v581
        %v583 = vmul.f32 %v578, %v581
        %v584 = vmul.f32 %v579, %v581
        %v585 = vmul.f32 %v580, %v581
        %v586 = vstv %s522
        %v587 = vmul.f32 %v577, %v586
        %v588 = vmul.f32 %v578, %v586
        %v589 = vmul.f32 %v579, %v586
        %v590 = vmul.f32 %v580, %v586
        %v591 = vstv %s523
        %v592 = vmul.f32 %v577, %v591
        %v593 = vmul.f32 %v578, %v591
        %v594 = vmul.f32 %v579, %v591
        %v595 = vmul.f32 %v580, %v591
        %v596 = vstv %s524
        %v597 = vmul.f32 %v577, %v596
        %v598 = vmul.f32 %v578, %v596
        %v599 = vmul.f32 %v579, %v596
        %v600 = vmul.f32 %v580, %v596
        %v601 = vstv %s525
        %v602 = vmul.f32 %v577, %v601
        %v603 = vmul.f32 %v578, %v601
        %v604 = vmul.f32 %v579, %v601
        %v605 = vmul.f32 %v580, %v601
        %v606 = vrot.slane %v463, 7
        %v607 = vrot.slane %v464, 7
        %v608 = vrot.slane %v465, 7
        %v609 = vrot.slane %v466, 7
        %v610 = vmul.f32 %v463, %v606
        %v611 = vmul.f32 %v464, %v607
        %v612 = vmul.f32 %v465, %v608
        %v613 = vmul.f32 %v466, %v609
        %v614 = vstv %s526
        %v615 = vmul.f32 %v610, %v614
        %v616 = vmul.f32 %v611, %v614
        %v617 = vmul.f32 %v612, %v614
        %v618 = vmul.f32 %v613, %v614
        %v619 = vadd.f32 %v582, %v615
        %v620 = vadd.f32 %v583, %v616
        %v621 = vadd.f32 %v584, %v617
        %v622 = vadd.f32 %v585, %v618
        %v623 = vstv %s527
        %v624 = vmul.f32 %v610, %v623
        %v625 = vmul.f32 %v611, %v623
        %v626 = vmul.f32 %v612, %v623
        %v627 = vmul.f32 %v613, %v623
        %v628 = vadd.f32 %v587, %v624
        %v629 = vadd.f32 %v588, %v625
        %v630 = vadd.f32 %v589, %v626
        %v631 = vadd.f32 %v590, %v627
        %v632 = vstv %s528
        %v633 = vmul.f32 %v610, %v632
        %v634 = vmul.f32 %v611, %v632
        %v635 = vmul.f32 %v612, %v632
        %v636 = vmul.f32 %v613, %v632
        %v637 = vadd.f32 %v592, %v633
        %v638 = vadd.f32 %v593, %v634
        %v639 = vadd.f32 %v594, %v635
        %v640 = vadd.f32 %v595, %v636
        %v641 = vstv %s529
        %v642 = vmul.f32 %v610, %v641
        %v643 = vmul.f32 %v611, %v641
        %v644 = vmul.f32 %v612, %v641
        %v645 = vmul.f32 %v613, %v641
        %v646 = vadd.f32 %v597, %v642
        %v647 = vadd.f32 %v598, %v643
        %v648 = vadd.f32 %v599, %v644
        %v649 = vadd.f32 %v600, %v645
        %v650 = vstv %s530
        %v651 = vmul.f32 %v610, %v650
        %v652 = vmul.f32 %v611, %v650
        %v653 = vmul.f32 %v612, %v650
        %v654 = vmul.f32 %v613, %v650
        %v655 = vadd.f32 %v602, %v651
        %v656 = vadd.f32 %v603, %v652
        %v657 = vadd.f32 %v604, %v653
        %v658 = vadd.f32 %v605, %v654
        %v659 = vrot.slane %v472, 7
        %v660 = vrot.slane %v473, 7
        %v661 = vrot.slane %v474, 7
        %v662 = vrot.slane %v475, 7
        %v663 = vmul.f32 %v472, %v659
        %v664 = vmul.f32 %v473, %v660
        %v665 = vmul.f32 %v474, %v661
        %v666 = vmul.f32 %v475, %v662
        %v667 = vstv %s531
        %v668 = vmul.f32 %v663, %v667
        %v669 = vmul.f32 %v664, %v667
        %v670 = vmul.f32 %v665, %v667
        %v671 = vmul.f32 %v666, %v667
        %v672 = vadd.f32 %v619, %v668
        %v673 = vadd.f32 %v620, %v669
        %v674 = vadd.f32 %v621, %v670
        %v675 = vadd.f32 %v622, %v671
        %v676 = vstv %s532
        %v677 = vmul.f32 %v663, %v676
        %v678 = vmul.f32 %v664, %v676
        %v679 = vmul.f32 %v665, %v676
        %v680 = vmul.f32 %v666, %v676
        %v681 = vadd.f32 %v628, %v677
        %v682 = vadd.f32 %v629, %v678
        %v683 = vadd.f32 %v630, %v679
        %v684 = vadd.f32 %v631, %v680
        %v685 = vstv %s533
        %v686 = vmul.f32 %v663, %v685
        %v687 = vmul.f32 %v664, %v685
        %v688 = vmul.f32 %v665, %v685
        %v689 = vmul.f32 %v666, %v685
        %v690 = vadd.f32 %v637, %v686
        %v691 = vadd.f32 %v638, %v687
        %v692 = vadd.f32 %v639, %v688
        %v693 = vadd.f32 %v640, %v689
        %v694 = vstv %s534
        %v695 = vmul.f32 %v663, %v694
        %v696 = vmul.f32 %v664, %v694
        %v697 = vmul.f32 %v665, %v694
        %v698 = vmul.f32 %v666, %v694
        %v699 = vadd.f32 %v646, %v695
        %v700 = vadd.f32 %v647, %v696
        %v701 = vadd.f32 %v648, %v697
        %v702 = vadd.f32 %v649, %v698
        %v703 = vstv %s535
        %v704 = vmul.f32 %v663, %v703
        %v705 = vmul.f32 %v664, %v703
        %v706 = vmul.f32 %v665, %v703
        %v707 = vmul.f32 %v666, %v703
        %v708 = vadd.f32 %v655, %v704
        %v709 = vadd.f32 %v656, %v705
        %v710 = vadd.f32 %v657, %v706
        %v711 = vadd.f32 %v658, %v707
        %v712 = vrot.slane %v481, 7
        %v713 = vrot.slane %v482, 7
        %v714 = vrot.slane %v483, 7
        %v715 = vrot.slane %v484, 7
        %v716 = vmul.f32 %v481, %v712
        %v717 = vmul.f32 %v482, %v713
        %v718 = vmul.f32 %v483, %v714
        %v719 = vmul.f32 %v484, %v715
        %v720 = vstv %s536
        %v721 = vmul.f32 %v716, %v720
        %v722 = vmul.f32 %v717, %v720
        %v723 = vmul.f32 %v718, %v720
        %v724 = vmul.f32 %v719, %v720
        %v725 = vadd.f32 %v672, %v721
        %v726 = vadd.f32 %v673, %v722
        %v727 = vadd.f32 %v674, %v723
        %v728 = vadd.f32 %v675, %v724
        %v729 = vstv %s537
        %v730 = vmul.f32 %v716, %v729
        %v731 = vmul.f32 %v717, %v729
        %v732 = vmul.f32 %v718, %v729
        %v733 = vmul.f32 %v719, %v729
        %v734 = vadd.f32 %v681, %v730
        %v735 = vadd.f32 %v682, %v731
        %v736 = vadd.f32 %v683, %v732
        %v737 = vadd.f32 %v684, %v733
        %v738 = vstv %s538
        %v739 = vmul.f32 %v716, %v738
        %v740 = vmul.f32 %v717, %v738
        %v741 = vmul.f32 %v718, %v738
        %v742 = vmul.f32 %v719, %v738
        %v743 = vadd.f32 %v690, %v739
        %v744 = vadd.f32 %v691, %v740
        %v745 = vadd.f32 %v692, %v741
        %v746 = vadd.f32 %v693, %v742
        %v747 = vstv %s539
        %v748 = vmul.f32 %v716, %v747
        %v749 = vmul.f32 %v717, %v747
        %v750 = vmul.f32 %v718, %v747
        %v751 = vmul.f32 %v719, %v747
        %v752 = vadd.f32 %v699, %v748
        %v753 = vadd.f32 %v700, %v749
        %v754 = vadd.f32 %v701, %v750
        %v755 = vadd.f32 %v702, %v751
        %v756 = vstv %s540
        %v757 = vmul.f32 %v716, %v756
        %v758 = vmul.f32 %v717, %v756
        %v759 = vmul.f32 %v718, %v756
        %v760 = vmul.f32 %v719, %v756
        %v761 = vadd.f32 %v708, %v757
        %v762 = vadd.f32 %v709, %v758
        %v763 = vadd.f32 %v710, %v759
        %v764 = vadd.f32 %v711, %v760
        %v765 = vrot.slane %v490, 7
        %v766 = vrot.slane %v491, 7
        %v767 = vrot.slane %v492, 7
        %v768 = vrot.slane %v493, 7
        %v769 = vmul.f32 %v490, %v765
        %v770 = vmul.f32 %v491, %v766
        %v771 = vmul.f32 %v492, %v767
        %v772 = vmul.f32 %v493, %v768
        %v773 = vstv %s541
        %v774 = vmul.f32 %v769, %v773
        %v775 = vmul.f32 %v770, %v773
        %v776 = vmul.f32 %v771, %v773
        %v777 = vmul.f32 %v772, %v773
        %v778 = vadd.f32 %v725, %v774
        %v779 = vadd.f32 %v726, %v775
        %v780 = vadd.f32 %v727, %v776
        %v781 = vadd.f32 %v728, %v777
        %v782 = vstv %s542
        %v783 = vmul.f32 %v769, %v782
        %v784 = vmul.f32 %v770, %v782
        %v785 = vmul.f32 %v771, %v782
        %v786 = vmul.f32 %v772, %v782
        %v787 = vadd.f32 %v734, %v783
        %v788 = vadd.f32 %v735, %v784
        %v789 = vadd.f32 %v736, %v785
        %v790 = vadd.f32 %v737, %v786
        %v791 = vstv %s543
        %v792 = vmul.f32 %v769, %v791
        %v793 = vmul.f32 %v770, %v791
        %v794 = vmul.f32 %v771, %v791
        %v795 = vmul.f32 %v772, %v791
        %v796 = vadd.f32 %v743, %v792
        %v797 = vadd.f32 %v744, %v793
        %v798 = vadd.f32 %v745, %v794
        %v799 = vadd.f32 %v746, %v795
        %v800 = vstv %s544
        %v801 = vmul.f32 %v769, %v800
        %v802 = vmul.f32 %v770, %v800
        %v803 = vmul.f32 %v771, %v800
        %v804 = vmul.f32 %v772, %v800
        %v805 = vadd.f32 %v752, %v801
        %v806 = vadd.f32 %v753, %v802
        %v807 = vadd.f32 %v754, %v803
        %v808 = vadd.f32 %v755, %v804
        %v809 = vstv %s545
        %v810 = vmul.f32 %v769, %v809
        %v811 = vmul.f32 %v770, %v809
        %v812 = vmul.f32 %v771, %v809
        %v813 = vmul.f32 %v772, %v809
        %v814 = vadd.f32 %v761, %v810
        %v815 = vadd.f32 %v762, %v811
        %v816 = vadd.f32 %v763, %v812
        %v817 = vadd.f32 %v764, %v813
        %v818 = vrot.slane %v499, 7
        %v819 = vrot.slane %v500, 7
        %v820 = vrot.slane %v501, 7
        %v821 = vrot.slane %v502, 7
        %v822 = vmul.f32 %v499, %v818
        %v823 = vmul.f32 %v500, %v819
        %v824 = vmul.f32 %v501, %v820
        %v825 = vmul.f32 %v502, %v821
        %v826 = vstv %s546
        %v827 = vmul.f32 %v822, %v826
        %v828 = vmul.f32 %v823, %v826
        %v829 = vmul.f32 %v824, %v826
        %v830 = vmul.f32 %v825, %v826
        %v831 = vadd.f32 %v778, %v827
        %v832 = vadd.f32 %v779, %v828
        %v833 = vadd.f32 %v780, %v829
        %v834 = vadd.f32 %v781, %v830
        %v835 = vstv %s547
        %v836 = vmul.f32 %v822, %v835
        %v837 = vmul.f32 %v823, %v835
        %v838 = vmul.f32 %v824, %v835
        %v839 = vmul.f32 %v825, %v835
        %v840 = vadd.f32 %v787, %v836
        %v841 = vadd.f32 %v788, %v837
        %v842 = vadd.f32 %v789, %v838
        %v843 = vadd.f32 %v790, %v839
        %v844 = vstv %s548
        %v845 = vmul.f32 %v822, %v844
        %v846 = vmul.f32 %v823, %v844
        %v847 = vmul.f32 %v824, %v844
        %v848 = vmul.f32 %v825, %v844
        %v849 = vadd.f32 %v796, %v845
        %v850 = vadd.f32 %v797, %v846
        %v851 = vadd.f32 %v798, %v847
        %v852 = vadd.f32 %v799, %v848
        %v853 = vstv %s549
        %v854 = vmul.f32 %v822, %v853
        %v855 = vmul.f32 %v823, %v853
        %v856 = vmul.f32 %v824, %v853
        %v857 = vmul.f32 %v825, %v853
        %v858 = vadd.f32 %v805, %v854
        %v859 = vadd.f32 %v806, %v855
        %v860 = vadd.f32 %v807, %v856
        %v861 = vadd.f32 %v808, %v857
        %v862 = vstv %s550
        %v863 = vmul.f32 %v822, %v862
        %v864 = vmul.f32 %v823, %v862
        %v865 = vmul.f32 %v824, %v862
        %v866 = vmul.f32 %v825, %v862
        %v867 = vadd.f32 %v814, %v863
        %v868 = vadd.f32 %v815, %v864
        %v869 = vadd.f32 %v816, %v865
        %v870 = vadd.f32 %v817, %v866
        %v871 = vrot.slane %v508, 7
        %v872 = vrot.slane %v509, 7
        %v873 = vrot.slane %v510, 7
        %v874 = vrot.slane %v511, 7
        %v875 = vmul.f32 %v508, %v871
        %v876 = vmul.f32 %v509, %v872
        %v877 = vmul.f32 %v510, %v873
        %v878 = vmul.f32 %v511, %v874
        %v879 = vstv %s551
        %v880 = vmul.f32 %v875, %v879
        %v881 = vmul.f32 %v876, %v879
        %v882 = vmul.f32 %v877, %v879
        %v883 = vmul.f32 %v878, %v879
        %v884 = vadd.f32 %v831, %v880
        %v885 = vadd.f32 %v832, %v881
        %v886 = vadd.f32 %v833, %v882
        %v887 = vadd.f32 %v834, %v883
        %v888 = vstv %s552
        %v889 = vmul.f32 %v875, %v888
        %v890 = vmul.f32 %v876, %v888
        %v891 = vmul.f32 %v877, %v888
        %v892 = vmul.f32 %v878, %v888
        %v893 = vadd.f32 %v840, %v889
        %v894 = vadd.f32 %v841, %v890
        %v895 = vadd.f32 %v842, %v891
        %v896 = vadd.f32 %v843, %v892
        %v897 = vstv %s553
        %v898 = vmul.f32 %v875, %v897
        %v899 = vmul.f32 %v876, %v897
        %v900 = vmul.f32 %v877, %v897
        %v901 = vmul.f32 %v878, %v897
        %v902 = vadd.f32 %v849, %v898
        %v903 = vadd.f32 %v850, %v899
        %v904 = vadd.f32 %v851, %v900
        %v905 = vadd.f32 %v852, %v901
        %v906 = vstv %s554
        %v907 = vmul.f32 %v875, %v906
        %v908 = vmul.f32 %v876, %v906
        %v909 = vmul.f32 %v877, %v906
        %v910 = vmul.f32 %v878, %v906
        %v911 = vadd.f32 %v858, %v907
        %v912 = vadd.f32 %v859, %v908
        %v913 = vadd.f32 %v860, %v909
        %v914 = vadd.f32 %v861, %v910
        %v915 = vstv %s555
        %v916 = vmul.f32 %v875, %v915
        %v917 = vmul.f32 %v876, %v915
        %v918 = vmul.f32 %v877, %v915
        %v919 = vmul.f32 %v878, %v915
        %v920 = vadd.f32 %v867, %v916
        %v921 = vadd.f32 %v868, %v917
        %v922 = vadd.f32 %v869, %v918
        %v923 = vadd.f32 %v870, %v919
        %v924 = vrot.slane %v517, 7
        %v925 = vrot.slane %v518, 7
        %v926 = vrot.slane %v519, 7
        %v927 = vrot.slane %v520, 7
        %v928 = vmul.f32 %v517, %v924
        %v929 = vmul.f32 %v518, %v925
        %v930 = vmul.f32 %v519, %v926
        %v931 = vmul.f32 %v520, %v927
        %v932 = vstv %s556
        %v933 = vmul.f32 %v928, %v932
        %v934 = vmul.f32 %v929, %v932
        %v935 = vmul.f32 %v930, %v932
        %v936 = vmul.f32 %v931, %v932
        %v937 = vadd.f32 %v884, %v933
        %v938 = vadd.f32 %v885, %v934
        %v939 = vadd.f32 %v886, %v935
        %v940 = vadd.f32 %v887, %v936
        %v941 = vstv %s557
        %v942 = vmul.f32 %v928, %v941
        %v943 = vmul.f32 %v929, %v941
        %v944 = vmul.f32 %v930, %v941
        %v945 = vmul.f32 %v931, %v941
        %v946 = vadd.f32 %v893, %v942
        %v947 = vadd.f32 %v894, %v943
        %v948 = vadd.f32 %v895, %v944
        %v949 = vadd.f32 %v896, %v945
        %v950 = vstv %s558
        %v951 = vmul.f32 %v928, %v950
        %v952 = vmul.f32 %v929, %v950
        %v953 = vmul.f32 %v930, %v950
        %v954 = vmul.f32 %v931, %v950
        %v955 = vadd.f32 %v902, %v951
        %v956 = vadd.f32 %v903, %v952
        %v957 = vadd.f32 %v904, %v953
        %v958 = vadd.f32 %v905, %v954
        %v959 = vstv %s559
        %v960 = vmul.f32 %v928, %v959
        %v961 = vmul.f32 %v929, %v959
        %v962 = vmul.f32 %v930, %v959
        %v963 = vmul.f32 %v931, %v959
        %v964 = vadd.f32 %v911, %v960
        %v965 = vadd.f32 %v912, %v961
        %v966 = vadd.f32 %v913, %v962
        %v967 = vadd.f32 %v914, %v963
        %v968 = vstv %s560
        %v969 = vmul.f32 %v928, %v968
        %v970 = vmul.f32 %v929, %v968
        %v971 = vmul.f32 %v930, %v968
        %v972 = vmul.f32 %v931, %v968
        %v973 = vadd.f32 %v920, %v969
        %v974 = vadd.f32 %v921, %v970
        %v975 = vadd.f32 %v922, %v971
        %v976 = vadd.f32 %v923, %v972
        %v977 = vstv %s561
        %v978 = vadd.f32 %v937, %v977
        %v979 = vadd.f32 %v938, %v977
        %v980 = vadd.f32 %v939, %v977
        %v981 = vadd.f32 %v940, %v977
        %v982 = vmax.f32 %v978, 0.0
        %v983 = vmax.f32 %v979, 0.0
        %v984 = vmax.f32 %v980, 0.0
        %v985 = vmax.f32 %v981, 0.0
        %v986 = vstv %s565
        %v987 = vmul.f32 %v982, %v986
        %v988 = vmul.f32 %v983, %v986
        %v989 = vmul.f32 %v984, %v986
        %v990 = vmul.f32 %v985, %v986
        %v991 = vstv %s562
        %v992 = vadd.f32 %v946, %v991
        %v993 = vadd.f32 %v947, %v991
        %v994 = vadd.f32 %v948, %v991
        %v995 = vadd.f32 %v949, %v991
        %v996 = vmax.f32 %v992, 0.0
        %v997 = vmax.f32 %v993, 0.0
        %v998 = vmax.f32 %v994, 0.0
        %v999 = vmax.f32 %v995, 0.0
        %v1000 = vstv %s566
        %v1001 = vmul.f32 %v996, %v1000
        %v1002 = vmul.f32 %v997, %v1000
        %v1003 = vmul.f32 %v998, %v1000
        %v1004 = vmul.f32 %v999, %v1000
        %v1005 = vadd.f32 %v987, %v1001
        %v1006 = vadd.f32 %v988, %v1002
        %v1007 = vadd.f32 %v989, %v1003
        %v1008 = vadd.f32 %v990, %v1004
        %v1009 = vstv %s563
        %v1010 = vadd.f32 %v955, %v1009
        %v1011 = vadd.f32 %v956, %v1009
        %v1012 = vadd.f32 %v957, %v1009
        %v1013 = vadd.f32 %v958, %v1009
        %v1014 = vmax.f32 %v1010, 0.0
        %v1015 = vmax.f32 %v1011, 0.0
        %v1016 = vmax.f32 %v1012, 0.0
        %v1017 = vmax.f32 %v1013, 0.0
        %v1018 = vstv %s567
        %v1019 = vmul.f32 %v1014, %v1018
        %v1020 = vmul.f32 %v1015, %v1018
        %v1021 = vmul.f32 %v1016, %v1018
        %v1022 = vmul.f32 %v1017, %v1018
        %v1023 = vadd.f32 %v1005, %v1019
        %v1024 = vadd.f32 %v1006, %v1020
        %v1025 = vadd.f32 %v1007, %v1021
        %v1026 = vadd.f32 %v1008, %v1022
        %v1027 = vstv %s564
        %v1028 = vadd.f32 %v964, %v1027
        %v1029 = vadd.f32 %v965, %v1027
        %v1030 = vadd.f32 %v966, %v1027
        %v1031 = vadd.f32 %v967, %v1027
        %v1032 = vmax.f32 %v1028, 0.0
        %v1033 = vmax.f32 %v1029, 0.0
        %v1034 = vmax.f32 %v1030, 0.0
        %v1035 = vmax.f32 %v1031, 0.0
        %v1036 = vstv %s568
        %v1037 = vmul.f32 %v1032, %v1036
        %v1038 = vmul.f32 %v1033, %v1036
        %v1039 = vmul.f32 %v1034, %v1036
        %v1040 = vmul.f32 %v1035, %v1036
        %v1041 = vadd.f32 %v1023, %v1037
        %v1042 = vadd.f32 %v1024, %v1038
        %v1043 = vadd.f32 %v1025, %v1039
        %v1044 = vadd.f32 %v1026, %v1040
        %v1045 = vrot.slane %v1041, 4
        %v1046 = vmax.f32 %v1041, %v1045
        %v1047 = vrot.slane %v1046, 2
        %v1048 = vmax.f32 %v1046, %v1047
        %v1049 = vrot.slane %v1048, 1
        %v1050 = vmax.f32 %v1048, %v1049
        %v1051 = vrot.slane %v1042, 4
        %v1052 = vmax.f32 %v1042, %v1051
        %v1053 = vrot.slane %v1052, 2
        %v1054 = vmax.f32 %v1052, %v1053
        %v1055 = vrot.slane %v1054, 1
        %v1056 = vmax.f32 %v1054, %v1055
        %v1057 = vrot.slane %v1043, 4
        %v1058 = vmax.f32 %v1043, %v1057
        %v1059 = vrot.slane %v1058, 2
        %v1060 = vmax.f32 %v1058, %v1059
        %v1061 = vrot.slane %v1060, 1
        %v1062 = vmax.f32 %v1060, %v1061
        %v1063 = vrot.slane %v1044, 4
        %v1064 = vmax.f32 %v1044, %v1063
        %v1065 = vrot.slane %v1064, 2
        %v1066 = vmax.f32 %v1064, %v1065
        %v1067 = vrot.slane %v1066, 1
        %v1068 = vmax.f32 %v1066, %v1067
        %v1069 = vmax.f32 %v1050, -1e+30
        %v1070 = vmax.f32 %v1056, -1e+30
        %v1071 = vmax.f32 %v1062, -1e+30
        %v1072 = vmax.f32 %v1068, -1e+30
        %v1073 = vsub.f32 -1e+30, %v1069
        %v1074 = vsub.f32 -1e+30, %v1070
        %v1075 = vsub.f32 -1e+30, %v1071
        %v1076 = vsub.f32 -1e+30, %v1072
        %v1077 = vmul.f32 %v1073, 1.442695
        %v1078 = vpow.pop %v1077
        %v1079 = vmul.f32 %v1074, 1.442695
        %v1080 = vpow.pop %v1079
        %v1081 = vmul.f32 %v1075, 1.442695
        %v1082 = vpow.pop %v1081
        %v1083 = vmul.f32 %v1076, 1.442695
        %v1084 = vpow.pop %v1083
        %v1085 = vsub.f32 %v1041, %v1069
        %v1086 = vsub.f32 %v1042, %v1070
        %v1087 = vsub.f32 %v1043, %v1071
        %v1088 = vsub.f32 %v1044, %v1072
        %v1089 = vmul.f32 %v1085, 1.442695
        %v1090 = vpow.pop %v1089
        %v1091 = vmul.f32 %v1086, 1.442695
        %v1092 = vpow.pop %v1091
        %v1093 = vmul.f32 %v1087, 1.442695
        %v1094 = vpow.pop %v1093
        %v1095 = vmul.f32 %v1088, 1.442695
        %v1096 = vpow.pop %v1095
        %v1097 = vmul.f32 %v1078, 0.0
        %v1098 = vmul.f32 %v1080, 0.0
        %v1099 = vmul.f32 %v1082, 0.0
        %v1100 = vmul.f32 %v1084, 0.0
        %v1101 = vrot.slane %v1090, 4
        %v1102 = vadd.f32 %v1090, %v1101
        %v1103 = vrot.slane %v1102, 2
        %v1104 = vadd.f32 %v1102, %v1103
        %v1105 = vrot.slane %v1104, 1
        %v1106 = vadd.f32 %v1104, %v1105
        %v1107 = vrot.slane %v1092, 4
        %v1108 = vadd.f32 %v1092, %v1107
        %v1109 = vrot.slane %v1108, 2
        %v1110 = vadd.f32 %v1108, %v1109
        %v1111 = vrot.slane %v1110, 1
        %v1112 = vadd.f32 %v1110, %v1111
        %v1113 = vrot.slane %v1094, 4
        %v1114 = vadd.f32 %v1094, %v1113
        %v1115 = vrot.slane %v1114, 2
        %v1116 = vadd.f32 %v1114, %v1115
        %v1117 = vrot.slane %v1116, 1
        %v1118 = vadd.f32 %v1116, %v1117
        %v1119 = vrot.slane %v1096, 4
        %v1120 = vadd.f32 %v1096, %v1119
        %v1121 = vrot.slane %v1120, 2
        %v1122 = vadd.f32 %v1120, %v1121
        %v1123 = vrot.slane %v1122, 1
        %v1124 = vadd.f32 %v1122, %v1123
        %v1125 = vadd.f32 %v1097, %v1106
        %v1126 = vadd.f32 %v1098, %v1112
        %v1127 = vadd.f32 %v1099, %v1118
        %v1128 = vadd.f32 %v1100, %v1124
        %v1129 = vmul.f32 %v1090, %v973
        %v1130 = vmul.f32 %v1092, %v974
        %v1131 = vmul.f32 %v1094, %v975
        %v1132 = vmul.f32 %v1096, %v976
        %v1133 = vrot.slane %v1129, 4
        %v1134 = vadd.f32 %v1129, %v1133
        %v1135 = vrot.slane %v1134, 2
        %v1136 = vadd.f32 %v1134, %v1135
        %v1137 = vrot.slane %v1136, 1
        %v1138 = vadd.f32 %v1136, %v1137
        %v1139 = vrot.slane %v1130, 4
        %v1140 = vadd.f32 %v1130, %v1139
        %v1141 = vrot.slane %v1140, 2
        %v1142 = vadd.f32 %v1140, %v1141
        %v1143 = vrot.slane %v1142, 1
        %v1144 = vadd.f32 %v1142, %v1143
        %v1145 = vrot.slane %v1131, 4
        %v1146 = vadd.f32 %v1131, %v1145
        %v1147 = vrot.slane %v1146, 2
        %v1148 = vadd.f32 %v1146, %v1147
        %v1149 = vrot.slane %v1148, 1
        %v1150 = vadd.f32 %v1148, %v1149
        %v1151 = vrot.slane %v1132, 4
        %v1152 = vadd.f32 %v1132, %v1151
        %v1153 = vrot.slane %v1152, 2
        %v1154 = vadd.f32 %v1152, %v1153
        %v1155 = vrot.slane %v1154, 1
        %v1156 = vadd.f32 %v1154, %v1155
        %v1157 = vadd.f32 %v1097, %v1138
        %v1158 = vadd.f32 %v1098, %v1144
        %v1159 = vadd.f32 %v1099, %v1150
        %v1160 = vadd.f32 %v1100, %v1156
        %v1161 = vrot.slane %v454, 6
        %v1162 = vrot.slane %v455, 6
        %v1163 = vrot.slane %v456, 6
        %v1164 = vrot.slane %v457, 6
        %v1165 = vmul.f32 %v454, %v1161
        %v1166 = vmul.f32 %v455, %v1162
        %v1167 = vmul.f32 %v456, %v1163
        %v1168 = vmul.f32 %v457, %v1164
        %v1169 = vmul.f32 %v1165, %v581
        %v1170 = vmul.f32 %v1166, %v581
        %v1171 = vmul.f32 %v1167, %v581
        %v1172 = vmul.f32 %v1168, %v581
        %v1173 = vmul.f32 %v1165, %v586
        %v1174 = vmul.f32 %v1166, %v586
        %v1175 = vmul.f32 %v1167, %v586
        %v1176 = vmul.f32 %v1168, %v586
        %v1177 = vmul.f32 %v1165, %v591
        %v1178 = vmul.f32 %v1166, %v591
        %v1179 = vmul.f32 %v1167, %v591
        %v1180 = vmul.f32 %v1168, %v591
        %v1181 = vmul.f32 %v1165, %v596
        %v1182 = vmul.f32 %v1166, %v596
        %v1183 = vmul.f32 %v1167, %v596
        %v1184 = vmul.f32 %v1168, %v596
        %v1185 = vmul.f32 %v1165, %v601
        %v1186 = vmul.f32 %v1166, %v601
        %v1187 = vmul.f32 %v1167, %v601
        %v1188 = vmul.f32 %v1168, %v601
        %v1189 = vrot.slane %v463, 6
        %v1190 = vrot.slane %v464, 6
        %v1191 = vrot.slane %v465, 6
        %v1192 = vrot.slane %v466, 6
        %v1193 = vmul.f32 %v463, %v1189
        %v1194 = vmul.f32 %v464, %v1190
        %v1195 = vmul.f32 %v465, %v1191
        %v1196 = vmul.f32 %v466, %v1192
        %v1197 = vmul.f32 %v1193, %v614
        %v1198 = vmul.f32 %v1194, %v614
        %v1199 = vmul.f32 %v1195, %v614
        %v1200 = vmul.f32 %v1196, %v614
        %v1201 = vadd.f32 %v1169, %v1197
        %v1202 = vadd.f32 %v1170, %v1198
        %v1203 = vadd.f32 %v1171, %v1199
        %v1204 = vadd.f32 %v1172, %v1200
        %v1205 = vmul.f32 %v1193, %v623
        %v1206 = vmul.f32 %v1194, %v623
        %v1207 = vmul.f32 %v1195, %v623
        %v1208 = vmul.f32 %v1196, %v623
        %v1209 = vadd.f32 %v1173, %v1205
        %v1210 = vadd.f32 %v1174, %v1206
        %v1211 = vadd.f32 %v1175, %v1207
        %v1212 = vadd.f32 %v1176, %v1208
        %v1213 = vmul.f32 %v1193, %v632
        %v1214 = vmul.f32 %v1194, %v632
        %v1215 = vmul.f32 %v1195, %v632
        %v1216 = vmul.f32 %v1196, %v632
        %v1217 = vadd.f32 %v1177, %v1213
        %v1218 = vadd.f32 %v1178, %v1214
        %v1219 = vadd.f32 %v1179, %v1215
        %v1220 = vadd.f32 %v1180, %v1216
        %v1221 = vmul.f32 %v1193, %v641
        %v1222 = vmul.f32 %v1194, %v641
        %v1223 = vmul.f32 %v1195, %v641
        %v1224 = vmul.f32 %v1196, %v641
        %v1225 = vadd.f32 %v1181, %v1221
        %v1226 = vadd.f32 %v1182, %v1222
        %v1227 = vadd.f32 %v1183, %v1223
        %v1228 = vadd.f32 %v1184, %v1224
        %v1229 = vmul.f32 %v1193, %v650
        %v1230 = vmul.f32 %v1194, %v650
        %v1231 = vmul.f32 %v1195, %v650
        %v1232 = vmul.f32 %v1196, %v650
        %v1233 = vadd.f32 %v1185, %v1229
        %v1234 = vadd.f32 %v1186, %v1230
        %v1235 = vadd.f32 %v1187, %v1231
        %v1236 = vadd.f32 %v1188, %v1232
        %v1237 = vrot.slane %v472, 6
        %v1238 = vrot.slane %v473, 6
        %v1239 = vrot.slane %v474, 6
        %v1240 = vrot.slane %v475, 6
        %v1241 = vmul.f32 %v472, %v1237
        %v1242 = vmul.f32 %v473, %v1238
        %v1243 = vmul.f32 %v474, %v1239
        %v1244 = vmul.f32 %v475, %v1240
        %v1245 = vmul.f32 %v1241, %v667
        %v1246 = vmul.f32 %v1242, %v667
        %v1247 = vmul.f32 %v1243, %v667
        %v1248 = vmul.f32 %v1244, %v667
        %v1249 = vadd.f32 %v1201, %v1245
        %v1250 = vadd.f32 %v1202, %v1246
        %v1251 = vadd.f32 %v1203, %v1247
        %v1252 = vadd.f32 %v1204, %v1248
        %v1253 = vmul.f32 %v1241, %v676
        %v1254 = vmul.f32 %v1242, %v676
        %v1255 = vmul.f32 %v1243, %v676
        %v1256 = vmul.f32 %v1244, %v676
        %v1257 = vadd.f32 %v1209, %v1253
        %v1258 = vadd.f32 %v1210, %v1254
        %v1259 = vadd.f32 %v1211, %v1255
        %v1260 = vadd.f32 %v1212, %v1256
        %v1261 = vmul.f32 %v1241, %v685
        %v1262 = vmul.f32 %v1242, %v685
        %v1263 = vmul.f32 %v1243, %v685
        %v1264 = vmul.f32 %v1244, %v685
        %v1265 = vadd.f32 %v1217, %v1261
        %v1266 = vadd.f32 %v1218, %v1262
        %v1267 = vadd.f32 %v1219, %v1263
        %v1268 = vadd.f32 %v1220, %v1264
        %v1269 = vmul.f32 %v1241, %v694
        %v1270 = vmul.f32 %v1242, %v694
        %v1271 = vmul.f32 %v1243, %v694
        %v1272 = vmul.f32 %v1244, %v694
        %v1273 = vadd.f32 %v1225, %v1269
        %v1274 = vadd.f32 %v1226, %v1270
        %v1275 = vadd.f32 %v1227, %v1271
        %v1276 = vadd.f32 %v1228, %v1272
        %v1277 = vmul.f32 %v1241, %v703
        %v1278 = vmul.f32 %v1242, %v703
        %v1279 = vmul.f32 %v1243, %v703
        %v1280 = vmul.f32 %v1244, %v703
        %v1281 = vadd.f32 %v1233, %v1277
        %v1282 = vadd.f32 %v1234, %v1278
        %v1283 = vadd.f32 %v1235, %v1279
        %v1284 = vadd.f32 %v1236, %v1280
        %v1285 = vrot.slane %v481, 6
        %v1286 = vrot.slane %v482, 6
        %v1287 = vrot.slane %v483, 6
        %v1288 = vrot.slane %v484, 6
        %v1289 = vmul.f32 %v481, %v1285
        %v1290 = vmul.f32 %v482, %v1286
        %v1291 = vmul.f32 %v483, %v1287
        %v1292 = vmul.f32 %v484, %v1288
        %v1293 = vmul.f32 %v1289, %v720
        %v1294 = vmul.f32 %v1290, %v720
        %v1295 = vmul.f32 %v1291, %v720
        %v1296 = vmul.f32 %v1292, %v720
        %v1297 = vadd.f32 %v1249, %v1293
        %v1298 = vadd.f32 %v1250, %v1294
        %v1299 = vadd.f32 %v1251, %v1295
        %v1300 = vadd.f32 %v1252, %v1296
        %v1301 = vmul.f32 %v1289, %v729
        %v1302 = vmul.f32 %v1290, %v729
        %v1303 = vmul.f32 %v1291, %v729
        %v1304 = vmul.f32 %v1292, %v729
        %v1305 = vadd.f32 %v1257, %v1301
        %v1306 = vadd.f32 %v1258, %v1302
        %v1307 = vadd.f32 %v1259, %v1303
        %v1308 = vadd.f32 %v1260, %v1304
        %v1309 = vmul.f32 %v1289, %v738
        %v1310 = vmul.f32 %v1290, %v738
        %v1311 = vmul.f32 %v1291, %v738
        %v1312 = vmul.f32 %v1292, %v738
        %v1313 = vadd.f32 %v1265, %v1309
        %v1314 = vadd.f32 %v1266, %v1310
        %v1315 = vadd.f32 %v1267, %v1311
        %v1316 = vadd.f32 %v1268, %v1312
        %v1317 = vmul.f32 %v1289, %v747
        %v1318 = vmul.f32 %v1290, %v747
        %v1319 = vmul.f32 %v1291, %v747
        %v1320 = vmul.f32 %v1292, %v747
        %v1321 = vadd.f32 %v1273, %v1317
        %v1322 = vadd.f32 %v1274, %v1318
        %v1323 = vadd.f32 %v1275, %v1319
        %v1324 = vadd.f32 %v1276, %v1320
        %v1325 = vmul.f32 %v1289, %v756
        %v1326 = vmul.f32 %v1290, %v756
        %v1327 = vmul.f32 %v1291, %v756
        %v1328 = vmul.f32 %v1292, %v756
        %v1329 = vadd.f32 %v1281, %v1325
        %v1330 = vadd.f32 %v1282, %v1326
        %v1331 = vadd.f32 %v1283, %v1327
        %v1332 = vadd.f32 %v1284, %v1328
        %v1333 = vrot.slane %v490, 6
        %v1334 = vrot.slane %v491, 6
        %v1335 = vrot.slane %v492, 6
        %v1336 = vrot.slane %v493, 6
        %v1337 = vmul.f32 %v490, %v1333
        %v1338 = vmul.f32 %v491, %v1334
        %v1339 = vmul.f32 %v492, %v1335
        %v1340 = vmul.f32 %v493, %v1336
        %v1341 = vmul.f32 %v1337, %v773
        %v1342 = vmul.f32 %v1338, %v773
        %v1343 = vmul.f32 %v1339, %v773
        %v1344 = vmul.f32 %v1340, %v773
        %v1345 = vadd.f32 %v1297, %v1341
        %v1346 = vadd.f32 %v1298, %v1342
        %v1347 = vadd.f32 %v1299, %v1343
        %v1348 = vadd.f32 %v1300, %v1344
        %v1349 = vmul.f32 %v1337, %v782
        %v1350 = vmul.f32 %v1338, %v782
        %v1351 = vmul.f32 %v1339, %v782
        %v1352 = vmul.f32 %v1340, %v782
        %v1353 = vadd.f32 %v1305, %v1349
        %v1354 = vadd.f32 %v1306, %v1350
        %v1355 = vadd.f32 %v1307, %v1351
        %v1356 = vadd.f32 %v1308, %v1352
        %v1357 = vmul.f32 %v1337, %v791
        %v1358 = vmul.f32 %v1338, %v791
        %v1359 = vmul.f32 %v1339, %v791
        %v1360 = vmul.f32 %v1340, %v791
        %v1361 = vadd.f32 %v1313, %v1357
        %v1362 = vadd.f32 %v1314, %v1358
        %v1363 = vadd.f32 %v1315, %v1359
        %v1364 = vadd.f32 %v1316, %v1360
        %v1365 = vmul.f32 %v1337, %v800
        %v1366 = vmul.f32 %v1338, %v800
        %v1367 = vmul.f32 %v1339, %v800
        %v1368 = vmul.f32 %v1340, %v800
        %v1369 = vadd.f32 %v1321, %v1365
        %v1370 = vadd.f32 %v1322, %v1366
        %v1371 = vadd.f32 %v1323, %v1367
        %v1372 = vadd.f32 %v1324, %v1368
        %v1373 = vmul.f32 %v1337, %v809
        %v1374 = vmul.f32 %v1338, %v809
        %v1375 = vmul.f32 %v1339, %v809
        %v1376 = vmul.f32 %v1340, %v809
        %v1377 = vadd.f32 %v1329, %v1373
        %v1378 = vadd.f32 %v1330, %v1374
        %v1379 = vadd.f32 %v1331, %v1375
        %v1380 = vadd.f32 %v1332, %v1376
        %v1381 = vrot.slane %v499, 6
        %v1382 = vrot.slane %v500, 6
        %v1383 = vrot.slane %v501, 6
        %v1384 = vrot.slane %v502, 6
        %v1385 = vmul.f32 %v499, %v1381
        %v1386 = vmul.f32 %v500, %v1382
        %v1387 = vmul.f32 %v501, %v1383
        %v1388 = vmul.f32 %v502, %v1384
        %v1389 = vmul.f32 %v1385, %v826
        %v1390 = vmul.f32 %v1386, %v826
        %v1391 = vmul.f32 %v1387, %v826
        %v1392 = vmul.f32 %v1388, %v826
        %v1393 = vadd.f32 %v1345, %v1389
        %v1394 = vadd.f32 %v1346, %v1390
        %v1395 = vadd.f32 %v1347, %v1391
        %v1396 = vadd.f32 %v1348, %v1392
        %v1397 = vmul.f32 %v1385, %v835
        %v1398 = vmul.f32 %v1386, %v835
        %v1399 = vmul.f32 %v1387, %v835
        %v1400 = vmul.f32 %v1388, %v835
        %v1401 = vadd.f32 %v1353, %v1397
        %v1402 = vadd.f32 %v1354, %v1398
        %v1403 = vadd.f32 %v1355, %v1399
        %v1404 = vadd.f32 %v1356, %v1400
        %v1405 = vmul.f32 %v1385, %v844
        %v1406 = vmul.f32 %v1386, %v844
        %v1407 = vmul.f32 %v1387, %v844
        %v1408 = vmul.f32 %v1388, %v844
        %v1409 = vadd.f32 %v1361, %v1405
        %v1410 = vadd.f32 %v1362, %v1406
        %v1411 = vadd.f32 %v1363, %v1407
        %v1412 = vadd.f32 %v1364, %v1408
        %v1413 = vmul.f32 %v1385, %v853
        %v1414 = vmul.f32 %v1386, %v853
        %v1415 = vmul.f32 %v1387, %v853
        %v1416 = vmul.f32 %v1388, %v853
        %v1417 = vadd.f32 %v1369, %v1413
        %v1418 = vadd.f32 %v1370, %v1414
        %v1419 = vadd.f32 %v1371, %v1415
        %v1420 = vadd.f32 %v1372, %v1416
        %v1421 = vmul.f32 %v1385, %v862
        %v1422 = vmul.f32 %v1386, %v862
        %v1423 = vmul.f32 %v1387, %v862
        %v1424 = vmul.f32 %v1388, %v862
        %v1425 = vadd.f32 %v1377, %v1421
        %v1426 = vadd.f32 %v1378, %v1422
        %v1427 = vadd.f32 %v1379, %v1423
        %v1428 = vadd.f32 %v1380, %v1424
        %v1429 = vrot.slane %v508, 6
        %v1430 = vrot.slane %v509, 6
        %v1431 = vrot.slane %v510, 6
        %v1432 = vrot.slane %v511, 6
        %v1433 = vmul.f32 %v508, %v1429
        %v1434 = vmul.f32 %v509, %v1430
        %v1435 = vmul.f32 %v510, %v1431
        %v1436 = vmul.f32 %v511, %v1432
        %v1437 = vmul.f32 %v1433, %v879
        %v1438 = vmul.f32 %v1434, %v879
        %v1439 = vmul.f32 %v1435, %v879
        %v1440 = vmul.f32 %v1436, %v879
        %v1441 = vadd.f32 %v1393, %v1437
        %v1442 = vadd.f32 %v1394, %v1438
        %v1443 = vadd.f32 %v1395, %v1439
        %v1444 = vadd.f32 %v1396, %v1440
        %v1445 = vmul.f32 %v1433, %v888
        %v1446 = vmul.f32 %v1434, %v888
        %v1447 = vmul.f32 %v1435, %v888
        %v1448 = vmul.f32 %v1436, %v888
        %v1449 = vadd.f32 %v1401, %v1445
        %v1450 = vadd.f32 %v1402, %v1446
        %v1451 = vadd.f32 %v1403, %v1447
        %v1452 = vadd.f32 %v1404, %v1448
        %v1453 = vmul.f32 %v1433, %v897
        %v1454 = vmul.f32 %v1434, %v897
        %v1455 = vmul.f32 %v1435, %v897
        %v1456 = vmul.f32 %v1436, %v897
        %v1457 = vadd.f32 %v1409, %v1453
        %v1458 = vadd.f32 %v1410, %v1454
        %v1459 = vadd.f32 %v1411, %v1455
        %v1460 = vadd.f32 %v1412, %v1456
        %v1461 = vmul.f32 %v1433, %v906
        %v1462 = vmul.f32 %v1434, %v906
        %v1463 = vmul.f32 %v1435, %v906
        %v1464 = vmul.f32 %v1436, %v906
        %v1465 = vadd.f32 %v1417, %v1461
        %v1466 = vadd.f32 %v1418, %v1462
        %v1467 = vadd.f32 %v1419, %v1463
        %v1468 = vadd.f32 %v1420, %v1464
        %v1469 = vmul.f32 %v1433, %v915
        %v1470 = vmul.f32 %v1434, %v915
        %v1471 = vmul.f32 %v1435, %v915
        %v1472 = vmul.f32 %v1436, %v915
        %v1473 = vadd.f32 %v1425, %v1469
        %v1474 = vadd.f32 %v1426, %v1470
        %v1475 = vadd.f32 %v1427, %v1471
        %v1476 = vadd.f32 %v1428, %v1472
        %v1477 = vrot.slane %v517, 6
        %v1478 = vrot.slane %v518, 6
        %v1479 = vrot.slane %v519, 6
        %v1480 = vrot.slane %v520, 6
        %v1481 = vmul.f32 %v517, %v1477
        %v1482 = vmul.f32 %v518, %v1478
        %v1483 = vmul.f32 %v519, %v1479
        %v1484 = vmul.f32 %v520, %v1480
        %v1485 = vmul.f32 %v1481, %v932
        %v1486 = vmul.f32 %v1482, %v932
        %v1487 = vmul.f32 %v1483, %v932
        %v1488 = vmul.f32 %v1484, %v932
        %v1489 = vadd.f32 %v1441, %v1485
        %v1490 = vadd.f32 %v1442, %v1486
        %v1491 = vadd.f32 %v1443, %v1487
        %v1492 = vadd.f32 %v1444, %v1488
        %v1493 = vmul.f32 %v1481, %v941
        %v1494 = vmul.f32 %v1482, %v941
        %v1495 = vmul.f32 %v1483, %v941
        %v1496 = vmul.f32 %v1484, %v941
        %v1497 = vadd.f32 %v1449, %v1493
        %v1498 = vadd.f32 %v1450, %v1494
        %v1499 = vadd.f32 %v1451, %v1495
        %v1500 = vadd.f32 %v1452, %v1496
        %v1501 = vmul.f32 %v1481, %v950
        %v1502 = vmul.f32 %v1482, %v950
        %v1503 = vmul.f32 %v1483, %v950
        %v1504 = vmul.f32 %v1484, %v950
        %v1505 = vadd.f32 %v1457, %v1501
        %v1506 = vadd.f32 %v1458, %v1502
        %v1507 = vadd.f32 %v1459, %v1503
        %v1508 = vadd.f32 %v1460, %v1504
        %v1509 = vmul.f32 %v1481, %v959
        %v1510 = vmul.f32 %v1482, %v959
        %v1511 = vmul.f32 %v1483, %v959
        %v1512 = vmul.f32 %v1484, %v959
        %v1513 = vadd.f32 %v1465, %v1509
        %v1514 = vadd.f32 %v1466, %v1510
        %v1515 = vadd.f32 %v1467, %v1511
        %v1516 = vadd.f32 %v1468, %v1512
        %v1517 = vmul.f32 %v1481, %v968
        %v1518 = vmul.f32 %v1482, %v968
        %v1519 = vmul.f32 %v1483, %v968
        %v1520 = vmul.f32 %v1484, %v968
        %v1521 = vadd.f32 %v1473, %v1517
        %v1522 = vadd.f32 %v1474, %v1518
        %v1523 = vadd.f32 %v1475, %v1519
        %v1524 = vadd.f32 %v1476, %v1520
        %v1525 = vadd.f32 %v1489, %v977
        %v1526 = vadd.f32 %v1490, %v977
        %v1527 = vadd.f32 %v1491, %v977
        %v1528 = vadd.f32 %v1492, %v977
        %v1529 = vmax.f32 %v1525, 0.0
        %v1530 = vmax.f32 %v1526, 0.0
        %v1531 = vmax.f32 %v1527, 0.0
        %v1532 = vmax.f32 %v1528, 0.0
        %v1533 = vmul.f32 %v1529, %v986
        %v1534 = vmul.f32 %v1530, %v986
        %v1535 = vmul.f32 %v1531, %v986
        %v1536 = vmul.f32 %v1532, %v986
        %v1537 = vadd.f32 %v1497, %v991
        %v1538 = vadd.f32 %v1498, %v991
        %v1539 = vadd.f32 %v1499, %v991
        %v1540 = vadd.f32 %v1500, %v991
        %v1541 = vmax.f32 %v1537, 0.0
        %v1542 = vmax.f32 %v1538, 0.0
        %v1543 = vmax.f32 %v1539, 0.0
        %v1544 = vmax.f32 %v1540, 0.0
        %v1545 = vmul.f32 %v1541, %v1000
        %v1546 = vmul.f32 %v1542, %v1000
        %v1547 = vmul.f32 %v1543, %v1000
        %v1548 = vmul.f32 %v1544, %v1000
        %v1549 = vadd.f32 %v1533, %v1545
        %v1550 = vadd.f32 %v1534, %v1546
        %v1551 = vadd.f32 %v1535, %v1547
        %v1552 = vadd.f32 %v1536, %v1548
        %v1553 = vadd.f32 %v1505, %v1009
        %v1554 = vadd.f32 %v1506, %v1009
        %v1555 = vadd.f32 %v1507, %v1009
        %v1556 = vadd.f32 %v1508, %v1009
        %v1557 = vmax.f32 %v1553, 0.0
        %v1558 = vmax.f32 %v1554, 0.0
        %v1559 = vmax.f32 %v1555, 0.0
        %v1560 = vmax.f32 %v1556, 0.0
        %v1561 = vmul.f32 %v1557, %v1018
        %v1562 = vmul.f32 %v1558, %v1018
        %v1563 = vmul.f32 %v1559, %v1018
        %v1564 = vmul.f32 %v1560, %v1018
        %v1565 = vadd.f32 %v1549, %v1561
        %v1566 = vadd.f32 %v1550, %v1562
        %v1567 = vadd.f32 %v1551, %v1563
        %v1568 = vadd.f32 %v1552, %v1564
        %v1569 = vadd.f32 %v1513, %v1027
        %v1570 = vadd.f32 %v1514, %v1027
        %v1571 = vadd.f32 %v1515, %v1027
        %v1572 = vadd.f32 %v1516, %v1027
        %v1573 = vmax.f32 %v1569, 0.0
        %v1574 = vmax.f32 %v1570, 0.0
        %v1575 = vmax.f32 %v1571, 0.0
        %v1576 = vmax.f32 %v1572, 0.0
        %v1577 = vmul.f32 %v1573, %v1036
        %v1578 = vmul.f32 %v1574, %v1036
        %v1579 = vmul.f32 %v1575, %v1036
        %v1580 = vmul.f32 %v1576, %v1036
        %v1581 = vadd.f32 %v1565, %v1577
        %v1582 = vadd.f32 %v1566, %v1578
        %v1583 = vadd.f32 %v1567, %v1579
        %v1584 = vadd.f32 %v1568, %v1580
        %v1585 = vrot.slane %v1581, 4
        %v1586 = vmax.f32 %v1581, %v1585
        %v1587 = vrot.slane %v1586, 2
        %v1588 = vmax.f32 %v1586, %v1587
        %v1589 = vrot.slane %v1588, 1
        %v1590 = vmax.f32 %v1588, %v1589
        %v1591 = vrot.slane %v1582, 4
        %v1592 = vmax.f32 %v1582, %v1591
        %v1593 = vrot.slane %v1592, 2
        %v1594 = vmax.f32 %v1592, %v1593
        %v1595 = vrot.slane %v1594, 1
        %v1596 = vmax.f32 %v1594, %v1595
        %v1597 = vrot.slane %v1583, 4
        %v1598 = vmax.f32 %v1583, %v1597
        %v1599 = vrot.slane %v1598, 2
        %v1600 = vmax.f32 %v1598, %v1599
        %v1601 = vrot.slane %v1600, 1
        %v1602 = vmax.f32 %v1600, %v1601
        %v1603 = vrot.slane %v1584, 4
        %v1604 = vmax.f32 %v1584, %v1603
        %v1605 = vrot.slane %v1604, 2
        %v1606 = vmax.f32 %v1604, %v1605
        %v1607 = vrot.slane %v1606, 1
        %v1608 = vmax.f32 %v1606, %v1607
        %v1609 = vmax.f32 %v1069, %v1590
        %v1610 = vmax.f32 %v1070, %v1596
        %v1611 = vmax.f32 %v1071, %v1602
        %v1612 = vmax.f32 %v1072, %v1608
        %v1613 = vsub.f32 %v1069, %v1609
        %v1614 = vsub.f32 %v1070, %v1610
        %v1615 = vsub.f32 %v1071, %v1611
        %v1616 = vsub.f32 %v1072, %v1612
        %v1617 = vmul.f32 %v1613, 1.442695
        %v1618 = vpow.pop %v1617
        %v1619 = vmul.f32 %v1614, 1.442695
        %v1620 = vpow.pop %v1619
        %v1621 = vmul.f32 %v1615, 1.442695
        %v1622 = vpow.pop %v1621
        %v1623 = vmul.f32 %v1616, 1.442695
        %v1624 = vpow.pop %v1623
        %v1625 = vsub.f32 %v1581, %v1609
        %v1626 = vsub.f32 %v1582, %v1610
        %v1627 = vsub.f32 %v1583, %v1611
        %v1628 = vsub.f32 %v1584, %v1612
        %v1629 = vmul.f32 %v1625, 1.442695
        %v1630 = vpow.pop %v1629
        %v1631 = vmul.f32 %v1626, 1.442695
        %v1632 = vpow.pop %v1631
        %v1633 = vmul.f32 %v1627, 1.442695
        %v1634 = vpow.pop %v1633
        %v1635 = vmul.f32 %v1628, 1.442695
        %v1636 = vpow.pop %v1635
        %v1637 = vmul.f32 %v1618, %v1125
        %v1638 = vmul.f32 %v1620, %v1126
        %v1639 = vmul.f32 %v1622, %v1127
        %v1640 = vmul.f32 %v1624, %v1128
        %v1641 = vrot.slane %v1630, 4
        %v1642 = vadd.f32 %v1630, %v1641
        %v1643 = vrot.slane %v1642, 2
        %v1644 = vadd.f32 %v1642, %v1643
        %v1645 = vrot.slane %v1644, 1
        %v1646 = vadd.f32 %v1644, %v1645
        %v1647 = vrot.slane %v1632, 4
        %v1648 = vadd.f32 %v1632, %v1647
        %v1649 = vrot.slane %v1648, 2
        %v1650 = vadd.f32 %v1648, %v1649
        %v1651 = vrot.slane %v1650, 1
        %v1652 = vadd.f32 %v1650, %v1651
        %v1653 = vrot.slane %v1634, 4
        %v1654 = vadd.f32 %v1634, %v1653
        %v1655 = vrot.slane %v1654, 2
        %v1656 = vadd.f32 %v1654, %v1655
        %v1657 = vrot.slane %v1656, 1
        %v1658 = vadd.f32 %v1656, %v1657
        %v1659 = vrot.slane %v1636, 4
        %v1660 = vadd.f32 %v1636, %v1659
        %v1661 = vrot.slane %v1660, 2
        %v1662 = vadd.f32 %v1660, %v1661
        %v1663 = vrot.slane %v1662, 1
        %v1664 = vadd.f32 %v1662, %v1663
        %v1665 = vadd.f32 %v1637, %v1646
        %v1666 = vadd.f32 %v1638, %v1652
        %v1667 = vadd.f32 %v1639, %v1658
        %v1668 = vadd.f32 %v1640, %v1664
        %v1669 = vmul.f32 %v1618, %v1157
        %v1670 = vmul.f32 %v1620, %v1158
        %v1671 = vmul.f32 %v1622, %v1159
        %v1672 = vmul.f32 %v1624, %v1160
        %v1673 = vmul.f32 %v1630, %v1521
        %v1674 = vmul.f32 %v1632, %v1522
        %v1675 = vmul.f32 %v1634, %v1523
        %v1676 = vmul.f32 %v1636, %v1524
        %v1677 = vrot.slane %v1673, 4
        %v1678 = vadd.f32 %v1673, %v1677
        %v1679 = vrot.slane %v1678, 2
        %v1680 = vadd.f32 %v1678, %v1679
        %v1681 = vrot.slane %v1680, 1
        %v1682 = vadd.f32 %v1680, %v1681
        %v1683 = vrot.slane %v1674, 4
        %v1684 = vadd.f32 %v1674, %v1683
        %v1685 = vrot.slane %v1684, 2
        %v1686 = vadd.f32 %v1684, %v1685
        %v1687 = vrot.slane %v1686, 1
        %v1688 = vadd.f32 %v1686, %v1687
        %v1689 = vrot.slane %v1675, 4
        %v1690 = vadd.f32 %v1675, %v1689
        %v1691 = vrot.slane %v1690, 2
        %v1692 = vadd.f32 %v1690, %v1691
        %v1693 = vrot.slane %v1692, 1
        %v1694 = vadd.f32 %v1692, %v1693
        %v1695 = vrot.slane %v1676, 4
        %v1696 = vadd.f32 %v1676, %v1695
        %v1697 = vrot.slane %v1696, 2
        %v1698 = vadd.f32 %v1696, %v1697
        %v1699 = vrot.slane %v1698, 1
        %v1700 = vadd.f32 %v1698, %v1699
        %v1701 = vadd.f32 %v1669, %v1682
        %v1702 = vadd.f32 %v1670, %v1688
        %v1703 = vadd.f32 %v1671, %v1694
        %v1704 = vadd.f32 %v1672, %v1700
        %v1705 = vrot.slane %v454, 5
        %v1706 = vrot.slane %v455, 5
        %v1707 = vrot.slane %v456, 5
        %v1708 = vrot.slane %v457, 5
        %v1709 = vmul.f32 %v454, %v1705
        %v1710 = vmul.f32 %v455, %v1706
        %v1711 = vmul.f32 %v456, %v1707
        %v1712 = vmul.f32 %v457, %v1708
        %v1713 = vmul.f32 %v1709, %v581
        %v1714 = vmul.f32 %v1710, %v581
        %v1715 = vmul.f32 %v1711, %v581
        %v1716 = vmul.f32 %v1712, %v581
        %v1717 = vmul.f32 %v1709, %v586
        %v1718 = vmul.f32 %v1710, %v586
        %v1719 = vmul.f32 %v1711, %v586
        %v1720 = vmul.f32 %v1712, %v586
        %v1721 = vmul.f32 %v1709, %v591
        %v1722 = vmul.f32 %v1710, %v591
        %v1723 = vmul.f32 %v1711, %v591
        %v1724 = vmul.f32 %v1712, %v591
        %v1725 = vmul.f32 %v1709, %v596
        %v1726 = vmul.f32 %v1710, %v596
        %v1727 = vmul.f32 %v1711, %v596
        %v1728 = vmul.f32 %v1712, %v596
        %v1729 = vmul.f32 %v1709, %v601
        %v1730 = vmul.f32 %v1710, %v601
        %v1731 = vmul.f32 %v1711, %v601
        %v1732 = vmul.f32 %v1712, %v601
        %v1733 = vrot.slane %v463, 5
        %v1734 = vrot.slane %v464, 5
        %v1735 = vrot.slane %v465, 5
        %v1736 = vrot.slane %v466, 5
        %v1737 = vmul.f32 %v463, %v1733
        %v1738 = vmul.f32 %v464, %v1734
        %v1739 = vmul.f32 %v465, %v1735
        %v1740 = vmul.f32 %v466, %v1736
        %v1741 = vmul.f32 %v1737, %v614
        %v1742 = vmul.f32 %v1738, %v614
        %v1743 = vmul.f32 %v1739, %v614
        %v1744 = vmul.f32 %v1740, %v614
        %v1745 = vadd.f32 %v1713, %v1741
        %v1746 = vadd.f32 %v1714, %v1742
        %v1747 = vadd.f32 %v1715, %v1743
        %v1748 = vadd.f32 %v1716, %v1744
        %v1749 = vmul.f32 %v1737, %v623
        %v1750 = vmul.f32 %v1738, %v623
        %v1751 = vmul.f32 %v1739, %v623
        %v1752 = vmul.f32 %v1740, %v623
        %v1753 = vadd.f32 %v1717, %v1749
        %v1754 = vadd.f32 %v1718, %v1750
        %v1755 = vadd.f32 %v1719, %v1751
        %v1756 = vadd.f32 %v1720, %v1752
        %v1757 = vmul.f32 %v1737, %v632
        %v1758 = vmul.f32 %v1738, %v632
        %v1759 = vmul.f32 %v1739, %v632
        %v1760 = vmul.f32 %v1740, %v632
        %v1761 = vadd.f32 %v1721, %v1757
        %v1762 = vadd.f32 %v1722, %v1758
        %v1763 = vadd.f32 %v1723, %v1759
        %v1764 = vadd.f32 %v1724, %v1760
        %v1765 = vmul.f32 %v1737, %v641
        %v1766 = vmul.f32 %v1738, %v641
        %v1767 = vmul.f32 %v1739, %v641
        %v1768 = vmul.f32 %v1740, %v641
        %v1769 = vadd.f32 %v1725, %v1765
        %v1770 = vadd.f32 %v1726, %v1766
        %v1771 = vadd.f32 %v1727, %v1767
        %v1772 = vadd.f32 %v1728, %v1768
        %v1773 = vmul.f32 %v1737, %v650
        %v1774 = vmul.f32 %v1738, %v650
        %v1775 = vmul.f32 %v1739, %v650
        %v1776 = vmul.f32 %v1740, %v650
        %v1777 = vadd.f32 %v1729, %v1773
        %v1778 = vadd.f32 %v1730, %v1774
        %v1779 = vadd.f32 %v1731, %v1775
        %v1780 = vadd.f32 %v1732, %v1776
        %v1781 = vrot.slane %v472, 5
        %v1782 = vrot.slane %v473, 5
        %v1783 = vrot.slane %v474, 5
        %v1784 = vrot.slane %v475, 5
        %v1785 = vmul.f32 %v472, %v1781
        %v1786 = vmul.f32 %v473, %v1782
        %v1787 = vmul.f32 %v474, %v1783
        %v1788 = vmul.f32 %v475, %v1784
        %v1789 = vmul.f32 %v1785, %v667
        %v1790 = vmul.f32 %v1786, %v667
        %v1791 = vmul.f32 %v1787, %v667
        %v1792 = vmul.f32 %v1788, %v667
        %v1793 = vadd.f32 %v1745, %v1789
        %v1794 = vadd.f32 %v1746, %v1790
        %v1795 = vadd.f32 %v1747, %v1791
        %v1796 = vadd.f32 %v1748, %v1792
        %v1797 = vmul.f32 %v1785, %v676
        %v1798 = vmul.f32 %v1786, %v676
        %v1799 = vmul.f32 %v1787, %v676
        %v1800 = vmul.f32 %v1788, %v676
        %v1801 = vadd.f32 %v1753, %v1797
        %v1802 = vadd.f32 %v1754, %v1798
        %v1803 = vadd.f32 %v1755, %v1799
        %v1804 = vadd.f32 %v1756, %v1800
        %v1805 = vmul.f32 %v1785, %v685
        %v1806 = vmul.f32 %v1786, %v685
        %v1807 = vmul.f32 %v1787, %v685
        %v1808 = vmul.f32 %v1788, %v685
        %v1809 = vadd.f32 %v1761, %v1805
        %v1810 = vadd.f32 %v1762, %v1806
        %v1811 = vadd.f32 %v1763, %v1807
        %v1812 = vadd.f32 %v1764, %v1808
        %v1813 = vmul.f32 %v1785, %v694
        %v1814 = vmul.f32 %v1786, %v694
        %v1815 = vmul.f32 %v1787, %v694
        %v1816 = vmul.f32 %v1788, %v694
        %v1817 = vadd.f32 %v1769, %v1813
        %v1818 = vadd.f32 %v1770, %v1814
        %v1819 = vadd.f32 %v1771, %v1815
        %v1820 = vadd.f32 %v1772, %v1816
        %v1821 = vmul.f32 %v1785, %v703
        %v1822 = vmul.f32 %v1786, %v703
        %v1823 = vmul.f32 %v1787, %v703
        %v1824 = vmul.f32 %v1788, %v703
        %v1825 = vadd.f32 %v1777, %v1821
        %v1826 = vadd.f32 %v1778, %v1822
        %v1827 = vadd.f32 %v1779, %v1823
        %v1828 = vadd.f32 %v1780, %v1824
        %v1829 = vrot.slane %v481, 5
        %v1830 = vrot.slane %v482, 5
        %v1831 = vrot.slane %v483, 5
        %v1832 = vrot.slane %v484, 5
        %v1833 = vmul.f32 %v481, %v1829
        %v1834 = vmul.f32 %v482, %v1830
        %v1835 = vmul.f32 %v483, %v1831
        %v1836 = vmul.f32 %v484, %v1832
        %v1837 = vmul.f32 %v1833, %v720
        %v1838 = vmul.f32 %v1834, %v720
        %v1839 = vmul.f32 %v1835, %v720
        %v1840 = vmul.f32 %v1836, %v720
        %v1841 = vadd.f32 %v1793, %v1837
        %v1842 = vadd.f32 %v1794, %v1838
        %v1843 = vadd.f32 %v1795, %v1839
        %v1844 = vadd.f32 %v1796, %v1840
        %v1845 = vmul.f32 %v1833, %v729
        %v1846 = vmul.f32 %v1834, %v729
        %v1847 = vmul.f32 %v1835, %v729
        %v1848 = vmul.f32 %v1836, %v729
        %v1849 = vadd.f32 %v1801, %v1845
        %v1850 = vadd.f32 %v1802, %v1846
        %v1851 = vadd.f32 %v1803, %v1847
        %v1852 = vadd.f32 %v1804, %v1848
        %v1853 = vmul.f32 %v1833, %v738
        %v1854 = vmul.f32 %v1834, %v738
        %v1855 = vmul.f32 %v1835, %v738
        %v1856 = vmul.f32 %v1836, %v738
        %v1857 = vadd.f32 %v1809, %v1853
        %v1858 = vadd.f32 %v1810, %v1854
        %v1859 = vadd.f32 %v1811, %v1855
        %v1860 = vadd.f32 %v1812, %v1856
        %v1861 = vmul.f32 %v1833, %v747
        %v1862 = vmul.f32 %v1834, %v747
        %v1863 = vmul.f32 %v1835, %v747
        %v1864 = vmul.f32 %v1836, %v747
        %v1865 = vadd.f32 %v1817, %v1861
        %v1866 = vadd.f32 %v1818, %v1862
        %v1867 = vadd.f32 %v1819, %v1863
        %v1868 = vadd.f32 %v1820, %v1864
        %v1869 = vmul.f32 %v1833, %v756
        %v1870 = vmul.f32 %v1834, %v756
        %v1871 = vmul.f32 %v1835, %v756
        %v1872 = vmul.f32 %v1836, %v756
        %v1873 = vadd.f32 %v1825, %v1869
        %v1874 = vadd.f32 %v1826, %v1870
        %v1875 = vadd.f32 %v1827, %v1871
        %v1876 = vadd.f32 %v1828, %v1872
        %v1877 = vrot.slane %v490, 5
        %v1878 = vrot.slane %v491, 5
        %v1879 = vrot.slane %v492, 5
        %v1880 = vrot.slane %v493, 5
        %v1881 = vmul.f32 %v490, %v1877
        %v1882 = vmul.f32 %v491, %v1878
        %v1883 = vmul.f32 %v492, %v1879
        %v1884 = vmul.f32 %v493, %v1880
        %v1885 = vmul.f32 %v1881, %v773
        %v1886 = vmul.f32 %v1882, %v773
        %v1887 = vmul.f32 %v1883, %v773
        %v1888 = vmul.f32 %v1884, %v773
        %v1889 = vadd.f32 %v1841, %v1885
        %v1890 = vadd.f32 %v1842, %v1886
        %v1891 = vadd.f32 %v1843, %v1887
        %v1892 = vadd.f32 %v1844, %v1888
        %v1893 = vmul.f32 %v1881, %v782
        %v1894 = vmul.f32 %v1882, %v782
        %v1895 = vmul.f32 %v1883, %v782
        %v1896 = vmul.f32 %v1884, %v782
        %v1897 = vadd.f32 %v1849, %v1893
        %v1898 = vadd.f32 %v1850, %v1894
        %v1899 = vadd.f32 %v1851, %v1895
        %v1900 = vadd.f32 %v1852, %v1896
        %v1901 = vmul.f32 %v1881, %v791
        %v1902 = vmul.f32 %v1882, %v791
        %v1903 = vmul.f32 %v1883, %v791
        %v1904 = vmul.f32 %v1884, %v791
        %v1905 = vadd.f32 %v1857, %v1901
        %v1906 = vadd.f32 %v1858, %v1902
        %v1907 = vadd.f32 %v1859, %v1903
        %v1908 = vadd.f32 %v1860, %v1904
        %v1909 = vmul.f32 %v1881, %v800
        %v1910 = vmul.f32 %v1882, %v800
        %v1911 = vmul.f32 %v1883, %v800
        %v1912 = vmul.f32 %v1884, %v800
        %v1913 = vadd.f32 %v1865, %v1909
        %v1914 = vadd.f32 %v1866, %v1910
        %v1915 = vadd.f32 %v1867, %v1911
        %v1916 = vadd.f32 %v1868, %v1912
        %v1917 = vmul.f32 %v1881, %v809
        %v1918 = vmul.f32 %v1882, %v809
        %v1919 = vmul.f32 %v1883, %v809
        %v1920 = vmul.f32 %v1884, %v809
        %v1921 = vadd.f32 %v1873, %v1917
        %v1922 = vadd.f32 %v1874, %v1918
        %v1923 = vadd.f32 %v1875, %v1919
        %v1924 = vadd.f32 %v1876, %v1920
        %v1925 = vrot.slane %v499, 5
        %v1926 = vrot.slane %v500, 5
        %v1927 = vrot.slane %v501, 5
        %v1928 = vrot.slane %v502, 5
        %v1929 = vmul.f32 %v499, %v1925
        %v1930 = vmul.f32 %v500, %v1926
        %v1931 = vmul.f32 %v501, %v1927
        %v1932 = vmul.f32 %v502, %v1928
        %v1933 = vmul.f32 %v1929, %v826
        %v1934 = vmul.f32 %v1930, %v826
        %v1935 = vmul.f32 %v1931, %v826
        %v1936 = vmul.f32 %v1932, %v826
        %v1937 = vadd.f32 %v1889, %v1933
        %v1938 = vadd.f32 %v1890, %v1934
        %v1939 = vadd.f32 %v1891, %v1935
        %v1940 = vadd.f32 %v1892, %v1936
        %v1941 = vmul.f32 %v1929, %v835
        %v1942 = vmul.f32 %v1930, %v835
        %v1943 = vmul.f32 %v1931, %v835
        %v1944 = vmul.f32 %v1932, %v835
        %v1945 = vadd.f32 %v1897, %v1941
        %v1946 = vadd.f32 %v1898, %v1942
        %v1947 = vadd.f32 %v1899, %v1943
        %v1948 = vadd.f32 %v1900, %v1944
        %v1949 = vmul.f32 %v1929, %v844
        %v1950 = vmul.f32 %v1930, %v844
        %v1951 = vmul.f32 %v1931, %v844
        %v1952 = vmul.f32 %v1932, %v844
        %v1953 = vadd.f32 %v1905, %v1949
        %v1954 = vadd.f32 %v1906, %v1950
        %v1955 = vadd.f32 %v1907, %v1951
        %v1956 = vadd.f32 %v1908, %v1952
        %v1957 = vmul.f32 %v1929, %v853
        %v1958 = vmul.f32 %v1930, %v853
        %v1959 = vmul.f32 %v1931, %v853
        %v1960 = vmul.f32 %v1932, %v853
        %v1961 = vadd.f32 %v1913, %v1957
        %v1962 = vadd.f32 %v1914, %v1958
        %v1963 = vadd.f32 %v1915, %v1959
        %v1964 = vadd.f32 %v1916, %v1960
        %v1965 = vmul.f32 %v1929, %v862
        %v1966 = vmul.f32 %v1930, %v862
        %v1967 = vmul.f32 %v1931, %v862
        %v1968 = vmul.f32 %v1932, %v862
        %v1969 = vadd.f32 %v1921, %v1965
        %v1970 = vadd.f32 %v1922, %v1966
        %v1971 = vadd.f32 %v1923, %v1967
        %v1972 = vadd.f32 %v1924, %v1968
        %v1973 = vrot.slane %v508, 5
        %v1974 = vrot.slane %v509, 5
        %v1975 = vrot.slane %v510, 5
        %v1976 = vrot.slane %v511, 5
        %v1977 = vmul.f32 %v508, %v1973
        %v1978 = vmul.f32 %v509, %v1974
        %v1979 = vmul.f32 %v510, %v1975
        %v1980 = vmul.f32 %v511, %v1976
        %v1981 = vmul.f32 %v1977, %v879
        %v1982 = vmul.f32 %v1978, %v879
        %v1983 = vmul.f32 %v1979, %v879
        %v1984 = vmul.f32 %v1980, %v879
        %v1985 = vadd.f32 %v1937, %v1981
        %v1986 = vadd.f32 %v1938, %v1982
        %v1987 = vadd.f32 %v1939, %v1983
        %v1988 = vadd.f32 %v1940, %v1984
        %v1989 = vmul.f32 %v1977, %v888
        %v1990 = vmul.f32 %v1978, %v888
        %v1991 = vmul.f32 %v1979, %v888
        %v1992 = vmul.f32 %v1980, %v888
        %v1993 = vadd.f32 %v1945, %v1989
        %v1994 = vadd.f32 %v1946, %v1990
        %v1995 = vadd.f32 %v1947, %v1991
        %v1996 = vadd.f32 %v1948, %v1992
        %v1997 = vmul.f32 %v1977, %v897
        %v1998 = vmul.f32 %v1978, %v897
        %v1999 = vmul.f32 %v1979, %v897
        %v2000 = vmul.f32 %v1980, %v897
        %v2001 = vadd.f32 %v1953, %v1997
        %v2002 = vadd.f32 %v1954, %v1998
        %v2003 = vadd.f32 %v1955, %v1999
        %v2004 = vadd.f32 %v1956, %v2000
        %v2005 = vmul.f32 %v1977, %v906
        %v2006 = vmul.f32 %v1978, %v906
        %v2007 = vmul.f32 %v1979, %v906
        %v2008 = vmul.f32 %v1980, %v906
        %v2009 = vadd.f32 %v1961, %v2005
        %v2010 = vadd.f32 %v1962, %v2006
        %v2011 = vadd.f32 %v1963, %v2007
        %v2012 = vadd.f32 %v1964, %v2008
        %v2013 = vmul.f32 %v1977, %v915
        %v2014 = vmul.f32 %v1978, %v915
        %v2015 = vmul.f32 %v1979, %v915
        %v2016 = vmul.f32 %v1980, %v915
        %v2017 = vadd.f32 %v1969, %v2013
        %v2018 = vadd.f32 %v1970, %v2014
        %v2019 = vadd.f32 %v1971, %v2015
        %v2020 = vadd.f32 %v1972, %v2016
        %v2021 = vrot.slane %v517, 5
        %v2022 = vrot.slane %v518, 5
        %v2023 = vrot.slane %v519, 5
        %v2024 = vrot.slane %v520, 5
        %v2025 = vmul.f32 %v517, %v2021
        %v2026 = vmul.f32 %v518, %v2022
        %v2027 = vmul.f32 %v519, %v2023
        %v2028 = vmul.f32 %v520, %v2024
        %v2029 = vmul.f32 %v2025, %v932
        %v2030 = vmul.f32 %v2026, %v932
        %v2031 = vmul.f32 %v2027, %v932
        %v2032 = vmul.f32 %v2028, %v932
        %v2033 = vadd.f32 %v1985, %v2029
        %v2034 = vadd.f32 %v1986, %v2030
        %v2035 = vadd.f32 %v1987, %v2031
        %v2036 = vadd.f32 %v1988, %v2032
        %v2037 = vmul.f32 %v2025, %v941
        %v2038 = vmul.f32 %v2026, %v941
        %v2039 = vmul.f32 %v2027, %v941
        %v2040 = vmul.f32 %v2028, %v941
        %v2041 = vadd.f32 %v1993, %v2037
        %v2042 = vadd.f32 %v1994, %v2038
        %v2043 = vadd.f32 %v1995, %v2039
        %v2044 = vadd.f32 %v1996, %v2040
        %v2045 = vmul.f32 %v2025, %v950
        %v2046 = vmul.f32 %v2026, %v950
        %v2047 = vmul.f32 %v2027, %v950
        %v2048 = vmul.f32 %v2028, %v950
        %v2049 = vadd.f32 %v2001, %v2045
        %v2050 = vadd.f32 %v2002, %v2046
        %v2051 = vadd.f32 %v2003, %v2047
        %v2052 = vadd.f32 %v2004, %v2048
        %v2053 = vmul.f32 %v2025, %v959
        %v2054 = vmul.f32 %v2026, %v959
        %v2055 = vmul.f32 %v2027, %v959
        %v2056 = vmul.f32 %v2028, %v959
        %v2057 = vadd.f32 %v2009, %v2053
        %v2058 = vadd.f32 %v2010, %v2054
        %v2059 = vadd.f32 %v2011, %v2055
        %v2060 = vadd.f32 %v2012, %v2056
        %v2061 = vmul.f32 %v2025, %v968
        %v2062 = vmul.f32 %v2026, %v968
        %v2063 = vmul.f32 %v2027, %v968
        %v2064 = vmul.f32 %v2028, %v968
        %v2065 = vadd.f32 %v2017, %v2061
        %v2066 = vadd.f32 %v2018, %v2062
        %v2067 = vadd.f32 %v2019, %v2063
        %v2068 = vadd.f32 %v2020, %v2064
        %v2069 = vadd.f32 %v2033, %v977
        %v2070 = vadd.f32 %v2034, %v977
        %v2071 = vadd.f32 %v2035, %v977
        %v2072 = vadd.f32 %v2036, %v977
        %v2073 = vmax.f32 %v2069, 0.0
        %v2074 = vmax.f32 %v2070, 0.0
        %v2075 = vmax.f32 %v2071, 0.0
        %v2076 = vmax.f32 %v2072, 0.0
        %v2077 = vmul.f32 %v2073, %v986
        %v2078 = vmul.f32 %v2074, %v986
        %v2079 = vmul.f32 %v2075, %v986
        %v2080 = vmul.f32 %v2076, %v986
        %v2081 = vadd.f32 %v2041, %v991
        %v2082 = vadd.f32 %v2042, %v991
        %v2083 = vadd.f32 %v2043, %v991
        %v2084 = vadd.f32 %v2044, %v991
        %v2085 = vmax.f32 %v2081, 0.0
        %v2086 = vmax.f32 %v2082, 0.0
        %v2087 = vmax.f32 %v2083, 0.0
        %v2088 = vmax.f32 %v2084, 0.0
        %v2089 = vmul.f32 %v2085, %v1000
        %v2090 = vmul.f32 %v2086, %v1000
        %v2091 = vmul.f32 %v2087, %v1000
        %v2092 = vmul.f32 %v2088, %v1000
        %v2093 = vadd.f32 %v2077, %v2089
        %v2094 = vadd.f32 %v2078, %v2090
        %v2095 = vadd.f32 %v2079, %v2091
        %v2096 = vadd.f32 %v2080, %v2092
        %v2097 = vadd.f32 %v2049, %v1009
        %v2098 = vadd.f32 %v2050, %v1009
        %v2099 = vadd.f32 %v2051, %v1009
        %v2100 = vadd.f32 %v2052, %v1009
        %v2101 = vmax.f32 %v2097, 0.0
        %v2102 = vmax.f32 %v2098, 0.0
        %v2103 = vmax.f32 %v2099, 0.0
        %v2104 = vmax.f32 %v2100, 0.0
        %v2105 = vmul.f32 %v2101, %v1018
        %v2106 = vmul.f32 %v2102, %v1018
        %v2107 = vmul.f32 %v2103, %v1018
        %v2108 = vmul.f32 %v2104, %v1018
        %v2109 = vadd.f32 %v2093, %v2105
        %v2110 = vadd.f32 %v2094, %v2106
        %v2111 = vadd.f32 %v2095, %v2107
        %v2112 = vadd.f32 %v2096, %v2108
        %v2113 = vadd.f32 %v2057, %v1027
        %v2114 = vadd.f32 %v2058, %v1027
        %v2115 = vadd.f32 %v2059, %v1027
        %v2116 = vadd.f32 %v2060, %v1027
        %v2117 = vmax.f32 %v2113, 0.0
        %v2118 = vmax.f32 %v2114, 0.0
        %v2119 = vmax.f32 %v2115, 0.0
        %v2120 = vmax.f32 %v2116, 0.0
        %v2121 = vmul.f32 %v2117, %v1036
        %v2122 = vmul.f32 %v2118, %v1036
        %v2123 = vmul.f32 %v2119, %v1036
        %v2124 = vmul.f32 %v2120, %v1036
        %v2125 = vadd.f32 %v2109, %v2121
        %v2126 = vadd.f32 %v2110, %v2122
        %v2127 = vadd.f32 %v2111, %v2123
        %v2128 = vadd.f32 %v2112, %v2124
        %v2129 = vrot.slane %v2125, 4
        %v2130 = vmax.f32 %v2125, %v2129
        %v2131 = vrot.slane %v2130, 2
        %v2132 = vmax.f32 %v2130, %v2131
        %v2133 = vrot.slane %v2132, 1
        %v2134 = vmax.f32 %v2132, %v2133
        %v2135 = vrot.slane %v2126, 4
        %v2136 = vmax.f32 %v2126, %v2135
        %v2137 = vrot.slane %v2136, 2
        %v2138 = vmax.f32 %v2136, %v2137
        %v2139 = vrot.slane %v2138, 1
        %v2140 = vmax.f32 %v2138, %v2139
        %v2141 = vrot.slane %v2127, 4
        %v2142 = vmax.f32 %v2127, %v2141
        %v2143 = vrot.slane %v2142, 2
        %v2144 = vmax.f32 %v2142, %v2143
        %v2145 = vrot.slane %v2144, 1
        %v2146 = vmax.f32 %v2144, %v2145
        %v2147 = vrot.slane %v2128, 4
        %v2148 = vmax.f32 %v2128, %v2147
        %v2149 = vrot.slane %v2148, 2
        %v2150 = vmax.f32 %v2148, %v2149
        %v2151 = vrot.slane %v2150, 1
        %v2152 = vmax.f32 %v2150, %v2151
        %v2153 = vmax.f32 %v1609, %v2134
        %v2154 = vmax.f32 %v1610, %v2140
        %v2155 = vmax.f32 %v1611, %v2146
        %v2156 = vmax.f32 %v1612, %v2152
        %v2157 = vsub.f32 %v1609, %v2153
        %v2158 = vsub.f32 %v1610, %v2154
        %v2159 = vsub.f32 %v1611, %v2155
        %v2160 = vsub.f32 %v1612, %v2156
        %v2161 = vmul.f32 %v2157, 1.442695
        %v2162 = vpow.pop %v2161
        %v2163 = vmul.f32 %v2158, 1.442695
        %v2164 = vpow.pop %v2163
        %v2165 = vmul.f32 %v2159, 1.442695
        %v2166 = vpow.pop %v2165
        %v2167 = vmul.f32 %v2160, 1.442695
        %v2168 = vpow.pop %v2167
        %v2169 = vsub.f32 %v2125, %v2153
        %v2170 = vsub.f32 %v2126, %v2154
        %v2171 = vsub.f32 %v2127, %v2155
        %v2172 = vsub.f32 %v2128, %v2156
        %v2173 = vmul.f32 %v2169, 1.442695
        %v2174 = vpow.pop %v2173
        %v2175 = vmul.f32 %v2170, 1.442695
        %v2176 = vpow.pop %v2175
        %v2177 = vmul.f32 %v2171, 1.442695
        %v2178 = vpow.pop %v2177
        %v2179 = vmul.f32 %v2172, 1.442695
        %v2180 = vpow.pop %v2179
        %v2181 = vmul.f32 %v2162, %v1665
        %v2182 = vmul.f32 %v2164, %v1666
        %v2183 = vmul.f32 %v2166, %v1667
        %v2184 = vmul.f32 %v2168, %v1668
        %v2185 = vrot.slane %v2174, 4
        %v2186 = vadd.f32 %v2174, %v2185
        %v2187 = vrot.slane %v2186, 2
        %v2188 = vadd.f32 %v2186, %v2187
        %v2189 = vrot.slane %v2188, 1
        %v2190 = vadd.f32 %v2188, %v2189
        %v2191 = vrot.slane %v2176, 4
        %v2192 = vadd.f32 %v2176, %v2191
        %v2193 = vrot.slane %v2192, 2
        %v2194 = vadd.f32 %v2192, %v2193
        %v2195 = vrot.slane %v2194, 1
        %v2196 = vadd.f32 %v2194, %v2195
        %v2197 = vrot.slane %v2178, 4
        %v2198 = vadd.f32 %v2178, %v2197
        %v2199 = vrot.slane %v2198, 2
        %v2200 = vadd.f32 %v2198, %v2199
        %v2201 = vrot.slane %v2200, 1
        %v2202 = vadd.f32 %v2200, %v2201
        %v2203 = vrot.slane %v2180, 4
        %v2204 = vadd.f32 %v2180, %v2203
        %v2205 = vrot.slane %v2204, 2
        %v2206 = vadd.f32 %v2204, %v2205
        %v2207 = vrot.slane %v2206, 1
        %v2208 = vadd.f32 %v2206, %v2207
        %v2209 = vadd.f32 %v2181, %v2190
        %v2210 = vadd.f32 %v2182, %v2196
        %v2211 = vadd.f32 %v2183, %v2202
        %v2212 = vadd.f32 %v2184, %v2208
        %v2213 = vmul.f32 %v2162, %v1701
        %v2214 = vmul.f32 %v2164, %v1702
        %v2215 = vmul.f32 %v2166, %v1703
        %v2216 = vmul.f32 %v2168, %v1704
        %v2217 = vmul.f32 %v2174, %v2065
        %v2218 = vmul.f32 %v2176, %v2066
        %v2219 = vmul.f32 %v2178, %v2067
        %v2220 = vmul.f32 %v2180, %v2068
        %v2221 = vrot.slane %v2217, 4
        %v2222 = vadd.f32 %v2217, %v2221
        %v2223 = vrot.slane %v2222, 2
        %v2224 = vadd.f32 %v2222, %v2223
        %v2225 = vrot.slane %v2224, 1
        %v2226 = vadd.f32 %v2224, %v2225
        %v2227 = vrot.slane %v2218, 4
        %v2228 = vadd.f32 %v2218, %v2227
        %v2229 = vrot.slane %v2228, 2
        %v2230 = vadd.f32 %v2228, %v2229
        %v2231 = vrot.slane %v2230, 1
        %v2232 = vadd.f32 %v2230, %v2231
        %v2233 = vrot.slane %v2219, 4
        %v2234 = vadd.f32 %v2219, %v2233
        %v2235 = vrot.slane %v2234, 2
        %v2236 = vadd.f32 %v2234, %v2235
        %v2237 = vrot.slane %v2236, 1
        %v2238 = vadd.f32 %v2236, %v2237
        %v2239 = vrot.slane %v2220, 4
        %v2240 = vadd.f32 %v2220, %v2239
        %v2241 = vrot.slane %v2240, 2
        %v2242 = vadd.f32 %v2240, %v2241
        %v2243 = vrot.slane %v2242, 1
        %v2244 = vadd.f32 %v2242, %v2243
        %v2245 = vadd.f32 %v2213, %v2226
        %v2246 = vadd.f32 %v2214, %v2232
        %v2247 = vadd.f32 %v2215, %v2238
        %v2248 = vadd.f32 %v2216, %v2244
        %v2249 = vrot.slane %v454, 4
        %v2250 = vrot.slane %v455, 4
        %v2251 = vrot.slane %v456, 4
        %v2252 = vrot.slane %v457, 4
        %v2253 = vmul.f32 %v454, %v2249
        %v2254 = vmul.f32 %v455, %v2250
        %v2255 = vmul.f32 %v456, %v2251
        %v2256 = vmul.f32 %v457, %v2252
        %v2257 = vmul.f32 %v2253, %v581
        %v2258 = vmul.f32 %v2254, %v581
        %v2259 = vmul.f32 %v2255, %v581
        %v2260 = vmul.f32 %v2256, %v581
        %v2261 = vmul.f32 %v2253, %v586
        %v2262 = vmul.f32 %v2254, %v586
        %v2263 = vmul.f32 %v2255, %v586
        %v2264 = vmul.f32 %v2256, %v586
        %v2265 = vmul.f32 %v2253, %v591
        %v2266 = vmul.f32 %v2254, %v591
        %v2267 = vmul.f32 %v2255, %v591
        %v2268 = vmul.f32 %v2256, %v591
        %v2269 = vmul.f32 %v2253, %v596
        %v2270 = vmul.f32 %v2254, %v596
        %v2271 = vmul.f32 %v2255, %v596
        %v2272 = vmul.f32 %v2256, %v596
        %v2273 = vmul.f32 %v2253, %v601
        %v2274 = vmul.f32 %v2254, %v601
        %v2275 = vmul.f32 %v2255, %v601
        %v2276 = vmul.f32 %v2256, %v601
        %v2277 = vrot.slane %v463, 4
        %v2278 = vrot.slane %v464, 4
        %v2279 = vrot.slane %v465, 4
        %v2280 = vrot.slane %v466, 4
        %v2281 = vmul.f32 %v463, %v2277
        %v2282 = vmul.f32 %v464, %v2278
        %v2283 = vmul.f32 %v465, %v2279
        %v2284 = vmul.f32 %v466, %v2280
        %v2285 = vmul.f32 %v2281, %v614
        %v2286 = vmul.f32 %v2282, %v614
        %v2287 = vmul.f32 %v2283, %v614
        %v2288 = vmul.f32 %v2284, %v614
        %v2289 = vadd.f32 %v2257, %v2285
        %v2290 = vadd.f32 %v2258, %v2286
        %v2291 = vadd.f32 %v2259, %v2287
        %v2292 = vadd.f32 %v2260, %v2288
        %v2293 = vmul.f32 %v2281, %v623
        %v2294 = vmul.f32 %v2282, %v623
        %v2295 = vmul.f32 %v2283, %v623
        %v2296 = vmul.f32 %v2284, %v623
        %v2297 = vadd.f32 %v2261, %v2293
        %v2298 = vadd.f32 %v2262, %v2294
        %v2299 = vadd.f32 %v2263, %v2295
        %v2300 = vadd.f32 %v2264, %v2296
        %v2301 = vmul.f32 %v2281, %v632
        %v2302 = vmul.f32 %v2282, %v632
        %v2303 = vmul.f32 %v2283, %v632
        %v2304 = vmul.f32 %v2284, %v632
        %v2305 = vadd.f32 %v2265, %v2301
        %v2306 = vadd.f32 %v2266, %v2302
        %v2307 = vadd.f32 %v2267, %v2303
        %v2308 = vadd.f32 %v2268, %v2304
        %v2309 = vmul.f32 %v2281, %v641
        %v2310 = vmul.f32 %v2282, %v641
        %v2311 = vmul.f32 %v2283, %v641
        %v2312 = vmul.f32 %v2284, %v641
        %v2313 = vadd.f32 %v2269, %v2309
        %v2314 = vadd.f32 %v2270, %v2310
        %v2315 = vadd.f32 %v2271, %v2311
        %v2316 = vadd.f32 %v2272, %v2312
        %v2317 = vmul.f32 %v2281, %v650
        %v2318 = vmul.f32 %v2282, %v650
        %v2319 = vmul.f32 %v2283, %v650
        %v2320 = vmul.f32 %v2284, %v650
        %v2321 = vadd.f32 %v2273, %v2317
        %v2322 = vadd.f32 %v2274, %v2318
        %v2323 = vadd.f32 %v2275, %v2319
        %v2324 = vadd.f32 %v2276, %v2320
        %v2325 = vrot.slane %v472, 4
        %v2326 = vrot.slane %v473, 4
        %v2327 = vrot.slane %v474, 4
        %v2328 = vrot.slane %v475, 4
        %v2329 = vmul.f32 %v472, %v2325
        %v2330 = vmul.f32 %v473, %v2326
        %v2331 = vmul.f32 %v474, %v2327
        %v2332 = vmul.f32 %v475, %v2328
        %v2333 = vmul.f32 %v2329, %v667
        %v2334 = vmul.f32 %v2330, %v667
        %v2335 = vmul.f32 %v2331, %v667
        %v2336 = vmul.f32 %v2332, %v667
        %v2337 = vadd.f32 %v2289, %v2333
        %v2338 = vadd.f32 %v2290, %v2334
        %v2339 = vadd.f32 %v2291, %v2335
        %v2340 = vadd.f32 %v2292, %v2336
        %v2341 = vmul.f32 %v2329, %v676
        %v2342 = vmul.f32 %v2330, %v676
        %v2343 = vmul.f32 %v2331, %v676
        %v2344 = vmul.f32 %v2332, %v676
        %v2345 = vadd.f32 %v2297, %v2341
        %v2346 = vadd.f32 %v2298, %v2342
        %v2347 = vadd.f32 %v2299, %v2343
        %v2348 = vadd.f32 %v2300, %v2344
        %v2349 = vmul.f32 %v2329, %v685
        %v2350 = vmul.f32 %v2330, %v685
        %v2351 = vmul.f32 %v2331, %v685
        %v2352 = vmul.f32 %v2332, %v685
        %v2353 = vadd.f32 %v2305, %v2349
        %v2354 = vadd.f32 %v2306, %v2350
        %v2355 = vadd.f32 %v2307, %v2351
        %v2356 = vadd.f32 %v2308, %v2352
        %v2357 = vmul.f32 %v2329, %v694
        %v2358 = vmul.f32 %v2330, %v694
        %v2359 = vmul.f32 %v2331, %v694
        %v2360 = vmul.f32 %v2332, %v694
        %v2361 = vadd.f32 %v2313, %v2357
        %v2362 = vadd.f32 %v2314, %v2358
        %v2363 = vadd.f32 %v2315, %v2359
        %v2364 = vadd.f32 %v2316, %v2360
        %v2365 = vmul.f32 %v2329, %v703
        %v2366 = vmul.f32 %v2330, %v703
        %v2367 = vmul.f32 %v2331, %v703
        %v2368 = vmul.f32 %v2332, %v703
        %v2369 = vadd.f32 %v2321, %v2365
        %v2370 = vadd.f32 %v2322, %v2366
        %v2371 = vadd.f32 %v2323, %v2367
        %v2372 = vadd.f32 %v2324, %v2368
        %v2373 = vrot.slane %v481, 4
        %v2374 = vrot.slane %v482, 4
        %v2375 = vrot.slane %v483, 4
        %v2376 = vrot.slane %v484, 4
        %v2377 = vmul.f32 %v481, %v2373
        %v2378 = vmul.f32 %v482, %v2374
        %v2379 = vmul.f32 %v483, %v2375
        %v2380 = vmul.f32 %v484, %v2376
        %v2381 = vmul.f32 %v2377, %v720
        %v2382 = vmul.f32 %v2378, %v720
        %v2383 = vmul.f32 %v2379, %v720
        %v2384 = vmul.f32 %v2380, %v720
        %v2385 = vadd.f32 %v2337, %v2381
        %v2386 = vadd.f32 %v2338, %v2382
        %v2387 = vadd.f32 %v2339, %v2383
        %v2388 = vadd.f32 %v2340, %v2384
        %v2389 = vmul.f32 %v2377, %v729
        %v2390 = vmul.f32 %v2378, %v729
        %v2391 = vmul.f32 %v2379, %v729
        %v2392 = vmul.f32 %v2380, %v729
        %v2393 = vadd.f32 %v2345, %v2389
        %v2394 = vadd.f32 %v2346, %v2390
        %v2395 = vadd.f32 %v2347, %v2391
        %v2396 = vadd.f32 %v2348, %v2392
        %v2397 = vmul.f32 %v2377, %v738
        %v2398 = vmul.f32 %v2378, %v738
        %v2399 = vmul.f32 %v2379, %v738
        %v2400 = vmul.f32 %v2380, %v738
        %v2401 = vadd.f32 %v2353, %v2397
        %v2402 = vadd.f32 %v2354, %v2398
        %v2403 = vadd.f32 %v2355, %v2399
        %v2404 = vadd.f32 %v2356, %v2400
        %v2405 = vmul.f32 %v2377, %v747
        %v2406 = vmul.f32 %v2378, %v747
        %v2407 = vmul.f32 %v2379, %v747
        %v2408 = vmul.f32 %v2380, %v747
        %v2409 = vadd.f32 %v2361, %v2405
        %v2410 = vadd.f32 %v2362, %v2406
        %v2411 = vadd.f32 %v2363, %v2407
        %v2412 = vadd.f32 %v2364, %v2408
        %v2413 = vmul.f32 %v2377, %v756
        %v2414 = vmul.f32 %v2378, %v756
        %v2415 = vmul.f32 %v2379, %v756
        %v2416 = vmul.f32 %v2380, %v756
        %v2417 = vadd.f32 %v2369, %v2413
        %v2418 = vadd.f32 %v2370, %v2414
        %v2419 = vadd.f32 %v2371, %v2415
        %v2420 = vadd.f32 %v2372, %v2416
        %v2421 = vrot.slane %v490, 4
        %v2422 = vrot.slane %v491, 4
        %v2423 = vrot.slane %v492, 4
        %v2424 = vrot.slane %v493, 4
        %v2425 = vmul.f32 %v490, %v2421
        %v2426 = vmul.f32 %v491, %v2422
        %v2427 = vmul.f32 %v492, %v2423
        %v2428 = vmul.f32 %v493, %v2424
        %v2429 = vmul.f32 %v2425, %v773
        %v2430 = vmul.f32 %v2426, %v773
        %v2431 = vmul.f32 %v2427, %v773
        %v2432 = vmul.f32 %v2428, %v773
        %v2433 = vadd.f32 %v2385, %v2429
        %v2434 = vadd.f32 %v2386, %v2430
        %v2435 = vadd.f32 %v2387, %v2431
        %v2436 = vadd.f32 %v2388, %v2432
        %v2437 = vmul.f32 %v2425, %v782
        %v2438 = vmul.f32 %v2426, %v782
        %v2439 = vmul.f32 %v2427, %v782
        %v2440 = vmul.f32 %v2428, %v782
        %v2441 = vadd.f32 %v2393, %v2437
        %v2442 = vadd.f32 %v2394, %v2438
        %v2443 = vadd.f32 %v2395, %v2439
        %v2444 = vadd.f32 %v2396, %v2440
        %v2445 = vmul.f32 %v2425, %v791
        %v2446 = vmul.f32 %v2426, %v791
        %v2447 = vmul.f32 %v2427, %v791
        %v2448 = vmul.f32 %v2428, %v791
        %v2449 = vadd.f32 %v2401, %v2445
        %v2450 = vadd.f32 %v2402, %v2446
        %v2451 = vadd.f32 %v2403, %v2447
        %v2452 = vadd.f32 %v2404, %v2448
        %v2453 = vmul.f32 %v2425, %v800
        %v2454 = vmul.f32 %v2426, %v800
        %v2455 = vmul.f32 %v2427, %v800
        %v2456 = vmul.f32 %v2428, %v800
        %v2457 = vadd.f32 %v2409, %v2453
        %v2458 = vadd.f32 %v2410, %v2454
        %v2459 = vadd.f32 %v2411, %v2455
        %v2460 = vadd.f32 %v2412, %v2456
        %v2461 = vmul.f32 %v2425, %v809
        %v2462 = vmul.f32 %v2426, %v809
        %v2463 = vmul.f32 %v2427, %v809
        %v2464 = vmul.f32 %v2428, %v809
        %v2465 = vadd.f32 %v2417, %v2461
        %v2466 = vadd.f32 %v2418, %v2462
        %v2467 = vadd.f32 %v2419, %v2463
        %v2468 = vadd.f32 %v2420, %v2464
        %v2469 = vrot.slane %v499, 4
        %v2470 = vrot.slane %v500, 4
        %v2471 = vrot.slane %v501, 4
        %v2472 = vrot.slane %v502, 4
        %v2473 = vmul.f32 %v499, %v2469
        %v2474 = vmul.f32 %v500, %v2470
        %v2475 = vmul.f32 %v501, %v2471
        %v2476 = vmul.f32 %v502, %v2472
        %v2477 = vmul.f32 %v2473, %v826
        %v2478 = vmul.f32 %v2474, %v826
        %v2479 = vmul.f32 %v2475, %v826
        %v2480 = vmul.f32 %v2476, %v826
        %v2481 = vadd.f32 %v2433, %v2477
        %v2482 = vadd.f32 %v2434, %v2478
        %v2483 = vadd.f32 %v2435, %v2479
        %v2484 = vadd.f32 %v2436, %v2480
        %v2485 = vmul.f32 %v2473, %v835
        %v2486 = vmul.f32 %v2474, %v835
        %v2487 = vmul.f32 %v2475, %v835
        %v2488 = vmul.f32 %v2476, %v835
        %v2489 = vadd.f32 %v2441, %v2485
        %v2490 = vadd.f32 %v2442, %v2486
        %v2491 = vadd.f32 %v2443, %v2487
        %v2492 = vadd.f32 %v2444, %v2488
        %v2493 = vmul.f32 %v2473, %v844
        %v2494 = vmul.f32 %v2474, %v844
        %v2495 = vmul.f32 %v2475, %v844
        %v2496 = vmul.f32 %v2476, %v844
        %v2497 = vadd.f32 %v2449, %v2493
        %v2498 = vadd.f32 %v2450, %v2494
        %v2499 = vadd.f32 %v2451, %v2495
        %v2500 = vadd.f32 %v2452, %v2496
        %v2501 = vmul.f32 %v2473, %v853
        %v2502 = vmul.f32 %v2474, %v853
        %v2503 = vmul.f32 %v2475, %v853
        %v2504 = vmul.f32 %v2476, %v853
        %v2505 = vadd.f32 %v2457, %v2501
        %v2506 = vadd.f32 %v2458, %v2502
        %v2507 = vadd.f32 %v2459, %v2503
        %v2508 = vadd.f32 %v2460, %v2504
        %v2509 = vmul.f32 %v2473, %v862
        %v2510 = vmul.f32 %v2474, %v862
        %v2511 = vmul.f32 %v2475, %v862
        %v2512 = vmul.f32 %v2476, %v862
        %v2513 = vadd.f32 %v2465, %v2509
        %v2514 = vadd.f32 %v2466, %v2510
        %v2515 = vadd.f32 %v2467, %v2511
        %v2516 = vadd.f32 %v2468, %v2512
        %v2517 = vrot.slane %v508, 4
        %v2518 = vrot.slane %v509, 4
        %v2519 = vrot.slane %v510, 4
        %v2520 = vrot.slane %v511, 4
        %v2521 = vmul.f32 %v508, %v2517
        %v2522 = vmul.f32 %v509, %v2518
        %v2523 = vmul.f32 %v510, %v2519
        %v2524 = vmul.f32 %v511, %v2520
        %v2525 = vmul.f32 %v2521, %v879
        %v2526 = vmul.f32 %v2522, %v879
        %v2527 = vmul.f32 %v2523, %v879
        %v2528 = vmul.f32 %v2524, %v879
        %v2529 = vadd.f32 %v2481, %v2525
        %v2530 = vadd.f32 %v2482, %v2526
        %v2531 = vadd.f32 %v2483, %v2527
        %v2532 = vadd.f32 %v2484, %v2528
        %v2533 = vmul.f32 %v2521, %v888
        %v2534 = vmul.f32 %v2522, %v888
        %v2535 = vmul.f32 %v2523, %v888
        %v2536 = vmul.f32 %v2524, %v888
        %v2537 = vadd.f32 %v2489, %v2533
        %v2538 = vadd.f32 %v2490, %v2534
        %v2539 = vadd.f32 %v2491, %v2535
        %v2540 = vadd.f32 %v2492, %v2536
        %v2541 = vmul.f32 %v2521, %v897
        %v2542 = vmul.f32 %v2522, %v897
        %v2543 = vmul.f32 %v2523, %v897
        %v2544 = vmul.f32 %v2524, %v897
        %v2545 = vadd.f32 %v2497, %v2541
        %v2546 = vadd.f32 %v2498, %v2542
        %v2547 = vadd.f32 %v2499, %v2543
        %v2548 = vadd.f32 %v2500, %v2544
        %v2549 = vmul.f32 %v2521, %v906
        %v2550 = vmul.f32 %v2522, %v906
        %v2551 = vmul.f32 %v2523, %v906
        %v2552 = vmul.f32 %v2524, %v906
        %v2553 = vadd.f32 %v2505, %v2549
        %v2554 = vadd.f32 %v2506, %v2550
        %v2555 = vadd.f32 %v2507, %v2551
        %v2556 = vadd.f32 %v2508, %v2552
        %v2557 = vmul.f32 %v2521, %v915
        %v2558 = vmul.f32 %v2522, %v915
        %v2559 = vmul.f32 %v2523, %v915
        %v2560 = vmul.f32 %v2524, %v915
        %v2561 = vadd.f32 %v2513, %v2557
        %v2562 = vadd.f32 %v2514, %v2558
        %v2563 = vadd.f32 %v2515, %v2559
        %v2564 = vadd.f32 %v2516, %v2560
        %v2565 = vrot.slane %v517, 4
        %v2566 = vrot.slane %v518, 4
        %v2567 = vrot.slane %v519, 4
        %v2568 = vrot.slane %v520, 4
        %v2569 = vmul.f32 %v517, %v2565
        %v2570 = vmul.f32 %v518, %v2566
        %v2571 = vmul.f32 %v519, %v2567
        %v2572 = vmul.f32 %v520, %v2568
        %v2573 = vmul.f32 %v2569, %v932
        %v2574 = vmul.f32 %v2570, %v932
        %v2575 = vmul.f32 %v2571, %v932
        %v2576 = vmul.f32 %v2572, %v932
        %v2577 = vadd.f32 %v2529, %v2573
        %v2578 = vadd.f32 %v2530, %v2574
        %v2579 = vadd.f32 %v2531, %v2575
        %v2580 = vadd.f32 %v2532, %v2576
        %v2581 = vmul.f32 %v2569, %v941
        %v2582 = vmul.f32 %v2570, %v941
        %v2583 = vmul.f32 %v2571, %v941
        %v2584 = vmul.f32 %v2572, %v941
        %v2585 = vadd.f32 %v2537, %v2581
        %v2586 = vadd.f32 %v2538, %v2582
        %v2587 = vadd.f32 %v2539, %v2583
        %v2588 = vadd.f32 %v2540, %v2584
        %v2589 = vmul.f32 %v2569, %v950
        %v2590 = vmul.f32 %v2570, %v950
        %v2591 = vmul.f32 %v2571, %v950
        %v2592 = vmul.f32 %v2572, %v950
        %v2593 = vadd.f32 %v2545, %v2589
        %v2594 = vadd.f32 %v2546, %v2590
        %v2595 = vadd.f32 %v2547, %v2591
        %v2596 = vadd.f32 %v2548, %v2592
        %v2597 = vmul.f32 %v2569, %v959
        %v2598 = vmul.f32 %v2570, %v959
        %v2599 = vmul.f32 %v2571, %v959
        %v2600 = vmul.f32 %v2572, %v959
        %v2601 = vadd.f32 %v2553, %v2597
        %v2602 = vadd.f32 %v2554, %v2598
        %v2603 = vadd.f32 %v2555, %v2599
        %v2604 = vadd.f32 %v2556, %v2600
        %v2605 = vmul.f32 %v2569, %v968
        %v2606 = vmul.f32 %v2570, %v968
        %v2607 = vmul.f32 %v2571, %v968
        %v2608 = vmul.f32 %v2572, %v968
        %v2609 = vadd.f32 %v2561, %v2605
        %v2610 = vadd.f32 %v2562, %v2606
        %v2611 = vadd.f32 %v2563, %v2607
        %v2612 = vadd.f32 %v2564, %v2608
        %v2613 = vadd.f32 %v2577, %v977
        %v2614 = vadd.f32 %v2578, %v977
        %v2615 = vadd.f32 %v2579, %v977
        %v2616 = vadd.f32 %v2580, %v977
        %v2617 = vmax.f32 %v2613, 0.0
        %v2618 = vmax.f32 %v2614, 0.0
        %v2619 = vmax.f32 %v2615, 0.0
        %v2620 = vmax.f32 %v2616, 0.0
        %v2621 = vmul.f32 %v2617, %v986
        %v2622 = vmul.f32 %v2618, %v986
        %v2623 = vmul.f32 %v2619, %v986
        %v2624 = vmul.f32 %v2620, %v986
        %v2625 = vadd.f32 %v2585, %v991
        %v2626 = vadd.f32 %v2586, %v991
        %v2627 = vadd.f32 %v2587, %v991
        %v2628 = vadd.f32 %v2588, %v991
        %v2629 = vmax.f32 %v2625, 0.0
        %v2630 = vmax.f32 %v2626, 0.0
        %v2631 = vmax.f32 %v2627, 0.0
        %v2632 = vmax.f32 %v2628, 0.0
        %v2633 = vmul.f32 %v2629, %v1000
        %v2634 = vmul.f32 %v2630, %v1000
        %v2635 = vmul.f32 %v2631, %v1000
        %v2636 = vmul.f32 %v2632, %v1000
        %v2637 = vadd.f32 %v2621, %v2633
        %v2638 = vadd.f32 %v2622, %v2634
        %v2639 = vadd.f32 %v2623, %v2635
        %v2640 = vadd.f32 %v2624, %v2636
        %v2641 = vadd.f32 %v2593, %v1009
        %v2642 = vadd.f32 %v2594, %v1009
        %v2643 = vadd.f32 %v2595, %v1009
        %v2644 = vadd.f32 %v2596, %v1009
        %v2645 = vmax.f32 %v2641, 0.0
        %v2646 = vmax.f32 %v2642, 0.0
        %v2647 = vmax.f32 %v2643, 0.0
        %v2648 = vmax.f32 %v2644, 0.0
        %v2649 = vmul.f32 %v2645, %v1018
        %v2650 = vmul.f32 %v2646, %v1018
        %v2651 = vmul.f32 %v2647, %v1018
        %v2652 = vmul.f32 %v2648, %v1018
        %v2653 = vadd.f32 %v2637, %v2649
        %v2654 = vadd.f32 %v2638, %v2650
        %v2655 = vadd.f32 %v2639, %v2651
        %v2656 = vadd.f32 %v2640, %v2652
        %v2657 = vadd.f32 %v2601, %v1027
        %v2658 = vadd.f32 %v2602, %v1027
        %v2659 = vadd.f32 %v2603, %v1027
        %v2660 = vadd.f32 %v2604, %v1027
        %v2661 = vmax.f32 %v2657, 0.0
        %v2662 = vmax.f32 %v2658, 0.0
        %v2663 = vmax.f32 %v2659, 0.0
        %v2664 = vmax.f32 %v2660, 0.0
        %v2665 = vmul.f32 %v2661, %v1036
        %v2666 = vmul.f32 %v2662, %v1036
        %v2667 = vmul.f32 %v2663, %v1036
        %v2668 = vmul.f32 %v2664, %v1036
        %v2669 = vadd.f32 %v2653, %v2665
        %v2670 = vadd.f32 %v2654, %v2666
        %v2671 = vadd.f32 %v2655, %v2667
        %v2672 = vadd.f32 %v2656, %v2668
        %v2673 = vrot.slane %v2669, 4
        %v2674 = vmax.f32 %v2669, %v2673
        %v2675 = vrot.slane %v2674, 2
        %v2676 = vmax.f32 %v2674, %v2675
        %v2677 = vrot.slane %v2676, 1
        %v2678 = vmax.f32 %v2676, %v2677
        %v2679 = vrot.slane %v2670, 4
        %v2680 = vmax.f32 %v2670, %v2679
        %v2681 = vrot.slane %v2680, 2
        %v2682 = vmax.f32 %v2680, %v2681
        %v2683 = vrot.slane %v2682, 1
        %v2684 = vmax.f32 %v2682, %v2683
        %v2685 = vrot.slane %v2671, 4
        %v2686 = vmax.f32 %v2671, %v2685
        %v2687 = vrot.slane %v2686, 2
        %v2688 = vmax.f32 %v2686, %v2687
        %v2689 = vrot.slane %v2688, 1
        %v2690 = vmax.f32 %v2688, %v2689
        %v2691 = vrot.slane %v2672, 4
        %v2692 = vmax.f32 %v2672, %v2691
        %v2693 = vrot.slane %v2692, 2
        %v2694 = vmax.f32 %v2692, %v2693
        %v2695 = vrot.slane %v2694, 1
        %v2696 = vmax.f32 %v2694, %v2695
        %v2697 = vmax.f32 %v2153, %v2678
        %v2698 = vmax.f32 %v2154, %v2684
        %v2699 = vmax.f32 %v2155, %v2690
        %v2700 = vmax.f32 %v2156, %v2696
        %v2701 = vsub.f32 %v2153, %v2697
        %v2702 = vsub.f32 %v2154, %v2698
        %v2703 = vsub.f32 %v2155, %v2699
        %v2704 = vsub.f32 %v2156, %v2700
        %v2705 = vmul.f32 %v2701, 1.442695
        %v2706 = vpow.pop %v2705
        %v2707 = vmul.f32 %v2702, 1.442695
        %v2708 = vpow.pop %v2707
        %v2709 = vmul.f32 %v2703, 1.442695
        %v2710 = vpow.pop %v2709
        %v2711 = vmul.f32 %v2704, 1.442695
        %v2712 = vpow.pop %v2711
        %v2713 = vsub.f32 %v2669, %v2697
        %v2714 = vsub.f32 %v2670, %v2698
        %v2715 = vsub.f32 %v2671, %v2699
        %v2716 = vsub.f32 %v2672, %v2700
        %v2717 = vmul.f32 %v2713, 1.442695
        %v2718 = vpow.pop %v2717
        %v2719 = vmul.f32 %v2714, 1.442695
        %v2720 = vpow.pop %v2719
        %v2721 = vmul.f32 %v2715, 1.442695
        %v2722 = vpow.pop %v2721
        %v2723 = vmul.f32 %v2716, 1.442695
        %v2724 = vpow.pop %v2723
        %v2725 = vsel %vm572, %v2718, 0.0
        %v2726 = vsel %vm572, %v2720, 0.0
        %v2727 = vsel %vm572, %v2722, 0.0
        %v2728 = vsel %vm572, %v2724, 0.0
        %v2729 = vmul.f32 %v2706, %v2209
        %v2730 = vmul.f32 %v2708, %v2210
        %v2731 = vmul.f32 %v2710, %v2211
        %v2732 = vmul.f32 %v2712, %v2212
        %v2733 = vrot.slane %v2725, 4
        %v2734 = vadd.f32 %v2725, %v2733
        %v2735 = vrot.slane %v2734, 2
        %v2736 = vadd.f32 %v2734, %v2735
        %v2737 = vrot.slane %v2736, 1
        %v2738 = vadd.f32 %v2736, %v2737
        %v2739 = vrot.slane %v2726, 4
        %v2740 = vadd.f32 %v2726, %v2739
        %v2741 = vrot.slane %v2740, 2
        %v2742 = vadd.f32 %v2740, %v2741
        %v2743 = vrot.slane %v2742, 1
        %v2744 = vadd.f32 %v2742, %v2743
        %v2745 = vrot.slane %v2727, 4
        %v2746 = vadd.f32 %v2727, %v2745
        %v2747 = vrot.slane %v2746, 2
        %v2748 = vadd.f32 %v2746, %v2747
        %v2749 = vrot.slane %v2748, 1
        %v2750 = vadd.f32 %v2748, %v2749
        %v2751 = vrot.slane %v2728, 4
        %v2752 = vadd.f32 %v2728, %v2751
        %v2753 = vrot.slane %v2752, 2
        %v2754 = vadd.f32 %v2752, %v2753
        %v2755 = vrot.slane %v2754, 1
        %v2756 = vadd.f32 %v2754, %v2755
        %v2757 = vadd.f32 %v2729, %v2738
        %v2758 = vadd.f32 %v2730, %v2744
        %v2759 = vadd.f32 %v2731, %v2750
        %v2760 = vadd.f32 %v2732, %v2756
        %v2761 = vmul.f32 %v2706, %v2245
        %v2762 = vmul.f32 %v2708, %v2246
        %v2763 = vmul.f32 %v2710, %v2247
        %v2764 = vmul.f32 %v2712, %v2248
        %v2765 = vmul.f32 %v2725, %v2609
        %v2766 = vmul.f32 %v2726, %v2610
        %v2767 = vmul.f32 %v2727, %v2611
        %v2768 = vmul.f32 %v2728, %v2612
        %v2769 = vrot.slane %v2765, 4
        %v2770 = vadd.f32 %v2765, %v2769
        %v2771 = vrot.slane %v2770, 2
        %v2772 = vadd.f32 %v2770, %v2771
        %v2773 = vrot.slane %v2772, 1
        %v2774 = vadd.f32 %v2772, %v2773
        %v2775 = vrot.slane %v2766, 4
        %v2776 = vadd.f32 %v2766, %v2775
        %v2777 = vrot.slane %v2776, 2
        %v2778 = vadd.f32 %v2776, %v2777
        %v2779 = vrot.slane %v2778, 1
        %v2780 = vadd.f32 %v2778, %v2779
        %v2781 = vrot.slane %v2767, 4
        %v2782 = vadd.f32 %v2767, %v2781
        %v2783 = vrot.slane %v2782, 2
        %v2784 = vadd.f32 %v2782, %v2783
        %v2785 = vrot.slane %v2784, 1
        %v2786 = vadd.f32 %v2784, %v2785
        %v2787 = vrot.slane %v2768, 4
        %v2788 = vadd.f32 %v2768, %v2787
        %v2789 = vrot.slane %v2788, 2
        %v2790 = vadd.f32 %v2788, %v2789
        %v2791 = vrot.slane %v2790, 1
        %v2792 = vadd.f32 %v2790, %v2791
        %v2793 = vadd.f32 %v2761, %v2774
        %v2794 = vadd.f32 %v2762, %v2780
        %v2795 = vadd.f32 %v2763, %v2786
        %v2796 = vadd.f32 %v2764, %v2792
        %v2797 = vrcp.pop %v2757
        %v2798 = vrcp.pop %v2758
        %v2799 = vrcp.pop %v2759
        %v2800 = vrcp.pop %v2760
        %v2801 = vmul.f32 %v2793, %v2797
        %v2802 = vmul.f32 %v2794, %v2798
        %v2803 = vmul.f32 %v2795, %v2799
        %v2804 = vmul.f32 %v2796, %v2800
        %v2805 = vstv %s569
        %v2806 = vadd.f32 %v2805, %v431
        %v2807 = vadd.f32 %v2805, %v437
        %v2808 = vadd.f32 %v2805, %v443
        %v2809 = vadd.f32 %v2805, %v449
        %v2810 = vadd.f32 %v2806, %v2801
        %v2811 = vadd.f32 %v2807, %v2802
        %v2812 = vadd.f32 %v2808, %v2803
        %v2813 = vadd.f32 %v2809, %v2804
        %v2814 = vxor.u32 %v2810, 2147483648
        %v2815 = vxor.u32 %v2811, 2147483648
        %v2816 = vxor.u32 %v2812, 2147483648
        %v2817 = vxor.u32 %v2813, 2147483648
        %v2818 = vmul.f32 %v2814, 1.442695
        %v2819 = vpow.pop %v2818
        %v2820 = vmul.f32 %v2815, 1.442695
        %v2821 = vpow.pop %v2820
        %v2822 = vmul.f32 %v2816, 1.442695
        %v2823 = vpow.pop %v2822
        %v2824 = vmul.f32 %v2817, 1.442695
        %v2825 = vpow.pop %v2824
        %v2826 = vadd.f32 %v2819, 1.0
        %v2827 = vadd.f32 %v2821, 1.0
        %v2828 = vadd.f32 %v2823, 1.0
        %v2829 = vadd.f32 %v2825, 1.0
        %v2830 = vrcp.pop %v2826
        %v2831 = vmul.f32 1.0, %v2830
        %v2832 = vrcp.pop %v2827
        %v2833 = vmul.f32 1.0, %v2832
        %v2834 = vrcp.pop %v2828
        %v2835 = vmul.f32 1.0, %v2834
        %v2836 = vrcp.pop %v2829
        %v2837 = vmul.f32 1.0, %v2836
        %v2842 = vcombine.low %v2831, %v2833
        %v2843 = vcombine.low %v2835, %v2837
        %v2845 = vunpack.c.l.s4 1966171168
        %v2846 = vunpack.c.0.s8 %v2845
        %v2847 = vlaneseq
        %v2848 = vshrl.u32 %v2847, 7
        %v2849 = vsub.s32 %v2846, %v2848
        %v2850 = vrot.slane %v2842, %v2849
        %v2852 = vunpack.c.l.s4 1966171168
        %v2853 = vunpack.c.0.s8 %v2852
        %v2854 = vlaneseq
        %v2855 = vshrl.u32 %v2854, 7
        %v2856 = vsub.s32 %v2853, %v2855
        %v2857 = vrot.slane %v2843, %v2856
        %v2858 = vcombine.low %v2850, %v2857
        %v2860 = vunpack.c.l.s4 1966171168
        %v2861 = vunpack.c.0.s8 %v2860
        %v2862 = vlaneseq
        %v2863 = vshrl.u32 %v2862, 7
        %v2864 = vsub.s32 %v2861, %v2863
        %v2865 = vrot.slane %v2858, %v2864
        %v2867 = vlaneseq
        %vm2868 = vcmp.ge.s32.totalorder %v2867, 0
        %vm2869 = vcmp.lt.s32.totalorder %v2867, 512
        %vm2870 = vmand %vm2868, %vm2869
        %2871 = vst.msk [vmem:[%s409] sm:$0xf] %vm2870, %v2865
        %s2872 = sand.u32 %s200, 1
        %s2873 = scalar_lea.sflag [#allocation5], %s2872
        %s2874 = sand.u32 %s200, 1
        %s2875 = smul.addr %s2874, 4
        %s2876 = scalar_lea.vmem [#allocation14], %s2875
        // Predicated region
        $region73: #{tpu_custom_call.1} parent=47 // pred_check
          %p2877 = pneg %p210
        $region74: #{tpu_custom_call.1} parent=47 // pred_check_branch
          %2879 = sbr.rel (%p2877) target = $region76
        $region75: #{tpu_custom_call.1} parent=47 // pred_region
          %s2880 = smul.u32 4, %s30
          %s2882 = ssub.s32 64, 64
          %2883 = vsyncadd %s2873, %s2882
          %s2884 = smul.addr %s2880, 16
          %s2885 = scalar_lea.hbm %s7, %s2884
          %s2887 = sshll.u32 %s2876, 4
          %s2888 = int_to_ptr.vmem [resolvable:$true] %s2887
          %2890 = dma.vmem_to_hbm [thread:$0]  %s2888, 64, %s2885, %s2873
        $region76: #{tpu_custom_call.1} parent=47 // pred_fallthru
          _
      $region48: #{tpu_custom_call.1} parent=5 // pred_fallthru
        _
      %p2891 = scmp.le.s32.totalorder 2, %s25
      // Predicated region
      $region77: #{tpu_custom_call.1} parent=5 // pred_check
        %p2892 = pneg %p2891
      $region78: #{tpu_custom_call.1} parent=5 // pred_check_branch
        %2894 = sbr.rel (%p2892) target = $region80
      $region79: #{tpu_custom_call.1} parent=5 // pred_region
        %s2895 = ssub.s32 %s25, 2
        // Predicated region
        $region81: #{tpu_custom_call.1} parent=79 // pred_check
          %p2896 = pneg %p216
        $region82: #{tpu_custom_call.1} parent=79 // pred_check_branch
          %2898 = sbr.rel (%p2896) target = $region84
        $region83: #{tpu_custom_call.1} parent=79 // pred_region
          %s2899 = sand.u32 %s201, 1
          %s2900 = scalar_lea.sflag [#allocation5], %s2899
          %s2901 = sand.u32 %s201, 1
          %s2902 = smul.addr %s2901, 4
          %s2903 = scalar_lea.vmem [#allocation14], %s2902
          %2904 = dma.done %s2900, 64
        $region84: #{tpu_custom_call.1} parent=79 // pred_fallthru
          _
      $region80: #{tpu_custom_call.1} parent=5 // pred_fallthru
        _
    $region6: #{tpu_custom_call.1} parent=1 // loop_footer
      %s29 = sadd.s32 1, %s25
    $region7: #{tpu_custom_call.1} parent=1 // loop_footer_branch
      %24 = sbr.rel target = $region3
    $region8: #{tpu_custom_call.1} parent=1 // loop_exit
      _
    %2905 = vsyncpa [#allocation4], 1
    %s2906 = scalar_lea.sflag [#allocation4], 1
    %2907 = vsyncpa %s2906, 1
    %2908 = vsyncpa [#allocation8], 1
    %s2909 = scalar_lea.sflag [#allocation8], 1
    %2910 = vsyncpa %s2909, 1
    %2911 = vsyncpa [#allocation5], 1
    %s2912 = scalar_lea.sflag [#allocation5], 1
    %2913 = vsyncpa %s2912, 1
    %2914 = vsyncpa [#allocation6], 1
    %s2915 = scalar_lea.sflag [#allocation6], 1
    %2916 = vsyncpa %s2915, 1
    %2917 = vsyncpa [#allocation12], 1

</llo_original>
